<compile_context>
chip_gen: v7x
topology: tpu7x:2x2x1
jax: 0.10.0
libtpu: 0.0.40
codegen_flags: <defaults>
</compile_context>

<pallas_src>
import functools

import jax
import jax.numpy as jnp
from jax.experimental import pallas as pl
from jax.experimental.pallas import tpu as pltpu


def _transformer_block_kernel(
    x_ref,       # (1, S, E)  f32 : full sequence for this batch element
    wq_ref,      # (E, E)     bf16 (softmax scale folded in)
    bq_ref,      # (1, E)     f32  (softmax scale folded in)
    wkv_ref,     # (E, 2E)    bf16 (k | v)
    bkv_ref,     # (1, 2E)    f32
    wo_ref,      # (E, E)     bf16
    bo_ref,      # (1, E)     f32
    g1_ref, be1_ref, g2_ref, be2_ref,   # (1, E) f32
    w1_ref,      # (E, F)     bf16
    b1_ref,      # (1, F)     f32
    w2_ref,      # (F, E)     bf16
    b2_ref,      # (1, E)     f32
    out_ref,     # (1, tS, E) f32
    kT_s,        # (E, S)  bf16 scratch : K transposed, persists across qi
    v_s,         # (S, E)  bf16 scratch : V, persists across qi
    ctx_s,       # (tS, E) bf16 scratch : per-tile attention context
    *,
    num_heads,
    proj_chunk,
):
    S, E = v_s.shape
    tS = out_ref.shape[1]
    H = num_heads
    D = E // H
    qi = pl.program_id(1)

    def layernorm(v, g_r, b_r):
        mu = jnp.mean(v, axis=-1, keepdims=True)
        var = jnp.mean(jnp.square(v - mu), axis=-1, keepdims=True)
        return (v - mu) * jax.lax.rsqrt(var + 1e-6) * g_r[...] + b_r[...]

    # ---- K/V projection for the whole sequence, once per batch element ----
    # qi is an "arbitrary" (sequential) grid axis, so qi == 0 runs before every
    # later query tile of this batch element and the scratch stays valid.
    @pl.when(qi == 0)
    def _():
        for c in range(S // proj_chunk):                       # static, unrolled
            r0 = c * proj_chunk
            xc = x_ref[0, pl.ds(r0, proj_chunk), :].astype(jnp.bfloat16)
            kv = jnp.dot(xc, wkv_ref[...],
                         preferred_element_type=jnp.float32) + bkv_ref[...]
            kT_s[:, pl.ds(r0, proj_chunk)] = kv[:, :E].T.astype(jnp.bfloat16)
            v_s[pl.ds(r0, proj_chunk), :] = kv[:, E:].astype(jnp.bfloat16)

    # ---- query tile: residual slice + Q projection (scale pre-folded) ----
    row0 = pl.multiple_of(qi * tS, tS)
    x_tile = x_ref[0, pl.ds(row0, tS), :]                              # (tS, E) f32
    q_tile = (jnp.dot(x_tile.astype(jnp.bfloat16), wq_ref[...],
                      preferred_element_type=jnp.float32)
              + bq_ref[...]).astype(jnp.bfloat16)                      # (tS, E)

    # ---- multi-head attention (per-head slices are 128-lane aligned) ----
    for h in range(H):                                                 # static loop
        qh = q_tile[:, h * D:(h + 1) * D]                              # (tS, D) bf16
        khT = kT_s[h * D:(h + 1) * D, :]                               # (D, S)  bf16
        vh = v_s[:, h * D:(h + 1) * D]                                 # (S, D)  bf16
        s = jnp.dot(qh, khT, preferred_element_type=jnp.float32)       # (tS, S) f32
        s = s - jnp.max(s, axis=-1, keepdims=True)
        p = jnp.exp(s.astype(jnp.bfloat16))                            # bf16 exp (EUP)
        row_sum = jnp.sum(p.astype(jnp.float32), axis=-1, keepdims=True)
        ctx = jnp.dot(p, vh, preferred_element_type=jnp.float32)       # (tS, D) f32
        ctx = ctx * pl.reciprocal(row_sum, approx=True)                # normalize after P.V
        ctx_s[:, h * D:(h + 1) * D] = ctx.astype(jnp.bfloat16)

    attn = jnp.dot(ctx_s[...], wo_ref[...],
                   preferred_element_type=jnp.float32) + bo_ref[...]   # (tS, E) f32

    # ---- residual 1 + LayerNorm 1 (dropout = identity in eval mode) ----
    res1 = layernorm(x_tile + attn, g1_ref, be1_ref)

    # ---- feed-forward ----
    h1 = jnp.dot(res1.astype(jnp.bfloat16), w1_ref[...],
                 preferred_element_type=jnp.float32) + b1_ref[...]
    h1 = jnp.maximum(h1, 0.0)
    ff = jnp.dot(h1.astype(jnp.bfloat16), w2_ref[...],
                 preferred_element_type=jnp.float32) + b2_ref[...]

    # ---- residual 2 + LayerNorm 2 ----
    out_ref[0] = layernorm(res1 + ff, g2_ref, be2_ref).astype(out_ref.dtype)


def transformer_block(x, params, *, num_heads, q_tile=None):
    """x: (B, S, E) float32. params: dict (see init_params). Returns (B, S, E) f32."""
    B, S, E = x.shape
    F = params["w1"].shape[1]
    assert E % num_heads == 0, "emb_dim must be divisible by num_heads"
    D = E // num_heads
    assert D % 128 == 0, "head dim must be a multiple of 128 for this kernel layout"
    if q_tile is None:
        q_tile = min(S, 256)                 # fill the 256x256 MXU on v6e/v7x
    assert S % q_tile == 0, "seq len must be divisible by the query tile"
    proj_chunk = min(S, 256)
    assert S % proj_chunk == 0
    n_q = S // q_tile

    bf16 = jnp.bfloat16
    scale = 1.0 / float(D) ** 0.5
    # Softmax scale folded into the Q projection; K/V fused along the output axis.
    wq = (params["wq"] * scale).astype(bf16)
    bq = params["bq"] * scale
    wkv = jnp.concatenate([params["wk"], params["wv"]], axis=1).astype(bf16)
    bkv = jnp.concatenate([params["bk"], params["bv"]], axis=1)
    weight_args = [
        wq, bq, wkv, bkv,
        params["wo"].astype(bf16), params["bo"],
        params["g1"], params["be1"], params["g2"], params["be2"],
        params["w1"].astype(bf16), params["b1"],
        params["w2"].astype(bf16), params["b2"],
    ]
    # Grid-invariant operands: whole array resident in VMEM, fetched once,
    # single-buffered (no wasted second pipeline buffer).
    weight_specs = [pl.BlockSpec(memory_space=pltpu.MemorySpace.VMEM)
                    for _ in weight_args]

    kernel = functools.partial(_transformer_block_kernel,
                               num_heads=num_heads, proj_chunk=proj_chunk)

    # VMEM footprint estimate (bytes) -> scoped limit with headroom.
    est = (
        2 * S * E * 4                       # x block (double-buffered)
        + 2 * q_tile * E * 4                # out block (double-buffered)
        + 2 * (4 * E * E + 2 * E * F)       # bf16 weights, single copy
        + 2 * (2 * S * E + q_tile * E)      # K^T / V / ctx scratch
        + 4 * q_tile * S * 4                # per-head score temps
        + 2 * q_tile * F * 4                # FFN intermediate
    )
    vmem_limit = int(min(128 * 1024 * 1024, max(32 * 1024 * 1024, 2 * est)))

    return pl.pallas_call(
        kernel,
        out_shape=jax.ShapeDtypeStruct((B, S, E), jnp.float32),
        grid_spec=pltpu.PrefetchScalarGridSpec(
            num_scalar_prefetch=0,
            grid=(B, n_q),
            in_specs=[pl.BlockSpec((1, S, E), lambda b, qi: (b, 0, 0))]
                     + weight_specs,
            out_specs=pl.BlockSpec((1, q_tile, E), lambda b, qi: (b, qi, 0)),
            scratch_shapes=[
                pltpu.VMEM((E, S), bf16),        # K^T (full sequence)
                pltpu.VMEM((S, E), bf16),        # V   (full sequence)
                pltpu.VMEM((q_tile, E), bf16),   # per-tile attention context
            ],
        ),
        compiler_params=pltpu.CompilerParams(
            dimension_semantics=("parallel", "arbitrary"),
            vmem_limit_bytes=vmem_limit,
        ),
    )(x, *weight_args)


def init_params(key, emb_dim, forward_dim):
    """Deterministic synthetic parameter init (small values)."""
    ks = jax.random.split(key, 16)
    s = 0.05
    n = lambda k, shape: jax.random.normal(k, shape, jnp.float32)
    return {
        "wq": n(ks[0], (emb_dim, emb_dim)) * s,
        "wk": n(ks[1], (emb_dim, emb_dim)) * s,
        "wv": n(ks[2], (emb_dim, emb_dim)) * s,
        "wo": n(ks[3], (emb_dim, emb_dim)) * s,
        "bq": n(ks[4], (1, emb_dim)) * s,
        "bk": n(ks[5], (1, emb_dim)) * s,
        "bv": n(ks[6], (1, emb_dim)) * s,
        "bo": n(ks[7], (1, emb_dim)) * s,
        "g1": 1.0 + n(ks[8], (1, emb_dim)) * 0.1,
        "be1": n(ks[9], (1, emb_dim)) * 0.1,
        "g2": 1.0 + n(ks[10], (1, emb_dim)) * 0.1,
        "be2": n(ks[11], (1, emb_dim)) * 0.1,
        "w1": n(ks[12], (emb_dim, forward_dim)) * s,
        "b1": n(ks[13], (1, forward_dim)) * s,
        "w2": n(ks[14], (forward_dim, emb_dim)) * s,
        "b2": n(ks[15], (1, emb_dim)) * s,
    }


def reference_transformer_block(x, p, *, num_heads):
    """Pure-JAX f32 reference mirroring the PyTorch forward (eval mode)."""
    B, S, E = x.shape
    D = E // num_heads
    scale = 1.0 / float(D) ** 0.5

    def ln(v, g, b):
        mu = jnp.mean(v, axis=-1, keepdims=True)
        var = jnp.mean((v - mu) ** 2, axis=-1, keepdims=True)
        return (v - mu) / jnp.sqrt(var + 1e-6) * g + b

    q = x @ p["wq"] + p["bq"]
    k = x @ p["wk"] + p["bk"]
    v = x @ p["wv"] + p["bv"]
    qh = q.reshape(B, S, num_heads, D).transpose(0, 2, 1, 3)
    kh = k.reshape(B, S, num_heads, D).transpose(0, 2, 1, 3)
    vh = v.reshape(B, S, num_heads, D).transpose(0, 2, 1, 3)
    scores = jnp.einsum("bhsd,bhtd->bhst", qh, kh) * scale
    pm = jax.nn.softmax(scores, axis=-1)
    ctx = jnp.einsum("bhst,bhtd->bhsd", pm, vh)
    ctx = ctx.transpose(0, 2, 1, 3).reshape(B, S, E)
    attn = ctx @ p["wo"] + p["bo"]
    res1 = ln(x + attn, p["g1"], p["be1"])
    ff = jnp.maximum(res1 @ p["w1"] + p["b1"], 0.0) @ p["w2"] + p["b2"]
    return ln(res1 + ff, p["g2"], p["be2"])


if __name__ == "__main__":
    # TPU-aligned small shapes: E, F, S multiples of 128; per-head dim D = 128.
    # q_tile=128 -> n_q=2 exercises the carried K/V scratch across query tiles.
    B, S, E, H, F = 2, 256, 256, 2, 512

    key = jax.random.PRNGKey(0)
    x_key, p_key = jax.random.split(key)
    x = jax.random.normal(x_key, (B, S, E), jnp.float32)
    params = init_params(p_key, E, F)

    out = transformer_block(x, params, num_heads=H, q_tile=128)
    out = jax.block_until_ready(out)

    ref = reference_transformer_block(x, params, num_heads=H)
    assert out.shape == (B, S, E)
    max_err = float(jnp.max(jnp.abs(out - ref)))
    assert jnp.allclose(out, ref, atol=5e-2, rtol=5e-2), (
        f"mismatch vs reference (max abs err {max_err})")

    print("KERNEL_OK")
</pallas_src>

<mosaic_0001>
module attributes {stable_mosaic.version = 11 : i64} {
  func.func @_transformer_block_kernel(%arg0: i32, %arg1: i32, %arg2: memref<1x256x256xf32, #tpu.memory_space<vmem>>, %arg3: memref<256x256xbf16, #tpu.memory_space<vmem>>, %arg4: memref<1x256xf32, #tpu.memory_space<vmem>>, %arg5: memref<256x512xbf16, #tpu.memory_space<vmem>>, %arg6: memref<1x512xf32, #tpu.memory_space<vmem>>, %arg7: memref<256x256xbf16, #tpu.memory_space<vmem>>, %arg8: memref<1x256xf32, #tpu.memory_space<vmem>>, %arg9: memref<1x256xf32, #tpu.memory_space<vmem>>, %arg10: memref<1x256xf32, #tpu.memory_space<vmem>>, %arg11: memref<1x256xf32, #tpu.memory_space<vmem>>, %arg12: memref<1x256xf32, #tpu.memory_space<vmem>>, %arg13: memref<256x512xbf16, #tpu.memory_space<vmem>>, %arg14: memref<1x512xf32, #tpu.memory_space<vmem>>, %arg15: memref<512x256xbf16, #tpu.memory_space<vmem>>, %arg16: memref<1x256xf32, #tpu.memory_space<vmem>>, %arg17: memref<1x128x256xf32, #tpu.memory_space<vmem>>, %arg18: memref<256x256xbf16, #tpu.memory_space<vmem>>, %arg19: memref<256x256xbf16, #tpu.memory_space<vmem>>, %arg20: memref<128x256xbf16, #tpu.memory_space<vmem>>) attributes {dimension_semantics = [#tpu.dimension_semantics<parallel>, #tpu.dimension_semantics<arbitrary>], iteration_bounds = array<i64: 2, 2>, scalar_prefetch = 0 : i64, scratch_operands = 3 : i64, tpu.core_type = #tpu.core_type<tc>, window_params = [{transform_indices = @transform_0, window_bounds = array<i64: 1, 256, 256>}, {pipeline_mode = #tpu.pipeline_mode<synchronous>, transform_indices = @transform_1, window_bounds = array<i64: 256, 256>}, {pipeline_mode = #tpu.pipeline_mode<synchronous>, transform_indices = @transform_2, window_bounds = array<i64: 1, 256>}, {pipeline_mode = #tpu.pipeline_mode<synchronous>, transform_indices = @transform_3, window_bounds = array<i64: 256, 512>}, {pipeline_mode = #tpu.pipeline_mode<synchronous>, transform_indices = @transform_4, window_bounds = array<i64: 1, 512>}, {pipeline_mode = #tpu.pipeline_mode<synchronous>, transform_indices = @transform_5, window_bounds = array<i64: 256, 256>}, {pipeline_mode = #tpu.pipeline_mode<synchronous>, transform_indices = @transform_6, window_bounds = array<i64: 1, 256>}, {pipeline_mode = #tpu.pipeline_mode<synchronous>, transform_indices = @transform_7, window_bounds = array<i64: 1, 256>}, {pipeline_mode = #tpu.pipeline_mode<synchronous>, transform_indices = @transform_8, window_bounds = array<i64: 1, 256>}, {pipeline_mode = #tpu.pipeline_mode<synchronous>, transform_indices = @transform_9, window_bounds = array<i64: 1, 256>}, {pipeline_mode = #tpu.pipeline_mode<synchronous>, transform_indices = @transform_10, window_bounds = array<i64: 1, 256>}, {pipeline_mode = #tpu.pipeline_mode<synchronous>, transform_indices = @transform_11, window_bounds = array<i64: 256, 512>}, {pipeline_mode = #tpu.pipeline_mode<synchronous>, transform_indices = @transform_12, window_bounds = array<i64: 1, 512>}, {pipeline_mode = #tpu.pipeline_mode<synchronous>, transform_indices = @transform_13, window_bounds = array<i64: 512, 256>}, {pipeline_mode = #tpu.pipeline_mode<synchronous>, transform_indices = @transform_14, window_bounds = array<i64: 1, 256>}, {transform_indices = @transform_15, window_bounds = array<i64: 1, 128, 256>}]} {
    %c0_i32 = arith.constant 0 : i32
    %0 = arith.cmpi eq, %arg1, %c0_i32 : i32
    %1 = arith.extui %0 : i1 to i32
    %c0_i32_0 = arith.constant 0 : i32
    %2 = arith.cmpi ne, %1, %c0_i32_0 : i32
    scf.if %2 {
      %c0_64 = arith.constant 0 : index
      %c0_65 = arith.constant 0 : index
      %c0_66 = arith.constant 0 : index
      %126 = vector.load %arg2[%c0_64, %c0_65, %c0_66] : memref<1x256x256xf32, #tpu.memory_space<vmem>>, vector<1x256x256xf32>
      %127 = vector.shape_cast %126 : vector<1x256x256xf32> to vector<256x256xf32>
      %128 = arith.truncf %127 : vector<256x256xf32> to vector<256x256xbf16>
      %c0_67 = arith.constant 0 : index
      %c0_68 = arith.constant 0 : index
      %129 = vector.load %arg5[%c0_67, %c0_68] : memref<256x512xbf16, #tpu.memory_space<vmem>>, vector<256x512xbf16>
      %cst_69 = arith.constant dense<0.000000e+00> : vector<256x512xf32>
      %130 = tpu.matmul %128, %129, %cst_69 {dimension_numbers = #tpu.dot_dimension_numbers<[1], [0], [0], [1], [0, 0, 1, 1], [], []>} : vector<256x256xbf16>, vector<256x512xbf16>, vector<256x512xf32> -> vector<256x512xf32>
      %c0_70 = arith.constant 0 : index
      %c0_71 = arith.constant 0 : index
      %131 = vector.load %arg6[%c0_70, %c0_71] : memref<1x512xf32, #tpu.memory_space<vmem>>, vector<1x512xf32>
      %132 = vector.broadcast %131 : vector<1x512xf32> to vector<256x512xf32>
      %133 = arith.addf %130, %132 : vector<256x512xf32>
      %134 = vector.extract_strided_slice %133 {offsets = [0, 0], sizes = [256, 256], strides = [1, 1]} : vector<256x512xf32> to vector<256x256xf32>
      %135 = tpu.transpose %134, [1, 0] : vector<256x256xf32> -> vector<256x256xf32>
      %136 = arith.truncf %135 : vector<256x256xf32> to vector<256x256xbf16>
      %c0_72 = arith.constant 0 : index
      %c0_73 = arith.constant 0 : index
      %137 = vector.load %arg18[%c0_72, %c0_73] : memref<256x256xbf16, #tpu.memory_space<vmem>>, vector<256x256xbf16>
      tpu.vector_store %arg18[%c0_72, %c0_73], %136 {strides = array<i32>} : memref<256x256xbf16, #tpu.memory_space<vmem>>, vector<256x256xbf16>,
      %138 = vector.extract_strided_slice %133 {offsets = [0, 256], sizes = [256, 256], strides = [1, 1]} : vector<256x512xf32> to vector<256x256xf32>
      %139 = arith.truncf %138 : vector<256x256xf32> to vector<256x256xbf16>
      %c0_74 = arith.constant 0 : index
      %c0_75 = arith.constant 0 : index
      %140 = vector.load %arg19[%c0_74, %c0_75] : memref<256x256xbf16, #tpu.memory_space<vmem>>, vector<256x256xbf16>
      tpu.vector_store %arg19[%c0_74, %c0_75], %139 {strides = array<i32>} : memref<256x256xbf16, #tpu.memory_space<vmem>>, vector<256x256xbf16>,
    } else {
    }
    %c128_i32 = arith.constant 128 : i32
    %3 = arith.muli %arg1, %c128_i32 : i32
    %4 = tpu.assume_multiple %3, 128 : i32
    %c0 = arith.constant 0 : index
    %5 = arith.index_cast %4 : i32 to index
    %c0_1 = arith.constant 0 : index
    %6 = vector.load %arg2[%c0, %5, %c0_1] : memref<1x256x256xf32, #tpu.memory_space<vmem>>, vector<1x128x256xf32>
    %7 = vector.shape_cast %6 : vector<1x128x256xf32> to vector<128x256xf32>
    %8 = arith.truncf %7 : vector<128x256xf32> to vector<128x256xbf16>
    %c0_2 = arith.constant 0 : index
    %c0_3 = arith.constant 0 : index
    %9 = vector.load %arg3[%c0_2, %c0_3] : memref<256x256xbf16, #tpu.memory_space<vmem>>, vector<256x256xbf16>
    %cst = arith.constant dense<0.000000e+00> : vector<128x256xf32>
    %10 = tpu.matmul %8, %9, %cst {dimension_numbers = #tpu.dot_dimension_numbers<[1], [0], [0], [1], [0, 0, 1, 1], [], []>} : vector<128x256xbf16>, vector<256x256xbf16>, vector<128x256xf32> -> vector<128x256xf32>
    %c0_4 = arith.constant 0 : index
    %c0_5 = arith.constant 0 : index
    %11 = vector.load %arg4[%c0_4, %c0_5] : memref<1x256xf32, #tpu.memory_space<vmem>>, vector<1x256xf32>
    %12 = vector.broadcast %11 : vector<1x256xf32> to vector<128x256xf32>
    %13 = arith.addf %10, %12 : vector<128x256xf32>
    %14 = arith.truncf %13 : vector<128x256xf32> to vector<128x256xbf16>
    %15 = vector.extract_strided_slice %14 {offsets = [0, 0], sizes = [128, 128], strides = [1, 1]} : vector<128x256xbf16> to vector<128x128xbf16>
    %c0_6 = arith.constant 0 : index
    %c0_7 = arith.constant 0 : index
    %16 = vector.load %arg18[%c0_6, %c0_7] : memref<256x256xbf16, #tpu.memory_space<vmem>>, vector<128x256xbf16>
    %c0_8 = arith.constant 0 : index
    %c0_9 = arith.constant 0 : index
    %17 = vector.load %arg19[%c0_8, %c0_9] : memref<256x256xbf16, #tpu.memory_space<vmem>>, vector<256x128xbf16>
    %cst_10 = arith.constant dense<0.000000e+00> : vector<128x256xf32>
    %18 = tpu.matmul %15, %16, %cst_10 {dimension_numbers = #tpu.dot_dimension_numbers<[1], [0], [0], [1], [0, 0, 1, 1], [], []>} : vector<128x128xbf16>, vector<128x256xbf16>, vector<128x256xf32> -> vector<128x256xf32>
    %cst_11 = arith.constant dense<0xFF800000> : vector<128xf32>
    %19 = vector.multi_reduction <maximumf>, %18, %cst_11 [1] : vector<128x256xf32> to vector<128xf32>
    %20 = vector.shape_cast %19 : vector<128xf32> to vector<128x1xf32>
    %21 = vector.broadcast %20 : vector<128x1xf32> to vector<128x256xf32>
    %22 = arith.subf %18, %21 : vector<128x256xf32>
    %23 = arith.truncf %22 : vector<128x256xf32> to vector<128x256xbf16>
    %24 = math.exp %23 : vector<128x256xbf16>
    %25 = arith.extf %24 : vector<128x256xbf16> to vector<128x256xf32>
    %cst_12 = arith.constant dense<0.000000e+00> : vector<128xf32>
    %26 = vector.multi_reduction <add>, %25, %cst_12 [1] : vector<128x256xf32> to vector<128xf32>
    %27 = vector.shape_cast %26 : vector<128xf32> to vector<128x1xf32>
    %cst_13 = arith.constant dense<0.000000e+00> : vector<128x128xf32>
    %28 = tpu.matmul %24, %17, %cst_13 {dimension_numbers = #tpu.dot_dimension_numbers<[1], [0], [0], [1], [0, 0, 1, 1], [], []>} : vector<128x256xbf16>, vector<256x128xbf16>, vector<128x128xf32> -> vector<128x128xf32>
    %29 = tpu.reciprocal %27 {approx = true} : vector<128x1xf32> -> vector<128x1xf32>
    %30 = vector.broadcast %29 : vector<128x1xf32> to vector<128x128xf32>
    %31 = arith.mulf %28, %30 : vector<128x128xf32>
    %32 = arith.truncf %31 : vector<128x128xf32> to vector<128x128xbf16>
    %c0_14 = arith.constant 0 : index
    %c0_15 = arith.constant 0 : index
    %33 = vector.load %arg20[%c0_14, %c0_15] : memref<128x256xbf16, #tpu.memory_space<vmem>>, vector<128x128xbf16>
    tpu.vector_store %arg20[%c0_14, %c0_15], %32 {strides = array<i32>} : memref<128x256xbf16, #tpu.memory_space<vmem>>, vector<128x128xbf16>,
    %34 = vector.extract_strided_slice %14 {offsets = [0, 128], sizes = [128, 128], strides = [1, 1]} : vector<128x256xbf16> to vector<128x128xbf16>
    %c128 = arith.constant 128 : index
    %c0_16 = arith.constant 0 : index
    %35 = vector.load %arg18[%c128, %c0_16] : memref<256x256xbf16, #tpu.memory_space<vmem>>, vector<128x256xbf16>
    %c0_17 = arith.constant 0 : index
    %c128_18 = arith.constant 128 : index
    %36 = vector.load %arg19[%c0_17, %c128_18] : memref<256x256xbf16, #tpu.memory_space<vmem>>, vector<256x128xbf16>
    %cst_19 = arith.constant dense<0.000000e+00> : vector<128x256xf32>
    %37 = tpu.matmul %34, %35, %cst_19 {dimension_numbers = #tpu.dot_dimension_numbers<[1], [0], [0], [1], [0, 0, 1, 1], [], []>} : vector<128x128xbf16>, vector<128x256xbf16>, vector<128x256xf32> -> vector<128x256xf32>
    %cst_20 = arith.constant dense<0xFF800000> : vector<128xf32>
    %38 = vector.multi_reduction <maximumf>, %37, %cst_20 [1] : vector<128x256xf32> to vector<128xf32>
    %39 = vector.shape_cast %38 : vector<128xf32> to vector<128x1xf32>
    %40 = vector.broadcast %39 : vector<128x1xf32> to vector<128x256xf32>
    %41 = arith.subf %37, %40 : vector<128x256xf32>
    %42 = arith.truncf %41 : vector<128x256xf32> to vector<128x256xbf16>
    %43 = math.exp %42 : vector<128x256xbf16>
    %44 = arith.extf %43 : vector<128x256xbf16> to vector<128x256xf32>
    %cst_21 = arith.constant dense<0.000000e+00> : vector<128xf32>
    %45 = vector.multi_reduction <add>, %44, %cst_21 [1] : vector<128x256xf32> to vector<128xf32>
    %46 = vector.shape_cast %45 : vector<128xf32> to vector<128x1xf32>
    %cst_22 = arith.constant dense<0.000000e+00> : vector<128x128xf32>
    %47 = tpu.matmul %43, %36, %cst_22 {dimension_numbers = #tpu.dot_dimension_numbers<[1], [0], [0], [1], [0, 0, 1, 1], [], []>} : vector<128x256xbf16>, vector<256x128xbf16>, vector<128x128xf32> -> vector<128x128xf32>
    %48 = tpu.reciprocal %46 {approx = true} : vector<128x1xf32> -> vector<128x1xf32>
    %49 = vector.broadcast %48 : vector<128x1xf32> to vector<128x128xf32>
    %50 = arith.mulf %47, %49 : vector<128x128xf32>
    %51 = arith.truncf %50 : vector<128x128xf32> to vector<128x128xbf16>
    %c0_23 = arith.constant 0 : index
    %c128_24 = arith.constant 128 : index
    %52 = vector.load %arg20[%c0_23, %c128_24] : memref<128x256xbf16, #tpu.memory_space<vmem>>, vector<128x128xbf16>
    tpu.vector_store %arg20[%c0_23, %c128_24], %51 {strides = array<i32>} : memref<128x256xbf16, #tpu.memory_space<vmem>>, vector<128x128xbf16>,
    %c0_25 = arith.constant 0 : index
    %c0_26 = arith.constant 0 : index
    %53 = vector.load %arg20[%c0_25, %c0_26] : memref<128x256xbf16, #tpu.memory_space<vmem>>, vector<128x256xbf16>
    %c0_27 = arith.constant 0 : index
    %c0_28 = arith.constant 0 : index
    %54 = vector.load %arg7[%c0_27, %c0_28] : memref<256x256xbf16, #tpu.memory_space<vmem>>, vector<256x256xbf16>
    %cst_29 = arith.constant dense<0.000000e+00> : vector<128x256xf32>
    %55 = tpu.matmul %53, %54, %cst_29 {dimension_numbers = #tpu.dot_dimension_numbers<[1], [0], [0], [1], [0, 0, 1, 1], [], []>} : vector<128x256xbf16>, vector<256x256xbf16>, vector<128x256xf32> -> vector<128x256xf32>
    %c0_30 = arith.constant 0 : index
    %c0_31 = arith.constant 0 : index
    %56 = vector.load %arg8[%c0_30, %c0_31] : memref<1x256xf32, #tpu.memory_space<vmem>>, vector<1x256xf32>
    %57 = vector.broadcast %56 : vector<1x256xf32> to vector<128x256xf32>
    %58 = arith.addf %55, %57 : vector<128x256xf32>
    %59 = arith.addf %7, %58 : vector<128x256xf32>
    %cst_32 = arith.constant dense<0.000000e+00> : vector<128xf32>
    %60 = vector.multi_reduction <add>, %59, %cst_32 [1] : vector<128x256xf32> to vector<128xf32>
    %61 = vector.shape_cast %60 : vector<128xf32> to vector<128x1xf32>
    %cst_33 = arith.constant 2.560000e+02 : f32
    %62 = vector.broadcast %cst_33 : f32 to vector<128x1xf32>
    %63 = arith.divf %61, %62 : vector<128x1xf32>
    %64 = vector.broadcast %63 : vector<128x1xf32> to vector<128x256xf32>
    %65 = arith.subf %59, %64 : vector<128x256xf32>
    %66 = arith.mulf %65, %65 : vector<128x256xf32>
    %cst_34 = arith.constant dense<0.000000e+00> : vector<128xf32>
    %67 = vector.multi_reduction <add>, %66, %cst_34 [1] : vector<128x256xf32> to vector<128xf32>
    %68 = vector.shape_cast %67 : vector<128xf32> to vector<128x1xf32>
    %cst_35 = arith.constant 2.560000e+02 : f32
    %69 = vector.broadcast %cst_35 : f32 to vector<128x1xf32>
    %70 = arith.divf %68, %69 : vector<128x1xf32>
    %71 = vector.broadcast %63 : vector<128x1xf32> to vector<128x256xf32>
    %72 = arith.subf %59, %71 : vector<128x256xf32>
    %cst_36 = arith.constant 9.99999997E-7 : f32
    %73 = vector.broadcast %cst_36 : f32 to vector<128x1xf32>
    %74 = arith.addf %70, %73 : vector<128x1xf32>
    %75 = math.rsqrt %74 : vector<128x1xf32>
    %76 = vector.broadcast %75 : vector<128x1xf32> to vector<128x256xf32>
    %77 = arith.mulf %72, %76 : vector<128x256xf32>
    %c0_37 = arith.constant 0 : index
    %c0_38 = arith.constant 0 : index
    %78 = vector.load %arg9[%c0_37, %c0_38] : memref<1x256xf32, #tpu.memory_space<vmem>>, vector<1x256xf32>
    %79 = vector.broadcast %78 : vector<1x256xf32> to vector<128x256xf32>
    %80 = arith.mulf %77, %79 : vector<128x256xf32>
    %c0_39 = arith.constant 0 : index
    %c0_40 = arith.constant 0 : index
    %81 = vector.load %arg10[%c0_39, %c0_40] : memref<1x256xf32, #tpu.memory_space<vmem>>, vector<1x256xf32>
    %82 = vector.broadcast %81 : vector<1x256xf32> to vector<128x256xf32>
    %83 = arith.addf %80, %82 : vector<128x256xf32>
    %84 = arith.truncf %83 : vector<128x256xf32> to vector<128x256xbf16>
    %c0_41 = arith.constant 0 : index
    %c0_42 = arith.constant 0 : index
    %85 = vector.load %arg13[%c0_41, %c0_42] : memref<256x512xbf16, #tpu.memory_space<vmem>>, vector<256x512xbf16>
    %cst_43 = arith.constant dense<0.000000e+00> : vector<128x512xf32>
    %86 = tpu.matmul %84, %85, %cst_43 {dimension_numbers = #tpu.dot_dimension_numbers<[1], [0], [0], [1], [0, 0, 1, 1], [], []>} : vector<128x256xbf16>, vector<256x512xbf16>, vector<128x512xf32> -> vector<128x512xf32>
    %c0_44 = arith.constant 0 : index
    %c0_45 = arith.constant 0 : index
    %87 = vector.load %arg14[%c0_44, %c0_45] : memref<1x512xf32, #tpu.memory_space<vmem>>, vector<1x512xf32>
    %88 = vector.broadcast %87 : vector<1x512xf32> to vector<128x512xf32>
    %89 = arith.addf %86, %88 : vector<128x512xf32>
    %cst_46 = arith.constant 0.000000e+00 : f32
    %90 = vector.broadcast %cst_46 : f32 to vector<128x512xf32>
    %91 = arith.maximumf %89, %90 : vector<128x512xf32>
    %92 = arith.truncf %91 : vector<128x512xf32> to vector<128x512xbf16>
    %c0_47 = arith.constant 0 : index
    %c0_48 = arith.constant 0 : index
    %93 = vector.load %arg15[%c0_47, %c0_48] : memref<512x256xbf16, #tpu.memory_space<vmem>>, vector<512x256xbf16>
    %cst_49 = arith.constant dense<0.000000e+00> : vector<128x256xf32>
    %94 = tpu.matmul %92, %93, %cst_49 {dimension_numbers = #tpu.dot_dimension_numbers<[1], [0], [0], [1], [0, 0, 1, 1], [], []>} : vector<128x512xbf16>, vector<512x256xbf16>, vector<128x256xf32> -> vector<128x256xf32>
    %c0_50 = arith.constant 0 : index
    %c0_51 = arith.constant 0 : index
    %95 = vector.load %arg16[%c0_50, %c0_51] : memref<1x256xf32, #tpu.memory_space<vmem>>, vector<1x256xf32>
    %96 = vector.broadcast %95 : vector<1x256xf32> to vector<128x256xf32>
    %97 = arith.addf %94, %96 : vector<128x256xf32>
    %98 = arith.addf %83, %97 : vector<128x256xf32>
    %cst_52 = arith.constant dense<0.000000e+00> : vector<128xf32>
    %99 = vector.multi_reduction <add>, %98, %cst_52 [1] : vector<128x256xf32> to vector<128xf32>
    %100 = vector.shape_cast %99 : vector<128xf32> to vector<128x1xf32>
    %cst_53 = arith.constant 2.560000e+02 : f32
    %101 = vector.broadcast %cst_53 : f32 to vector<128x1xf32>
    %102 = arith.divf %100, %101 : vector<128x1xf32>
    %103 = vector.broadcast %102 : vector<128x1xf32> to vector<128x256xf32>
    %104 = arith.subf %98, %103 : vector<128x256xf32>
    %105 = arith.mulf %104, %104 : vector<128x256xf32>
    %cst_54 = arith.constant dense<0.000000e+00> : vector<128xf32>
    %106 = vector.multi_reduction <add>, %105, %cst_54 [1] : vector<128x256xf32> to vector<128xf32>
    %107 = vector.shape_cast %106 : vector<128xf32> to vector<128x1xf32>
    %cst_55 = arith.constant 2.560000e+02 : f32
    %108 = vector.broadcast %cst_55 : f32 to vector<128x1xf32>
    %109 = arith.divf %107, %108 : vector<128x1xf32>
    %110 = vector.broadcast %102 : vector<128x1xf32> to vector<128x256xf32>
    %111 = arith.subf %98, %110 : vector<128x256xf32>
    %cst_56 = arith.constant 9.99999997E-7 : f32
    %112 = vector.broadcast %cst_56 : f32 to vector<128x1xf32>
    %113 = arith.addf %109, %112 : vector<128x1xf32>
    %114 = math.rsqrt %113 : vector<128x1xf32>
    %115 = vector.broadcast %114 : vector<128x1xf32> to vector<128x256xf32>
    %116 = arith.mulf %111, %115 : vector<128x256xf32>
    %c0_57 = arith.constant 0 : index
    %c0_58 = arith.constant 0 : index
    %117 = vector.load %arg11[%c0_57, %c0_58] : memref<1x256xf32, #tpu.memory_space<vmem>>, vector<1x256xf32>
    %118 = vector.broadcast %117 : vector<1x256xf32> to vector<128x256xf32>
    %119 = arith.mulf %116, %118 : vector<128x256xf32>
    %c0_59 = arith.constant 0 : index
    %c0_60 = arith.constant 0 : index
    %120 = vector.load %arg12[%c0_59, %c0_60] : memref<1x256xf32, #tpu.memory_space<vmem>>, vector<1x256xf32>
    %121 = vector.broadcast %120 : vector<1x256xf32> to vector<128x256xf32>
    %122 = arith.addf %119, %121 : vector<128x256xf32>
    %c0_61 = arith.constant 0 : index
    %c0_62 = arith.constant 0 : index
    %c0_63 = arith.constant 0 : index
    %123 = vector.load %arg17[%c0_61, %c0_62, %c0_63] : memref<1x128x256xf32, #tpu.memory_space<vmem>>, vector<1x128x256xf32>
    %124 = vector.shape_cast %123 : vector<1x128x256xf32> to vector<128x256xf32>
    %125 = vector.shape_cast %122 : vector<128x256xf32> to vector<1x128x256xf32>
    tpu.vector_store %arg17[%c0_61, %c0_62, %c0_63], %125 {strides = array<i32>} : memref<1x128x256xf32, #tpu.memory_space<vmem>>, vector<1x128x256xf32>,
    return
  }
  func.func @transform_0(%arg0: i32, %arg1: i32) -> (i32, i32, i32) {
    %c0_i32 = arith.constant 0 : i32
    %c0_i32_0 = arith.constant 0 : i32
    %c0_i32_1 = arith.constant 0 : i32
    return %arg0, %c0_i32, %c0_i32_0 : i32, i32, i32
  }
  func.func @transform_1(%arg0: i32, %arg1: i32) -> (i32, i32) {
    %c0_i32 = arith.constant 0 : i32
    %c0_i32_0 = arith.constant 0 : i32
    %c0_i32_1 = arith.constant 0 : i32
    return %c0_i32, %c0_i32_0 : i32, i32
  }
  func.func @transform_2(%arg0: i32, %arg1: i32) -> (i32, i32) {
    %c0_i32 = arith.constant 0 : i32
    %c0_i32_0 = arith.constant 0 : i32
    %c0_i32_1 = arith.constant 0 : i32
    return %c0_i32, %c0_i32_0 : i32, i32
  }
  func.func @transform_3(%arg0: i32, %arg1: i32) -> (i32, i32) {
    %c0_i32 = arith.constant 0 : i32
    %c0_i32_0 = arith.constant 0 : i32
    %c0_i32_1 = arith.constant 0 : i32
    return %c0_i32, %c0_i32_0 : i32, i32
  }
  func.func @transform_4(%arg0: i32, %arg1: i32) -> (i32, i32) {
    %c0_i32 = arith.constant 0 : i32
    %c0_i32_0 = arith.constant 0 : i32
    %c0_i32_1 = arith.constant 0 : i32
    return %c0_i32, %c0_i32_0 : i32, i32
  }
  func.func @transform_5(%arg0: i32, %arg1: i32) -> (i32, i32) {
    %c0_i32 = arith.constant 0 : i32
    %c0_i32_0 = arith.constant 0 : i32
    %c0_i32_1 = arith.constant 0 : i32
    return %c0_i32, %c0_i32_0 : i32, i32
  }
  func.func @transform_6(%arg0: i32, %arg1: i32) -> (i32, i32) {
    %c0_i32 = arith.constant 0 : i32
    %c0_i32_0 = arith.constant 0 : i32
    %c0_i32_1 = arith.constant 0 : i32
    return %c0_i32, %c0_i32_0 : i32, i32
  }
  func.func @transform_7(%arg0: i32, %arg1: i32) -> (i32, i32) {
    %c0_i32 = arith.constant 0 : i32
    %c0_i32_0 = arith.constant 0 : i32
    %c0_i32_1 = arith.constant 0 : i32
    return %c0_i32, %c0_i32_0 : i32, i32
  }
  func.func @transform_8(%arg0: i32, %arg1: i32) -> (i32, i32) {
    %c0_i32 = arith.constant 0 : i32
    %c0_i32_0 = arith.constant 0 : i32
    %c0_i32_1 = arith.constant 0 : i32
    return %c0_i32, %c0_i32_0 : i32, i32
  }
  func.func @transform_9(%arg0: i32, %arg1: i32) -> (i32, i32) {
    %c0_i32 = arith.constant 0 : i32
    %c0_i32_0 = arith.constant 0 : i32
    %c0_i32_1 = arith.constant 0 : i32
    return %c0_i32, %c0_i32_0 : i32, i32
  }
  func.func @transform_10(%arg0: i32, %arg1: i32) -> (i32, i32) {
    %c0_i32 = arith.constant 0 : i32
    %c0_i32_0 = arith.constant 0 : i32
    %c0_i32_1 = arith.constant 0 : i32
    return %c0_i32, %c0_i32_0 : i32, i32
  }
  func.func @transform_11(%arg0: i32, %arg1: i32) -> (i32, i32) {
    %c0_i32 = arith.constant 0 : i32
    %c0_i32_0 = arith.constant 0 : i32
    %c0_i32_1 = arith.constant 0 : i32
    return %c0_i32, %c0_i32_0 : i32, i32
  }
  func.func @transform_12(%arg0: i32, %arg1: i32) -> (i32, i32) {
    %c0_i32 = arith.constant 0 : i32
    %c0_i32_0 = arith.constant 0 : i32
    %c0_i32_1 = arith.constant 0 : i32
    return %c0_i32, %c0_i32_0 : i32, i32
  }
  func.func @transform_13(%arg0: i32, %arg1: i32) -> (i32, i32) {
    %c0_i32 = arith.constant 0 : i32
    %c0_i32_0 = arith.constant 0 : i32
    %c0_i32_1 = arith.constant 0 : i32
    return %c0_i32, %c0_i32_0 : i32, i32
  }
  func.func @transform_14(%arg0: i32, %arg1: i32) -> (i32, i32) {
    %c0_i32 = arith.constant 0 : i32
    %c0_i32_0 = arith.constant 0 : i32
    %c0_i32_1 = arith.constant 0 : i32
    return %c0_i32, %c0_i32_0 : i32, i32
  }
  func.func @transform_15(%arg0: i32, %arg1: i32) -> (i32, i32, i32) {
    %c0_i32 = arith.constant 0 : i32
    %c0_i32_0 = arith.constant 0 : i32
    return %arg0, %arg1, %c0_i32 : i32, i32, i32
  }
}

</mosaic_0001>

<llo_original>
// kernel: tpu_custom_call.1
$region0: #{tpu_custom_call.1}
  #allocation0 [shape = 'u32[]', space=smem, size = 0x4, offset = 0x4, fixed_abs, tag = 'smem constant byte address 0x4 - core index']
  #allocation1 [shape = 'u32[144,128]{1,0:T(1,128)}', space=vmem, size = 0x12000, scoped, tag = 'internal scratch']
  #allocation2 [shape = 'bf16[256,256]{1,0:T(16,128)(2,1)}', space=vmem, size = 0x20000, scoped, tag = 'scratch operand']
  #allocation3 [shape = 'bf16[256,256]{1,0:T(16,128)(2,1)}', space=vmem, size = 0x20000, scoped, tag = 'scratch operand']
  #allocation4 [shape = 'bf16[128,256]{1,0:T(16,128)(2,1)}', space=vmem, size = 0x10000, scoped, tag = 'scratch operand']
  %s0 = inlined_call_operand.hbm [shape: f32[2,256,256], index: 0, kind: input, shape index: {}]
  %s1 = inlined_call_operand.hbm [shape: bf16[256,256], index: 1, kind: input, shape index: {}]
  %s2 = inlined_call_operand.vmem [shape: f32[1,256], index: 2, kind: input, shape index: {}]
  %s3 = inlined_call_operand.hbm [shape: bf16[256,512], index: 3, kind: input, shape index: {}]
  %s4 = inlined_call_operand.vmem [shape: f32[1,512], index: 4, kind: input, shape index: {}]
  %s5 = inlined_call_operand.hbm [shape: bf16[256,256], index: 5, kind: input, shape index: {}]
  %s6 = inlined_call_operand.vmem [shape: f32[1,256], index: 6, kind: input, shape index: {}]
  %s7 = inlined_call_operand.vmem [shape: f32[1,256], index: 7, kind: input, shape index: {}]
  %s8 = inlined_call_operand.vmem [shape: f32[1,256], index: 8, kind: input, shape index: {}]
  %s9 = inlined_call_operand.vmem [shape: f32[1,256], index: 9, kind: input, shape index: {}]
  %s10 = inlined_call_operand.vmem [shape: f32[1,256], index: 10, kind: input, shape index: {}]
  %s11 = inlined_call_operand.hbm [shape: bf16[256,512], index: 11, kind: input, shape index: {}]
  %s12 = inlined_call_operand.vmem [shape: f32[1,512], index: 12, kind: input, shape index: {}]
  %s13 = inlined_call_operand.hbm [shape: bf16[512,256], index: 13, kind: input, shape index: {}]
  %s14 = inlined_call_operand.vmem [shape: f32[1,256], index: 14, kind: input, shape index: {}]
  %s15 = inlined_call_operand.hbm [shape: f32[2,256,256], index: 15, kind: output, shape index: {}]
  %s16 = sld [smem:[#allocation0]]
  $region121: #{tpu_custom_call.1} parent=0
    _
  %s18 = ssub.s32 1, %s16
  %s19 = scalar_select 0, %s18, %s16
  $region1: #{tpu_custom_call.1} parent=0
    #allocation5 [shape = 'u8[524288]{0}', space=vmem, size = 0x80000, scoped, tag = 'input window, operand 0']
    #allocation6 [shape = 's32[2]{0}', space=sflag, size = 0x8, scoped, tag = 'scoped memory for tpu_custom_call.1']
    #allocation7 [shape = 's32[2]{0}', space=sflag, size = 0x8, scoped, tag = 'scoped memory for tpu_custom_call.1']
    #allocation8 [shape = 'u8[131072]{0}', space=vmem, size = 0x20000, scoped, tag = 'input window, operand 1, single buffered']
    #allocation9 [shape = 's32[1]{0}', space=sflag, size = 0x4, scoped, tag = 'scoped memory for tpu_custom_call.1']
    #allocation10 [shape = 'u8[262144]{0}', space=vmem, size = 0x40000, scoped, tag = 'input window, operand 3, single buffered']
    #allocation11 [shape = 'u8[131072]{0}', space=vmem, size = 0x20000, scoped, tag = 'input window, operand 5, single buffered']
    #allocation12 [shape = 's32[1]{0}', space=sflag, size = 0x4, scoped, tag = 'scoped memory for tpu_custom_call.1']
    #allocation13 [shape = 'u8[262144]{0}', space=vmem, size = 0x40000, scoped, tag = 'input window, operand 11, single buffered']
    #allocation14 [shape = 'u8[262144]{0}', space=vmem, size = 0x40000, scoped, tag = 'input window, operand 13, single buffered']
    #allocation15 [shape = 's32[1]{0}', space=sflag, size = 0x4, scoped, tag = 'scoped memory for tpu_custom_call.1']
    #allocation16 [shape = 'u8[262144]{0}', space=vmem, size = 0x40000, scoped, tag = 'output window, operand 0']
    %20 = vsyncpa [#allocation6], 0
    %s21 = scalar_lea.sflag [#allocation6], 1
    %22 = vsyncpa %s21, 0
    %23 = vsyncpa [#allocation9], 0
    %24 = vsyncpa [#allocation12], 0
    %25 = vsyncpa [#allocation15], 0
    %26 = vsyncpa [#allocation7], 0
    %s27 = scalar_lea.sflag [#allocation7], 1
    %28 = vsyncpa %s27, 0
    loop: start=0, step=1, limit=6
    $region2: #{tpu_custom_call.1} parent=1 // loop_pre_header
      _
    $region3: #{tpu_custom_call.1} parent=1 // loop_header
      %s30 = sphi 0, %s34
      %p31 = scmp.ge.s32.totalorder %s30, 6
      %s37 = sphi 0, %s49
      %s38 = sphi 0, %s45
      %s39 = sphi 0, %s37
      %s40 = sphi 0, %s38
      %s41 = sphi 0, %s39
      %s42 = sphi 0, %s40
      %s52 = sphi 0, %s54
      %s55 = sphi 0, %s52
      %s56 = sphi 0, %s55
      %s72 = sphi 0, %s56
      %s76 = sphi 0, %s76
      %s78 = sphi 0, %s76
      %s79 = sphi 0, %s78
      %s93 = sphi 0, %s79
      %s97 = sphi 0, %s97
      %s99 = sphi 0, %s97
      %s100 = sphi 0, %s99
      %s114 = sphi 0, %s100
      %s118 = sphi 0, %s118
      %s120 = sphi 0, %s118
      %s121 = sphi 0, %s120
      %s135 = sphi 0, %s121
      %s139 = sphi 0, %s139
      %s141 = sphi 0, %s139
      %s142 = sphi 0, %s141
      %s156 = sphi 0, %s142
      %s160 = sphi 0, %s160
      %s162 = sphi 0, %s160
      %s163 = sphi 0, %s162
      %s177 = sphi 0, %s163
      %s181 = sphi 0, %s181
      %s183 = sphi 0, %s181
      %s184 = sphi 0, %s183
      %s198 = sphi 0, %s184
      %s202 = sphi 0, %s202
      %s204 = sphi 0, %s202
      %s205 = sphi 0, %s204
      %s219 = sphi 0, %s205
      %s223 = sphi 0, %s223
      %s225 = sphi 0, %s223
      %s226 = sphi 0, %s225
      %s240 = sphi 0, %s226
      %s244 = sphi 0, %s244
      %s246 = sphi 0, %s244
      %s247 = sphi 0, %s246
      %s261 = sphi 0, %s247
      %s265 = sphi 0, %s265
      %s267 = sphi 0, %s265
      %s268 = sphi 0, %s267
      %s282 = sphi 0, %s268
      %s286 = sphi 0, %s286
      %s288 = sphi 0, %s286
      %s289 = sphi 0, %s288
      %s303 = sphi 0, %s289
      %s307 = sphi 0, %s307
      %s309 = sphi 0, %s307
      %s310 = sphi 0, %s309
      %s324 = sphi 0, %s310
      %s328 = sphi 0, %s328
      %s330 = sphi 0, %s328
      %s331 = sphi 0, %s330
      %s345 = sphi 0, %s331
      %s349 = sphi 0, %s349
      %s351 = sphi 0, %s349
      %s352 = sphi 0, %s351
      %s366 = sphi 0, %s352
      %s374 = sphi 0, %s376
      %s377 = sphi 0, %s374
      %s378 = sphi 0, %s377
      %s394 = sphi 0, %s378
    $region4: #{tpu_custom_call.1} parent=1 // loop_header_branch
      %33 = sbr.rel (%p31) target = $region8
    $region5: #{tpu_custom_call.1} parent=1 // loop_body
      %s35 = ssub.s32 %s30, 1
      %s36 = ssub.s32 %s30, 2
      %s43 = sadd.s32 1, %s38
      %p44 = scmp.ge.s32.totalorder %s43, 2
      %s45 = scalar_select %p44, 0, %s43
      %s46 = sadd.s32 1, %s37
      %s47 = scalar_select %p44, %s46, %s37
      %p48 = scmp.ge.s32.totalorder %s47, 2
      %s49 = scalar_select %p48, 0, %s47
      %s50 = ssub.s32 %s37, %s49
      %p51 = scmp.eq.s32.totalorder %s50, 0
      %s53 = sadd.s32 %s52, 1
      %s54 = scalar_select %p51, %s52, %s53
      %p57 = pneg %p51
      %p58 = scmp.eq.s32.totalorder %s30, 3
      %p59 = por %p57, %p58
      %p60 = scmp.ne.s32.totalorder %s52, %s55
      %p61 = scmp.eq.s32.totalorder %s30, 0
      %p62 = por %p60, %p61
      %p63 = scmp.ne.s32.totalorder %s52, %s55
      %p64 = scmp.eq.s32.totalorder %s35, 3
      %p65 = por %p63, %p64
      %p66 = scmp.ne.s32.totalorder %s55, %s56
      %p67 = scmp.eq.s32.totalorder %s35, 0
      %p68 = por %p66, %p67
      %p69 = scmp.ne.s32.totalorder %s55, %s56
      %p70 = scmp.eq.s32.totalorder %s36, 3
      %p71 = por %p69, %p70
      %p73 = scmp.ne.s32.totalorder %s56, %s72
      %p74 = scmp.eq.s32.totalorder %s36, 0
      %p75 = por %p73, %p74
      %s77 = sadd.s32 %s76, 1
      %p80 = scmp.eq.s32.totalorder %s30, 3
      %p81 = scmp.ne.s32.totalorder %s76, %s78
      %p82 = scmp.eq.s32.totalorder %s30, 0
      %p83 = por %p81, %p82
      %p84 = scmp.ne.s32.totalorder %s76, %s78
      %p85 = scmp.eq.s32.totalorder %s35, 3
      %p86 = por %p84, %p85
      %p87 = scmp.ne.s32.totalorder %s78, %s79
      %p88 = scmp.eq.s32.totalorder %s35, 0
      %p89 = por %p87, %p88
      %p90 = scmp.ne.s32.totalorder %s78, %s79
      %p91 = scmp.eq.s32.totalorder %s36, 3
      %p92 = por %p90, %p91
      %p94 = scmp.ne.s32.totalorder %s79, %s93
      %p95 = scmp.eq.s32.totalorder %s36, 0
      %p96 = por %p94, %p95
      %s98 = sadd.s32 %s97, 1
      %p101 = scmp.eq.s32.totalorder %s30, 3
      %p102 = scmp.ne.s32.totalorder %s97, %s99
      %p103 = scmp.eq.s32.totalorder %s30, 0
      %p104 = por %p102, %p103
      %p105 = scmp.ne.s32.totalorder %s97, %s99
      %p106 = scmp.eq.s32.totalorder %s35, 3
      %p107 = por %p105, %p106
      %p108 = scmp.ne.s32.totalorder %s99, %s100
      %p109 = scmp.eq.s32.totalorder %s35, 0
      %p110 = por %p108, %p109
      %p111 = scmp.ne.s32.totalorder %s99, %s100
      %p112 = scmp.eq.s32.totalorder %s36, 3
      %p113 = por %p111, %p112
      %p115 = scmp.ne.s32.totalorder %s100, %s114
      %p116 = scmp.eq.s32.totalorder %s36, 0
      %p117 = por %p115, %p116
      %s119 = sadd.s32 %s118, 1
      %p122 = scmp.eq.s32.totalorder %s30, 3
      %p123 = scmp.ne.s32.totalorder %s118, %s120
      %p124 = scmp.eq.s32.totalorder %s30, 0
      %p125 = por %p123, %p124
      %p126 = scmp.ne.s32.totalorder %s118, %s120
      %p127 = scmp.eq.s32.totalorder %s35, 3
      %p128 = por %p126, %p127
      %p129 = scmp.ne.s32.totalorder %s120, %s121
      %p130 = scmp.eq.s32.totalorder %s35, 0
      %p131 = por %p129, %p130
      %p132 = scmp.ne.s32.totalorder %s120, %s121
      %p133 = scmp.eq.s32.totalorder %s36, 3
      %p134 = por %p132, %p133
      %p136 = scmp.ne.s32.totalorder %s121, %s135
      %p137 = scmp.eq.s32.totalorder %s36, 0
      %p138 = por %p136, %p137
      %s140 = sadd.s32 %s139, 1
      %p143 = scmp.eq.s32.totalorder %s30, 3
      %p144 = scmp.ne.s32.totalorder %s139, %s141
      %p145 = scmp.eq.s32.totalorder %s30, 0
      %p146 = por %p144, %p145
      %p147 = scmp.ne.s32.totalorder %s139, %s141
      %p148 = scmp.eq.s32.totalorder %s35, 3
      %p149 = por %p147, %p148
      %p150 = scmp.ne.s32.totalorder %s141, %s142
      %p151 = scmp.eq.s32.totalorder %s35, 0
      %p152 = por %p150, %p151
      %p153 = scmp.ne.s32.totalorder %s141, %s142
      %p154 = scmp.eq.s32.totalorder %s36, 3
      %p155 = por %p153, %p154
      %p157 = scmp.ne.s32.totalorder %s142, %s156
      %p158 = scmp.eq.s32.totalorder %s36, 0
      %p159 = por %p157, %p158
      %s161 = sadd.s32 %s160, 1
      %p164 = scmp.eq.s32.totalorder %s30, 3
      %p165 = scmp.ne.s32.totalorder %s160, %s162
      %p166 = scmp.eq.s32.totalorder %s30, 0
      %p167 = por %p165, %p166
      %p168 = scmp.ne.s32.totalorder %s160, %s162
      %p169 = scmp.eq.s32.totalorder %s35, 3
      %p170 = por %p168, %p169
      %p171 = scmp.ne.s32.totalorder %s162, %s163
      %p172 = scmp.eq.s32.totalorder %s35, 0
      %p173 = por %p171, %p172
      %p174 = scmp.ne.s32.totalorder %s162, %s163
      %p175 = scmp.eq.s32.totalorder %s36, 3
      %p176 = por %p174, %p175
      %p178 = scmp.ne.s32.totalorder %s163, %s177
      %p179 = scmp.eq.s32.totalorder %s36, 0
      %p180 = por %p178, %p179
      %s182 = sadd.s32 %s181, 1
      %p185 = scmp.eq.s32.totalorder %s30, 3
      %p186 = scmp.ne.s32.totalorder %s181, %s183
      %p187 = scmp.eq.s32.totalorder %s30, 0
      %p188 = por %p186, %p187
      %p189 = scmp.ne.s32.totalorder %s181, %s183
      %p190 = scmp.eq.s32.totalorder %s35, 3
      %p191 = por %p189, %p190
      %p192 = scmp.ne.s32.totalorder %s183, %s184
      %p193 = scmp.eq.s32.totalorder %s35, 0
      %p194 = por %p192, %p193
      %p195 = scmp.ne.s32.totalorder %s183, %s184
      %p196 = scmp.eq.s32.totalorder %s36, 3
      %p197 = por %p195, %p196
      %p199 = scmp.ne.s32.totalorder %s184, %s198
      %p200 = scmp.eq.s32.totalorder %s36, 0
      %p201 = por %p199, %p200
      %s203 = sadd.s32 %s202, 1
      %p206 = scmp.eq.s32.totalorder %s30, 3
      %p207 = scmp.ne.s32.totalorder %s202, %s204
      %p208 = scmp.eq.s32.totalorder %s30, 0
      %p209 = por %p207, %p208
      %p210 = scmp.ne.s32.totalorder %s202, %s204
      %p211 = scmp.eq.s32.totalorder %s35, 3
      %p212 = por %p210, %p211
      %p213 = scmp.ne.s32.totalorder %s204, %s205
      %p214 = scmp.eq.s32.totalorder %s35, 0
      %p215 = por %p213, %p214
      %p216 = scmp.ne.s32.totalorder %s204, %s205
      %p217 = scmp.eq.s32.totalorder %s36, 3
      %p218 = por %p216, %p217
      %p220 = scmp.ne.s32.totalorder %s205, %s219
      %p221 = scmp.eq.s32.totalorder %s36, 0
      %p222 = por %p220, %p221
      %s224 = sadd.s32 %s223, 1
      %p227 = scmp.eq.s32.totalorder %s30, 3
      %p228 = scmp.ne.s32.totalorder %s223, %s225
      %p229 = scmp.eq.s32.totalorder %s30, 0
      %p230 = por %p228, %p229
      %p231 = scmp.ne.s32.totalorder %s223, %s225
      %p232 = scmp.eq.s32.totalorder %s35, 3
      %p233 = por %p231, %p232
      %p234 = scmp.ne.s32.totalorder %s225, %s226
      %p235 = scmp.eq.s32.totalorder %s35, 0
      %p236 = por %p234, %p235
      %p237 = scmp.ne.s32.totalorder %s225, %s226
      %p238 = scmp.eq.s32.totalorder %s36, 3
      %p239 = por %p237, %p238
      %p241 = scmp.ne.s32.totalorder %s226, %s240
      %p242 = scmp.eq.s32.totalorder %s36, 0
      %p243 = por %p241, %p242
      %s245 = sadd.s32 %s244, 1
      %p248 = scmp.eq.s32.totalorder %s30, 3
      %p249 = scmp.ne.s32.totalorder %s244, %s246
      %p250 = scmp.eq.s32.totalorder %s30, 0
      %p251 = por %p249, %p250
      %p252 = scmp.ne.s32.totalorder %s244, %s246
      %p253 = scmp.eq.s32.totalorder %s35, 3
      %p254 = por %p252, %p253
      %p255 = scmp.ne.s32.totalorder %s246, %s247
      %p256 = scmp.eq.s32.totalorder %s35, 0
      %p257 = por %p255, %p256
      %p258 = scmp.ne.s32.totalorder %s246, %s247
      %p259 = scmp.eq.s32.totalorder %s36, 3
      %p260 = por %p258, %p259
      %p262 = scmp.ne.s32.totalorder %s247, %s261
      %p263 = scmp.eq.s32.totalorder %s36, 0
      %p264 = por %p262, %p263
      %s266 = sadd.s32 %s265, 1
      %p269 = scmp.eq.s32.totalorder %s30, 3
      %p270 = scmp.ne.s32.totalorder %s265, %s267
      %p271 = scmp.eq.s32.totalorder %s30, 0
      %p272 = por %p270, %p271
      %p273 = scmp.ne.s32.totalorder %s265, %s267
      %p274 = scmp.eq.s32.totalorder %s35, 3
      %p275 = por %p273, %p274
      %p276 = scmp.ne.s32.totalorder %s267, %s268
      %p277 = scmp.eq.s32.totalorder %s35, 0
      %p278 = por %p276, %p277
      %p279 = scmp.ne.s32.totalorder %s267, %s268
      %p280 = scmp.eq.s32.totalorder %s36, 3
      %p281 = por %p279, %p280
      %p283 = scmp.ne.s32.totalorder %s268, %s282
      %p284 = scmp.eq.s32.totalorder %s36, 0
      %p285 = por %p283, %p284
      %s287 = sadd.s32 %s286, 1
      %p290 = scmp.eq.s32.totalorder %s30, 3
      %p291 = scmp.ne.s32.totalorder %s286, %s288
      %p292 = scmp.eq.s32.totalorder %s30, 0
      %p293 = por %p291, %p292
      %p294 = scmp.ne.s32.totalorder %s286, %s288
      %p295 = scmp.eq.s32.totalorder %s35, 3
      %p296 = por %p294, %p295
      %p297 = scmp.ne.s32.totalorder %s288, %s289
      %p298 = scmp.eq.s32.totalorder %s35, 0
      %p299 = por %p297, %p298
      %p300 = scmp.ne.s32.totalorder %s288, %s289
      %p301 = scmp.eq.s32.totalorder %s36, 3
      %p302 = por %p300, %p301
      %p304 = scmp.ne.s32.totalorder %s289, %s303
      %p305 = scmp.eq.s32.totalorder %s36, 0
      %p306 = por %p304, %p305
      %s308 = sadd.s32 %s307, 1
      %p311 = scmp.eq.s32.totalorder %s30, 3
      %p312 = scmp.ne.s32.totalorder %s307, %s309
      %p313 = scmp.eq.s32.totalorder %s30, 0
      %p314 = por %p312, %p313
      %p315 = scmp.ne.s32.totalorder %s307, %s309
      %p316 = scmp.eq.s32.totalorder %s35, 3
      %p317 = por %p315, %p316
      %p318 = scmp.ne.s32.totalorder %s309, %s310
      %p319 = scmp.eq.s32.totalorder %s35, 0
      %p320 = por %p318, %p319
      %p321 = scmp.ne.s32.totalorder %s309, %s310
      %p322 = scmp.eq.s32.totalorder %s36, 3
      %p323 = por %p321, %p322
      %p325 = scmp.ne.s32.totalorder %s310, %s324
      %p326 = scmp.eq.s32.totalorder %s36, 0
      %p327 = por %p325, %p326
      %s329 = sadd.s32 %s328, 1
      %p332 = scmp.eq.s32.totalorder %s30, 3
      %p333 = scmp.ne.s32.totalorder %s328, %s330
      %p334 = scmp.eq.s32.totalorder %s30, 0
      %p335 = por %p333, %p334
      %p336 = scmp.ne.s32.totalorder %s328, %s330
      %p337 = scmp.eq.s32.totalorder %s35, 3
      %p338 = por %p336, %p337
      %p339 = scmp.ne.s32.totalorder %s330, %s331
      %p340 = scmp.eq.s32.totalorder %s35, 0
      %p341 = por %p339, %p340
      %p342 = scmp.ne.s32.totalorder %s330, %s331
      %p343 = scmp.eq.s32.totalorder %s36, 3
      %p344 = por %p342, %p343
      %p346 = scmp.ne.s32.totalorder %s331, %s345
      %p347 = scmp.eq.s32.totalorder %s36, 0
      %p348 = por %p346, %p347
      %s350 = sadd.s32 %s349, 1
      %p353 = scmp.eq.s32.totalorder %s30, 3
      %p354 = scmp.ne.s32.totalorder %s349, %s351
      %p355 = scmp.eq.s32.totalorder %s30, 0
      %p356 = por %p354, %p355
      %p357 = scmp.ne.s32.totalorder %s349, %s351
      %p358 = scmp.eq.s32.totalorder %s35, 3
      %p359 = por %p357, %p358
      %p360 = scmp.ne.s32.totalorder %s351, %s352
      %p361 = scmp.eq.s32.totalorder %s35, 0
      %p362 = por %p360, %p361
      %p363 = scmp.ne.s32.totalorder %s351, %s352
      %p364 = scmp.eq.s32.totalorder %s36, 3
      %p365 = por %p363, %p364
      %p367 = scmp.ne.s32.totalorder %s352, %s366
      %p368 = scmp.eq.s32.totalorder %s36, 0
      %p369 = por %p367, %p368
      %s370 = ssub.s32 %s37, %s49
      %s371 = ssub.s32 %s38, %s45
      %s372 = sor.u32 %s370, %s371
      %p373 = scmp.eq.s32.totalorder %s372, 0
      %s375 = sadd.s32 %s374, 1
      %s376 = scalar_select %p373, %s374, %s375
      %p379 = pneg %p373
      %p380 = scmp.eq.s32.totalorder %s30, 3
      %p381 = por %p379, %p380
      %p382 = scmp.ne.s32.totalorder %s374, %s377
      %p383 = scmp.eq.s32.totalorder %s30, 0
      %p384 = por %p382, %p383
      %p385 = scmp.ne.s32.totalorder %s374, %s377
      %p386 = scmp.eq.s32.totalorder %s35, 3
      %p387 = por %p385, %p386
      %p388 = scmp.ne.s32.totalorder %s377, %s378
      %p389 = scmp.eq.s32.totalorder %s35, 0
      %p390 = por %p388, %p389
      %p391 = scmp.ne.s32.totalorder %s377, %s378
      %p392 = scmp.eq.s32.totalorder %s36, 3
      %p393 = por %p391, %p392
      %p395 = scmp.ne.s32.totalorder %s378, %s394
      %p396 = scmp.eq.s32.totalorder %s36, 0
      %p397 = por %p395, %p396
      %p398 = scmp.le.s32.totalorder 1, %s30
      %p399 = scmp.lt.s32.totalorder %s30, 5
      %p400 = pnand %p398, %p399
      %p401 = pneg %p400
      // Predicated region
      $region9: #{tpu_custom_call.1} parent=5 // pred_check
        _
      $region10: #{tpu_custom_call.1} parent=5 // pred_check_branch
        %403 = sbr.rel (%p400) target = $region12
      $region11: #{tpu_custom_call.1} parent=5 // pred_region
        %s404 = ssub.s32 %s30, 1
        // Predicated region
        $region13: #{tpu_custom_call.1} parent=11 // pred_check
          %p405 = pneg %p89
        $region14: #{tpu_custom_call.1} parent=11 // pred_check_branch
          %407 = sbr.rel (%p405) target = $region16
        $region15: #{tpu_custom_call.1} parent=11 // pred_region
          %s409 = ssub.s32 4096, 4096
          %410 = vsyncadd [#allocation9], %s409
          %s411 = sshll.u32 [#allocation8], 4
          %s412 = int_to_ptr.vmem [resolvable:$true] %s411
          %417 = dma.hbm_to_vmem [thread:$0]  %s1, 4096, %s412, [#allocation9], 128, 128, 8
        $region16: #{tpu_custom_call.1} parent=11 // pred_fallthru
          _
        // Predicated region
        $region17: #{tpu_custom_call.1} parent=11 // pred_check
          %p418 = pneg %p110
        $region18: #{tpu_custom_call.1} parent=11 // pred_check_branch
          %420 = sbr.rel (%p418) target = $region20
        $region19: #{tpu_custom_call.1} parent=11 // pred_region
          _
        $region20: #{tpu_custom_call.1} parent=11 // pred_fallthru
          _
        // Predicated region
        $region21: #{tpu_custom_call.1} parent=11 // pred_check
          %p421 = pneg %p131
        $region22: #{tpu_custom_call.1} parent=11 // pred_check_branch
          %423 = sbr.rel (%p421) target = $region24
        $region23: #{tpu_custom_call.1} parent=11 // pred_region
          %s425 = ssub.s32 8192, 8192
          %426 = vsyncadd [#allocation9], %s425
          %s427 = sshll.u32 [#allocation10], 4
          %s428 = int_to_ptr.vmem [resolvable:$true] %s427
          %433 = dma.hbm_to_vmem [thread:$0]  %s3, 8192, %s428, [#allocation9], 256, 256, 16
        $region24: #{tpu_custom_call.1} parent=11 // pred_fallthru
          _
        // Predicated region
        $region25: #{tpu_custom_call.1} parent=11 // pred_check
          %p434 = pneg %p152
        $region26: #{tpu_custom_call.1} parent=11 // pred_check_branch
          %436 = sbr.rel (%p434) target = $region28
        $region27: #{tpu_custom_call.1} parent=11 // pred_region
          _
        $region28: #{tpu_custom_call.1} parent=11 // pred_fallthru
          _
        // Predicated region
        $region29: #{tpu_custom_call.1} parent=11 // pred_check
          %p437 = pneg %p173
        $region30: #{tpu_custom_call.1} parent=11 // pred_check_branch
          %439 = sbr.rel (%p437) target = $region32
        $region31: #{tpu_custom_call.1} parent=11 // pred_region
          %s441 = ssub.s32 4096, 4096
          %442 = vsyncadd [#allocation12], %s441
          %s443 = sshll.u32 [#allocation11], 4
          %s444 = int_to_ptr.vmem [resolvable:$true] %s443
          %449 = dma.hbm_to_vmem [thread:$0]  %s5, 4096, %s444, [#allocation12], 128, 128, 8
        $region32: #{tpu_custom_call.1} parent=11 // pred_fallthru
          _
        // Predicated region
        $region33: #{tpu_custom_call.1} parent=11 // pred_check
          %p450 = pneg %p194
        $region34: #{tpu_custom_call.1} parent=11 // pred_check_branch
          %452 = sbr.rel (%p450) target = $region36
        $region35: #{tpu_custom_call.1} parent=11 // pred_region
          _
        $region36: #{tpu_custom_call.1} parent=11 // pred_fallthru
          _
        // Predicated region
        $region37: #{tpu_custom_call.1} parent=11 // pred_check
          %p453 = pneg %p215
        $region38: #{tpu_custom_call.1} parent=11 // pred_check_branch
          %455 = sbr.rel (%p453) target = $region40
        $region39: #{tpu_custom_call.1} parent=11 // pred_region
          _
        $region40: #{tpu_custom_call.1} parent=11 // pred_fallthru
          _
        // Predicated region
        $region41: #{tpu_custom_call.1} parent=11 // pred_check
          %p456 = pneg %p236
        $region42: #{tpu_custom_call.1} parent=11 // pred_check_branch
          %458 = sbr.rel (%p456) target = $region44
        $region43: #{tpu_custom_call.1} parent=11 // pred_region
          _
        $region44: #{tpu_custom_call.1} parent=11 // pred_fallthru
          _
        // Predicated region
        $region45: #{tpu_custom_call.1} parent=11 // pred_check
          %p459 = pneg %p257
        $region46: #{tpu_custom_call.1} parent=11 // pred_check_branch
          %461 = sbr.rel (%p459) target = $region48
        $region47: #{tpu_custom_call.1} parent=11 // pred_region
          _
        $region48: #{tpu_custom_call.1} parent=11 // pred_fallthru
          _
        // Predicated region
        $region49: #{tpu_custom_call.1} parent=11 // pred_check
          %p462 = pneg %p278
        $region50: #{tpu_custom_call.1} parent=11 // pred_check_branch
          %464 = sbr.rel (%p462) target = $region52
        $region51: #{tpu_custom_call.1} parent=11 // pred_region
          _
        $region52: #{tpu_custom_call.1} parent=11 // pred_fallthru
          _
        // Predicated region
        $region53: #{tpu_custom_call.1} parent=11 // pred_check
          %p465 = pneg %p299
        $region54: #{tpu_custom_call.1} parent=11 // pred_check_branch
          %467 = sbr.rel (%p465) target = $region56
        $region55: #{tpu_custom_call.1} parent=11 // pred_region
          %s469 = ssub.s32 8192, 8192
          %470 = vsyncadd [#allocation12], %s469
          %s471 = sshll.u32 [#allocation13], 4
          %s472 = int_to_ptr.vmem [resolvable:$true] %s471
          %477 = dma.hbm_to_vmem [thread:$0]  %s11, 8192, %s472, [#allocation12], 256, 256, 16
        $region56: #{tpu_custom_call.1} parent=11 // pred_fallthru
          _
        // Predicated region
        $region57: #{tpu_custom_call.1} parent=11 // pred_check
          %p478 = pneg %p320
        $region58: #{tpu_custom_call.1} parent=11 // pred_check_branch
          %480 = sbr.rel (%p478) target = $region60
        $region59: #{tpu_custom_call.1} parent=11 // pred_region
          _
        $region60: #{tpu_custom_call.1} parent=11 // pred_fallthru
          _
        // Predicated region
        $region61: #{tpu_custom_call.1} parent=11 // pred_check
          %p481 = pneg %p341
        $region62: #{tpu_custom_call.1} parent=11 // pred_check_branch
          %483 = sbr.rel (%p481) target = $region64
        $region63: #{tpu_custom_call.1} parent=11 // pred_region
          %s485 = ssub.s32 8192, 8192
          %486 = vsyncadd [#allocation15], %s485
          %s487 = sshll.u32 [#allocation14], 4
          %s488 = int_to_ptr.vmem [resolvable:$true] %s487
          %493 = dma.hbm_to_vmem [thread:$0]  %s13, 8192, %s488, [#allocation15], 128, 128, 8
        $region64: #{tpu_custom_call.1} parent=11 // pred_fallthru
          _
        // Predicated region
        $region65: #{tpu_custom_call.1} parent=11 // pred_check
          %p494 = pneg %p362
        $region66: #{tpu_custom_call.1} parent=11 // pred_check_branch
          %496 = sbr.rel (%p494) target = $region68
        $region67: #{tpu_custom_call.1} parent=11 // pred_region
          _
        $region68: #{tpu_custom_call.1} parent=11 // pred_fallthru
          _
      $region12: #{tpu_custom_call.1} parent=5 // pred_fallthru
        _
      %p497 = scmp.lt.s32.totalorder %s30, 4
      // Predicated region
      $region69: #{tpu_custom_call.1} parent=5 // pred_check
        %p498 = pneg %p497
      $region70: #{tpu_custom_call.1} parent=5 // pred_check_branch
        %500 = sbr.rel (%p498) target = $region72
      $region71: #{tpu_custom_call.1} parent=5 // pred_region
        // Predicated region
        $region73: #{tpu_custom_call.1} parent=71 // pred_check
          %p501 = pneg %p62
        $region74: #{tpu_custom_call.1} parent=71 // pred_check_branch
          %503 = sbr.rel (%p501) target = $region76
        $region75: #{tpu_custom_call.1} parent=71 // pred_region
          %s504 = sand.u32 %s52, 1
          %s505 = scalar_lea.sflag [#allocation6], %s504
          %s506 = sand.u32 %s52, 1
          %s507 = smul.addr %s506, 512
          %s508 = scalar_lea.vmem [#allocation5], %s507
          %s510 = ssub.s32 8192, 8192
          %511 = vsyncadd %s505, %s510
          %s512 = smul.addr %s37, 64
          %s513 = smul.addr %s512, 128
          %s514 = scalar_lea.hbm %s0, %s513
          %s515 = sshll.u32 %s508, 4
          %s516 = int_to_ptr.vmem [resolvable:$true] %s515
          %521 = dma.hbm_to_vmem [thread:$0]  %s514, 8192, %s516, %s505, 256, 256, 16
        $region76: #{tpu_custom_call.1} parent=71 // pred_fallthru
          _
      $region72: #{tpu_custom_call.1} parent=5 // pred_fallthru
        _
      %p522 = scmp.le.s32.totalorder 1, %s30
      %p523 = scmp.lt.s32.totalorder %s30, 5
      %p524 = pnand %p522, %p523
      %p525 = pneg %p524
      // Predicated region
      $region77: #{tpu_custom_call.1} parent=5 // pred_check
        _
      $region78: #{tpu_custom_call.1} parent=5 // pred_check_branch
        %527 = sbr.rel (%p524) target = $region80
      $region79: #{tpu_custom_call.1} parent=5 // pred_region
        %s528 = ssub.s32 %s30, 1
        %s529 = sand.u32 %s55, 1
        %s530 = scalar_lea.sflag [#allocation6], %s529
        %s531 = sand.u32 %s55, 1
        %s532 = smul.addr %s531, 512
        %s533 = scalar_lea.vmem [#allocation5], %s532
        // Predicated region
        $region81: #{tpu_custom_call.1} parent=79 // pred_check
          %p534 = pneg %p68
        $region82: #{tpu_custom_call.1} parent=79 // pred_check_branch
          %536 = sbr.rel (%p534) target = $region84
        $region83: #{tpu_custom_call.1} parent=79 // pred_region
          %537 = dma.done %s530, 8192
        $region84: #{tpu_custom_call.1} parent=79 // pred_fallthru
          _
        // Predicated region
        $region85: #{tpu_custom_call.1} parent=79 // pred_check
          %p538 = pneg %p89
        $region86: #{tpu_custom_call.1} parent=79 // pred_check_branch
          %540 = sbr.rel (%p538) target = $region88
        $region87: #{tpu_custom_call.1} parent=79 // pred_region
          %541 = dma.done [#allocation9], 4096
        $region88: #{tpu_custom_call.1} parent=79 // pred_fallthru
          _
        // Predicated region
        $region89: #{tpu_custom_call.1} parent=79 // pred_check
          %p542 = pneg %p131
        $region90: #{tpu_custom_call.1} parent=79 // pred_check_branch
          %544 = sbr.rel (%p542) target = $region92
        $region91: #{tpu_custom_call.1} parent=79 // pred_region
          %545 = dma.done [#allocation9], 8192
        $region92: #{tpu_custom_call.1} parent=79 // pred_fallthru
          _
        // Predicated region
        $region93: #{tpu_custom_call.1} parent=79 // pred_check
          %p546 = pneg %p173
        $region94: #{tpu_custom_call.1} parent=79 // pred_check_branch
          %548 = sbr.rel (%p546) target = $region96
        $region95: #{tpu_custom_call.1} parent=79 // pred_region
          %549 = dma.done [#allocation12], 4096
        $region96: #{tpu_custom_call.1} parent=79 // pred_fallthru
          _
        // Predicated region
        $region97: #{tpu_custom_call.1} parent=79 // pred_check
          %p550 = pneg %p299
        $region98: #{tpu_custom_call.1} parent=79 // pred_check_branch
          %552 = sbr.rel (%p550) target = $region100
        $region99: #{tpu_custom_call.1} parent=79 // pred_region
          %553 = dma.done [#allocation12], 8192
        $region100: #{tpu_custom_call.1} parent=79 // pred_fallthru
          _
        // Predicated region
        $region101: #{tpu_custom_call.1} parent=79 // pred_check
          %p554 = pneg %p341
        $region102: #{tpu_custom_call.1} parent=79 // pred_check_branch
          %556 = sbr.rel (%p554) target = $region104
        $region103: #{tpu_custom_call.1} parent=79 // pred_region
          %557 = dma.done [#allocation15], 8192
        $region104: #{tpu_custom_call.1} parent=79 // pred_fallthru
          _
        %s558 = sand.u32 %s55, 1
        %s559 = scalar_lea.sflag [#allocation6], %s558
        %s560 = sand.u32 %s55, 1
        %s561 = smul.addr %s560, 512
        %s562 = scalar_lea.vmem [#allocation5], %s561
        %p563 = pneg %p68
        %p564 = pneg %p65
        %p565 = pneg %p89
        %p566 = pneg %p86
        %p567 = pneg %p110
        %p568 = pneg %p107
        %p569 = pneg %p131
        %p570 = pneg %p128
        %p571 = pneg %p152
        %p572 = pneg %p149
        %p573 = pneg %p173
        %p574 = pneg %p170
        %p575 = pneg %p194
        %p576 = pneg %p191
        %p577 = pneg %p215
        %p578 = pneg %p212
        %p579 = pneg %p236
        %p580 = pneg %p233
        %p581 = pneg %p257
        %p582 = pneg %p254
        %p583 = pneg %p278
        %p584 = pneg %p275
        %p585 = pneg %p299
        %p586 = pneg %p296
        %p587 = pneg %p320
        %p588 = pneg %p317
        %p589 = pneg %p341
        %p590 = pneg %p338
        %p591 = pneg %p362
        %p592 = pneg %p359
        %p593 = pneg %p390
        %p594 = pneg %p387
        %s595 = sand.u32 %s377, 1
        %s596 = scalar_lea.sflag [#allocation7], %s595
        %s597 = sand.u32 %s377, 1
        %s598 = smul.addr %s597, 256
        %s599 = scalar_lea.vmem [#allocation16], %s598
        %s600 = smul.u32 16, %s40
        %p602 = scmp.eq.s32.totalorder %s40, 0
        // Predicated region
        $region105: #{tpu_custom_call.1} parent=79 // pred_check
          %p603 = pneg %p602
        $region106: #{tpu_custom_call.1} parent=79 // pred_check_branch
          %605 = sbr.rel (%p603) target = $region108
        $region107: #{tpu_custom_call.1} parent=79 // pred_region
          %v606 = vld [vmem:[%s533] sm:$0xff]
          %v607 = vld [vmem:[%s533 + $0x8] sm:$0xff]
          %v608 = vld [vmem:[%s533 + $0x10] sm:$0xff]
          %v609 = vld [vmem:[%s533 + $0x18] sm:$0xff]
          %v610 = vld [vmem:[%s533 + $0x20] sm:$0xff]
          %v611 = vld [vmem:[%s533 + $0x28] sm:$0xff]
          %v612 = vld [vmem:[%s533 + $0x30] sm:$0xff]
          %v613 = vld [vmem:[%s533 + $0x38] sm:$0xff]
          %v614 = vld [vmem:[%s533 + $0x40] sm:$0xff]
          %v615 = vld [vmem:[%s533 + $0x48] sm:$0xff]
          %v616 = vld [vmem:[%s533 + $0x50] sm:$0xff]
          %v617 = vld [vmem:[%s533 + $0x58] sm:$0xff]
          %v618 = vld [vmem:[%s533 + $0x60] sm:$0xff]
          %v619 = vld [vmem:[%s533 + $0x68] sm:$0xff]
          %v620 = vld [vmem:[%s533 + $0x70] sm:$0xff]
          %v621 = vld [vmem:[%s533 + $0x78] sm:$0xff]
          %v622 = vld [vmem:[%s533 + $0x80] sm:$0xff]
          %v623 = vld [vmem:[%s533 + $0x88] sm:$0xff]
          %v624 = vld [vmem:[%s533 + $0x90] sm:$0xff]
          %v625 = vld [vmem:[%s533 + $0x98] sm:$0xff]
          %v626 = vld [vmem:[%s533 + $0xa0] sm:$0xff]
          %v627 = vld [vmem:[%s533 + $0xa8] sm:$0xff]
          %v628 = vld [vmem:[%s533 + $0xb0] sm:$0xff]
          %v629 = vld [vmem:[%s533 + $0xb8] sm:$0xff]
          %v630 = vld [vmem:[%s533 + $0xc0] sm:$0xff]
          %v631 = vld [vmem:[%s533 + $0xc8] sm:$0xff]
          %v632 = vld [vmem:[%s533 + $0xd0] sm:$0xff]
          %v633 = vld [vmem:[%s533 + $0xd8] sm:$0xff]
          %v634 = vld [vmem:[%s533 + $0xe0] sm:$0xff]
          %v635 = vld [vmem:[%s533 + $0xe8] sm:$0xff]
          %v636 = vld [vmem:[%s533 + $0xf0] sm:$0xff]
          %v637 = vld [vmem:[%s533 + $0xf8] sm:$0xff]
          %v638 = vld [vmem:[%s533 + $0x100] sm:$0xff]
          %v639 = vld [vmem:[%s533 + $0x108] sm:$0xff]
          %v640 = vld [vmem:[%s533 + $0x110] sm:$0xff]
          %v641 = vld [vmem:[%s533 + $0x118] sm:$0xff]
          %v642 = vld [vmem:[%s533 + $0x120] sm:$0xff]
          %v643 = vld [vmem:[%s533 + $0x128] sm:$0xff]
          %v644 = vld [vmem:[%s533 + $0x130] sm:$0xff]
          %v645 = vld [vmem:[%s533 + $0x138] sm:$0xff]
          %v646 = vld [vmem:[%s533 + $0x140] sm:$0xff]
          %v647 = vld [vmem:[%s533 + $0x148] sm:$0xff]
          %v648 = vld [vmem:[%s533 + $0x150] sm:$0xff]
          %v649 = vld [vmem:[%s533 + $0x158] sm:$0xff]
          %v650 = vld [vmem:[%s533 + $0x160] sm:$0xff]
          %v651 = vld [vmem:[%s533 + $0x168] sm:$0xff]
          %v652 = vld [vmem:[%s533 + $0x170] sm:$0xff]
          %v653 = vld [vmem:[%s533 + $0x178] sm:$0xff]
          %v654 = vld [vmem:[%s533 + $0x180] sm:$0xff]
          %v655 = vld [vmem:[%s533 + $0x188] sm:$0xff]
          %v656 = vld [vmem:[%s533 + $0x190] sm:$0xff]
          %v657 = vld [vmem:[%s533 + $0x198] sm:$0xff]
          %v658 = vld [vmem:[%s533 + $0x1a0] sm:$0xff]
          %v659 = vld [vmem:[%s533 + $0x1a8] sm:$0xff]
          %v660 = vld [vmem:[%s533 + $0x1b0] sm:$0xff]
          %v661 = vld [vmem:[%s533 + $0x1b8] sm:$0xff]
          %v662 = vld [vmem:[%s533 + $0x1c0] sm:$0xff]
          %v663 = vld [vmem:[%s533 + $0x1c8] sm:$0xff]
          %v664 = vld [vmem:[%s533 + $0x1d0] sm:$0xff]
          %v665 = vld [vmem:[%s533 + $0x1d8] sm:$0xff]
          %v666 = vld [vmem:[%s533 + $0x1e0] sm:$0xff]
          %v667 = vld [vmem:[%s533 + $0x1e8] sm:$0xff]
          %v668 = vld [vmem:[%s533 + $0x1f0] sm:$0xff]
          %v669 = vld [vmem:[%s533 + $0x1f8] sm:$0xff]
          %v670 = vpack.c.bf16 %v608, %v606
          %v671 = vpack.c.bf16 %v609, %v607
          %v672 = vpack.c.bf16 %v612, %v610
          %v673 = vpack.c.bf16 %v613, %v611
          %v674 = vpack.c.bf16 %v616, %v614
          %v675 = vpack.c.bf16 %v617, %v615
          %v676 = vpack.c.bf16 %v620, %v618
          %v677 = vpack.c.bf16 %v621, %v619
          %v678 = vpack.c.bf16 %v624, %v622
          %v679 = vpack.c.bf16 %v625, %v623
          %v680 = vpack.c.bf16 %v628, %v626
          %v681 = vpack.c.bf16 %v629, %v627
          %v682 = vpack.c.bf16 %v632, %v630
          %v683 = vpack.c.bf16 %v633, %v631
          %v684 = vpack.c.bf16 %v636, %v634
          %v685 = vpack.c.bf16 %v637, %v635
          %v686 = vpack.c.bf16 %v640, %v638
          %v687 = vpack.c.bf16 %v641, %v639
          %v688 = vpack.c.bf16 %v644, %v642
          %v689 = vpack.c.bf16 %v645, %v643
          %v690 = vpack.c.bf16 %v648, %v646
          %v691 = vpack.c.bf16 %v649, %v647
          %v692 = vpack.c.bf16 %v652, %v650
          %v693 = vpack.c.bf16 %v653, %v651
          %v694 = vpack.c.bf16 %v656, %v654
          %v695 = vpack.c.bf16 %v657, %v655
          %v696 = vpack.c.bf16 %v660, %v658
          %v697 = vpack.c.bf16 %v661, %v659
          %v698 = vpack.c.bf16 %v664, %v662
          %v699 = vpack.c.bf16 %v665, %v663
          %v700 = vpack.c.bf16 %v668, %v666
          %v701 = vpack.c.bf16 %v669, %v667
          %v702 = vld [vmem:[#allocation10] sm:$0xff]
          %v703 = vld [vmem:[#allocation10 + $0x8] sm:$0xff]
          %v704 = vld [vmem:[#allocation10 + $0x10] sm:$0xff]
          %v705 = vld [vmem:[#allocation10 + $0x18] sm:$0xff]
          %v706 = vld [vmem:[#allocation10 + $0x20] sm:$0xff]
          %v707 = vld [vmem:[#allocation10 + $0x28] sm:$0xff]
          %v708 = vld [vmem:[#allocation10 + $0x30] sm:$0xff]
          %v709 = vld [vmem:[#allocation10 + $0x38] sm:$0xff]
          %v710 = vld [vmem:[#allocation10 + $0x40] sm:$0xff]
          %v711 = vld [vmem:[#allocation10 + $0x48] sm:$0xff]
          %v712 = vld [vmem:[#allocation10 + $0x50] sm:$0xff]
          %v713 = vld [vmem:[#allocation10 + $0x58] sm:$0xff]
          %v714 = vld [vmem:[#allocation10 + $0x60] sm:$0xff]
          %v715 = vld [vmem:[#allocation10 + $0x68] sm:$0xff]
          %v716 = vld [vmem:[#allocation10 + $0x70] sm:$0xff]
          %v717 = vld [vmem:[#allocation10 + $0x78] sm:$0xff]
          %v718 = vld [vmem:[#allocation10 + $0x80] sm:$0xff]
          %v719 = vld [vmem:[#allocation10 + $0x88] sm:$0xff]
          %v720 = vld [vmem:[#allocation10 + $0x90] sm:$0xff]
          %v721 = vld [vmem:[#allocation10 + $0x98] sm:$0xff]
          %v722 = vld [vmem:[#allocation10 + $0xa0] sm:$0xff]
          %v723 = vld [vmem:[#allocation10 + $0xa8] sm:$0xff]
          %v724 = vld [vmem:[#allocation10 + $0xb0] sm:$0xff]
          %v725 = vld [vmem:[#allocation10 + $0xb8] sm:$0xff]
          %v726 = vld [vmem:[#allocation10 + $0xc0] sm:$0xff]
          %v727 = vld [vmem:[#allocation10 + $0xc8] sm:$0xff]
          %v728 = vld [vmem:[#allocation10 + $0xd0] sm:$0xff]
          %v729 = vld [vmem:[#allocation10 + $0xd8] sm:$0xff]
          %v730 = vld [vmem:[#allocation10 + $0xe0] sm:$0xff]
          %v731 = vld [vmem:[#allocation10 + $0xe8] sm:$0xff]
          %v732 = vld [vmem:[#allocation10 + $0xf0] sm:$0xff]
          %v733 = vld [vmem:[#allocation10 + $0xf8] sm:$0xff]
          %v734 = vld [vmem:[#allocation10 + $0x100] sm:$0xff]
          %v735 = vld [vmem:[#allocation10 + $0x108] sm:$0xff]
          %v736 = vld [vmem:[#allocation10 + $0x110] sm:$0xff]
          %v737 = vld [vmem:[#allocation10 + $0x118] sm:$0xff]
          %v738 = vld [vmem:[#allocation10 + $0x120] sm:$0xff]
          %v739 = vld [vmem:[#allocation10 + $0x128] sm:$0xff]
          %v740 = vld [vmem:[#allocation10 + $0x130] sm:$0xff]
          %v741 = vld [vmem:[#allocation10 + $0x138] sm:$0xff]
          %v742 = vld [vmem:[#allocation10 + $0x140] sm:$0xff]
          %v743 = vld [vmem:[#allocation10 + $0x148] sm:$0xff]
          %v744 = vld [vmem:[#allocation10 + $0x150] sm:$0xff]
          %v745 = vld [vmem:[#allocation10 + $0x158] sm:$0xff]
          %v746 = vld [vmem:[#allocation10 + $0x160] sm:$0xff]
          %v747 = vld [vmem:[#allocation10 + $0x168] sm:$0xff]
          %v748 = vld [vmem:[#allocation10 + $0x170] sm:$0xff]
          %v749 = vld [vmem:[#allocation10 + $0x178] sm:$0xff]
          %v750 = vld [vmem:[#allocation10 + $0x180] sm:$0xff]
          %v751 = vld [vmem:[#allocation10 + $0x188] sm:$0xff]
          %v752 = vld [vmem:[#allocation10 + $0x190] sm:$0xff]
          %v753 = vld [vmem:[#allocation10 + $0x198] sm:$0xff]
          %v754 = vld [vmem:[#allocation10 + $0x1a0] sm:$0xff]
          %v755 = vld [vmem:[#allocation10 + $0x1a8] sm:$0xff]
          %v756 = vld [vmem:[#allocation10 + $0x1b0] sm:$0xff]
          %v757 = vld [vmem:[#allocation10 + $0x1b8] sm:$0xff]
          %v758 = vld [vmem:[#allocation10 + $0x1c0] sm:$0xff]
          %v759 = vld [vmem:[#allocation10 + $0x1c8] sm:$0xff]
          %v760 = vld [vmem:[#allocation10 + $0x1d0] sm:$0xff]
          %v761 = vld [vmem:[#allocation10 + $0x1d8] sm:$0xff]
          %v762 = vld [vmem:[#allocation10 + $0x1e0] sm:$0xff]
          %v763 = vld [vmem:[#allocation10 + $0x1e8] sm:$0xff]
          %v764 = vld [vmem:[#allocation10 + $0x1f0] sm:$0xff]
          %v765 = vld [vmem:[#allocation10 + $0x1f8] sm:$0xff]
          %v766 = vld [vmem:[%s4] sm:$0xf]
          %v768 = vlaneseq
          %v769 = vshrl.u32 %v768, 7
          %v770 = vsub.s32 0, %v769
          %v771 = vrot.slane %v766, %v770
          %v772 = vlaneseq
          %v773 = vshrl.u32 %v772, 7
          %v774 = vsub.s32 1, %v773
          %v775 = vrot.slane %v766, %v774
          %v776 = vlaneseq
          %v777 = vshrl.u32 %v776, 7
          %v778 = vsub.s32 2, %v777
          %v779 = vrot.slane %v766, %v778
          %v780 = vlaneseq
          %v781 = vshrl.u32 %v780, 7
          %v782 = vsub.s32 3, %v781
          %v783 = vrot.slane %v766, %v782
          %v852 = vunpack.c.l.b16 %v702
          %v853 = vunpack.c.h.b16 %v702
          %v854 = vunpack.c.l.b16 %v703
          %v855 = vunpack.c.h.b16 %v703
          %v856 = vunpack.c.l.b16 %v704
          %v857 = vunpack.c.h.b16 %v704
          %v858 = vunpack.c.l.b16 %v705
          %v859 = vunpack.c.h.b16 %v705
          %v860 = vunpack.c.l.b16 %v706
          %v861 = vunpack.c.h.b16 %v706
          %v862 = vunpack.c.l.b16 %v707
          %v863 = vunpack.c.h.b16 %v707
          %v864 = vunpack.c.l.b16 %v708
          %v865 = vunpack.c.h.b16 %v708
          %v866 = vunpack.c.l.b16 %v709
          %v867 = vunpack.c.h.b16 %v709
          %v868 = vunpack.c.l.b16 %v710
          %v869 = vunpack.c.h.b16 %v710
          %v870 = vunpack.c.l.b16 %v711
          %v871 = vunpack.c.h.b16 %v711
          %v872 = vunpack.c.l.b16 %v712
          %v873 = vunpack.c.h.b16 %v712
          %v874 = vunpack.c.l.b16 %v713
          %v875 = vunpack.c.h.b16 %v713
          %v876 = vunpack.c.l.b16 %v714
          %v877 = vunpack.c.h.b16 %v714
          %v878 = vunpack.c.l.b16 %v715
          %v879 = vunpack.c.h.b16 %v715
          %v880 = vunpack.c.l.b16 %v716
          %v881 = vunpack.c.h.b16 %v716
          %v882 = vunpack.c.l.b16 %v717
          %v883 = vunpack.c.h.b16 %v717
          %v884 = vunpack.c.l.b16 %v718
          %v885 = vunpack.c.h.b16 %v718
          %v886 = vunpack.c.l.b16 %v719
          %v887 = vunpack.c.h.b16 %v719
          %v888 = vunpack.c.l.b16 %v720
          %v889 = vunpack.c.h.b16 %v720
          %v890 = vunpack.c.l.b16 %v721
          %v891 = vunpack.c.h.b16 %v721
          %v892 = vunpack.c.l.b16 %v722
          %v893 = vunpack.c.h.b16 %v722
          %v894 = vunpack.c.l.b16 %v723
          %v895 = vunpack.c.h.b16 %v723
          %v896 = vunpack.c.l.b16 %v724
          %v897 = vunpack.c.h.b16 %v724
          %v898 = vunpack.c.l.b16 %v725
          %v899 = vunpack.c.h.b16 %v725
          %v900 = vunpack.c.l.b16 %v726
          %v901 = vunpack.c.h.b16 %v726
          %v902 = vunpack.c.l.b16 %v727
          %v903 = vunpack.c.h.b16 %v727
          %v904 = vunpack.c.l.b16 %v728
          %v905 = vunpack.c.h.b16 %v728
          %v906 = vunpack.c.l.b16 %v729
          %v907 = vunpack.c.h.b16 %v729
          %v908 = vunpack.c.l.b16 %v730
          %v909 = vunpack.c.h.b16 %v730
          %v910 = vunpack.c.l.b16 %v731
          %v911 = vunpack.c.h.b16 %v731
          %v912 = vunpack.c.l.b16 %v732
          %v913 = vunpack.c.h.b16 %v732
          %v914 = vunpack.c.l.b16 %v733
          %v915 = vunpack.c.h.b16 %v733
          %v916 = vunpack.c.l.b16 %v734
          %v917 = vunpack.c.h.b16 %v734
          %v918 = vunpack.c.l.b16 %v735
          %v919 = vunpack.c.h.b16 %v735
          %v920 = vunpack.c.l.b16 %v736
          %v921 = vunpack.c.h.b16 %v736
          %v922 = vunpack.c.l.b16 %v737
          %v923 = vunpack.c.h.b16 %v737
          %v924 = vunpack.c.l.b16 %v738
          %v925 = vunpack.c.h.b16 %v738
          %v926 = vunpack.c.l.b16 %v739
          %v927 = vunpack.c.h.b16 %v739
          %v928 = vunpack.c.l.b16 %v740
          %v929 = vunpack.c.h.b16 %v740
          %v930 = vunpack.c.l.b16 %v741
          %v931 = vunpack.c.h.b16 %v741
          %v932 = vunpack.c.l.b16 %v742
          %v933 = vunpack.c.h.b16 %v742
          %v934 = vunpack.c.l.b16 %v743
          %v935 = vunpack.c.h.b16 %v743
          %v936 = vunpack.c.l.b16 %v744
          %v937 = vunpack.c.h.b16 %v744
          %v938 = vunpack.c.l.b16 %v745
          %v939 = vunpack.c.h.b16 %v745
          %v940 = vunpack.c.l.b16 %v746
          %v941 = vunpack.c.h.b16 %v746
          %v942 = vunpack.c.l.b16 %v747
          %v943 = vunpack.c.h.b16 %v747
          %v944 = vunpack.c.l.b16 %v748
          %v945 = vunpack.c.h.b16 %v748
          %v946 = vunpack.c.l.b16 %v749
          %v947 = vunpack.c.h.b16 %v749
          %v948 = vunpack.c.l.b16 %v750
          %v949 = vunpack.c.h.b16 %v750
          %v950 = vunpack.c.l.b16 %v751
          %v951 = vunpack.c.h.b16 %v751
          %v952 = vunpack.c.l.b16 %v752
          %v953 = vunpack.c.h.b16 %v752
          %v954 = vunpack.c.l.b16 %v753
          %v955 = vunpack.c.h.b16 %v753
          %v956 = vunpack.c.l.b16 %v754
          %v957 = vunpack.c.h.b16 %v754
          %v958 = vunpack.c.l.b16 %v755
          %v959 = vunpack.c.h.b16 %v755
          %v960 = vunpack.c.l.b16 %v756
          %v961 = vunpack.c.h.b16 %v756
          %v962 = vunpack.c.l.b16 %v757
          %v963 = vunpack.c.h.b16 %v757
          %v964 = vunpack.c.l.b16 %v758
          %v965 = vunpack.c.h.b16 %v758
          %v966 = vunpack.c.l.b16 %v759
          %v967 = vunpack.c.h.b16 %v759
          %v968 = vunpack.c.l.b16 %v760
          %v969 = vunpack.c.h.b16 %v760
          %v970 = vunpack.c.l.b16 %v761
          %v971 = vunpack.c.h.b16 %v761
          %v972 = vunpack.c.l.b16 %v762
          %v973 = vunpack.c.h.b16 %v762
          %v974 = vunpack.c.l.b16 %v763
          %v975 = vunpack.c.h.b16 %v763
          %v976 = vunpack.c.l.b16 %v764
          %v977 = vunpack.c.h.b16 %v764
          %v978 = vunpack.c.l.b16 %v765
          %v979 = vunpack.c.h.b16 %v765
          %v980 = vpack.c.b16 %v856, %v852
          %v981 = vpack.c.b16 %v857, %v853
          %v982 = vpack.c.b16 %v858, %v854
          %v983 = vpack.c.b16 %v859, %v855
          %v984 = vpack.c.b16 %v864, %v860
          %v985 = vpack.c.b16 %v865, %v861
          %v986 = vpack.c.b16 %v866, %v862
          %v987 = vpack.c.b16 %v867, %v863
          %v988 = vpack.c.b16 %v872, %v868
          %v989 = vpack.c.b16 %v873, %v869
          %v990 = vpack.c.b16 %v874, %v870
          %v991 = vpack.c.b16 %v875, %v871
          %v992 = vpack.c.b16 %v880, %v876
          %v993 = vpack.c.b16 %v881, %v877
          %v994 = vpack.c.b16 %v882, %v878
          %v995 = vpack.c.b16 %v883, %v879
          %v996 = vpack.c.b16 %v888, %v884
          %v997 = vpack.c.b16 %v889, %v885
          %v998 = vpack.c.b16 %v890, %v886
          %v999 = vpack.c.b16 %v891, %v887
          %v1000 = vpack.c.b16 %v896, %v892
          %v1001 = vpack.c.b16 %v897, %v893
          %v1002 = vpack.c.b16 %v898, %v894
          %v1003 = vpack.c.b16 %v899, %v895
          %v1004 = vpack.c.b16 %v904, %v900
          %v1005 = vpack.c.b16 %v905, %v901
          %v1006 = vpack.c.b16 %v906, %v902
          %v1007 = vpack.c.b16 %v907, %v903
          %v1008 = vpack.c.b16 %v912, %v908
          %v1009 = vpack.c.b16 %v913, %v909
          %v1010 = vpack.c.b16 %v914, %v910
          %v1011 = vpack.c.b16 %v915, %v911
          %v1012 = vpack.c.b16 %v920, %v916
          %v1013 = vpack.c.b16 %v921, %v917
          %v1014 = vpack.c.b16 %v922, %v918
          %v1015 = vpack.c.b16 %v923, %v919
          %v1016 = vpack.c.b16 %v928, %v924
          %v1017 = vpack.c.b16 %v929, %v925
          %v1018 = vpack.c.b16 %v930, %v926
          %v1019 = vpack.c.b16 %v931, %v927
          %v1020 = vpack.c.b16 %v936, %v932
          %v1021 = vpack.c.b16 %v937, %v933
          %v1022 = vpack.c.b16 %v938, %v934
          %v1023 = vpack.c.b16 %v939, %v935
          %v1024 = vpack.c.b16 %v944, %v940
          %v1025 = vpack.c.b16 %v945, %v941
          %v1026 = vpack.c.b16 %v946, %v942
          %v1027 = vpack.c.b16 %v947, %v943
          %v1028 = vpack.c.b16 %v952, %v948
          %v1029 = vpack.c.b16 %v953, %v949
          %v1030 = vpack.c.b16 %v954, %v950
          %v1031 = vpack.c.b16 %v955, %v951
          %v1032 = vpack.c.b16 %v960, %v956
          %v1033 = vpack.c.b16 %v961, %v957
          %v1034 = vpack.c.b16 %v962, %v958
          %v1035 = vpack.c.b16 %v963, %v959
          %v1036 = vpack.c.b16 %v968, %v964
          %v1037 = vpack.c.b16 %v969, %v965
          %v1038 = vpack.c.b16 %v970, %v966
          %v1039 = vpack.c.b16 %v971, %v967
          %v1040 = vpack.c.b16 %v976, %v972
          %v1041 = vpack.c.b16 %v977, %v973
          %v1042 = vpack.c.b16 %v978, %v974
          %v1043 = vpack.c.b16 %v979, %v975
          %1108 = vmatprep.subr.bf16.mxu0 %v981
          %1109 = vmatpush1.bf16.msra.mxu0 %v980
          %1110 = vmatprep.subr.bf16.mxu0 %v985
          %1111 = vmatpush1.bf16.msra.mxu0 %v984
          %1112 = vmatprep.subr.bf16.mxu0 %v989
          %1113 = vmatpush1.bf16.msra.mxu0 %v988
          %1114 = vmatprep.subr.bf16.mxu0 %v993
          %1115 = vmatpush1.bf16.msra.mxu0 %v992
          %1116 = vmatprep.subr.bf16.mxu0 %v997
          %1117 = vmatpush1.bf16.msra.mxu0 %v996
          %1118 = vmatprep.subr.bf16.mxu0 %v1001
          %1119 = vmatpush1.bf16.msra.mxu0 %v1000
          %1120 = vmatprep.subr.bf16.mxu0 %v1005
          %1121 = vmatpush1.bf16.msra.mxu0 %v1004
          %1122 = vmatprep.subr.bf16.mxu0 %v1009
          %1123 = vmatpush1.bf16.msra.mxu0 %v1008
          %1124 = vmatprep.subr.bf16.mxu0 %v1013
          %1125 = vmatpush1.bf16.msra.mxu0 %v1012
          %1126 = vmatprep.subr.bf16.mxu0 %v1017
          %1127 = vmatpush1.bf16.msra.mxu0 %v1016
          %1128 = vmatprep.subr.bf16.mxu0 %v1021
          %1129 = vmatpush1.bf16.msra.mxu0 %v1020
          %1130 = vmatprep.subr.bf16.mxu0 %v1025
          %1131 = vmatpush1.bf16.msra.mxu0 %v1024
          %1132 = vmatprep.subr.bf16.mxu0 %v1029
          %1133 = vmatpush1.bf16.msra.mxu0 %v1028
          %1134 = vmatprep.subr.bf16.mxu0 %v1033
          %1135 = vmatpush1.bf16.msra.mxu0 %v1032
          %1136 = vmatprep.subr.bf16.mxu0 %v1037
          %1137 = vmatpush1.bf16.msra.mxu0 %v1036
          %1138 = vmatprep.subr.bf16.mxu0 %v1041
          %1139 = vmatpush1.bf16.msra.mxu0 %v1040
          %1140 = vmatprep.mubr.bf16.mxu0 %v671
          %1141 = vmatmul.mubr.bf16.gmra.mrb[0].mxu0 %v670
          %v1142 = vpop.f32.mrb[0].mxu0
          %v1143 = vadd.f32 %v771, %v1142
          %v1144 = vpop.f32.mrb[0].mxu0
          %v1145 = vadd.f32 %v775, %v1144
          %v1146 = vpop.f32.mrb[0].mxu0
          %v1147 = vadd.f32 %v771, %v1146
          %v1148 = vpop.f32.mrb[0].mxu0
          %v1149 = vadd.f32 %v775, %v1148
          %1150 = vmatprep.mubr.bf16.mxu0 %v673
          %1151 = vmatmul.mubr.bf16.gmra.mrb[0].mxu0 %v672
          %v1152 = vpop.f32.mrb[0].mxu0
          %v1153 = vadd.f32 %v771, %v1152
          %v1154 = vpop.f32.mrb[0].mxu0
          %v1155 = vadd.f32 %v775, %v1154
          %v1156 = vpop.f32.mrb[0].mxu0
          %v1157 = vadd.f32 %v771, %v1156
          %v1158 = vpop.f32.mrb[0].mxu0
          %v1159 = vadd.f32 %v775, %v1158
          %1160 = vmatprep.mubr.bf16.mxu0 %v675
          %1161 = vmatmul.mubr.bf16.gmra.mrb[0].mxu0 %v674
          %v1162 = vpop.f32.mrb[0].mxu0
          %v1163 = vadd.f32 %v771, %v1162
          %v1164 = vpop.f32.mrb[0].mxu0
          %v1165 = vadd.f32 %v775, %v1164
          %v1166 = vpop.f32.mrb[0].mxu0
          %v1167 = vadd.f32 %v771, %v1166
          %v1168 = vpop.f32.mrb[0].mxu0
          %v1169 = vadd.f32 %v775, %v1168
          %1170 = vmatprep.mubr.bf16.mxu0 %v677
          %1171 = vmatmul.mubr.bf16.gmra.mrb[0].mxu0 %v676
          %v1172 = vpop.f32.mrb[0].mxu0
          %v1173 = vadd.f32 %v771, %v1172
          %v1174 = vpop.f32.mrb[0].mxu0
          %v1175 = vadd.f32 %v775, %v1174
          %v1176 = vpop.f32.mrb[0].mxu0
          %v1177 = vadd.f32 %v771, %v1176
          %v1178 = vpop.f32.mrb[0].mxu0
          %v1179 = vadd.f32 %v775, %v1178
          %1180 = vmatprep.mubr.bf16.mxu0 %v679
          %1181 = vmatmul.mubr.bf16.gmra.mrb[0].mxu0 %v678
          %v1182 = vpop.f32.mrb[0].mxu0
          %v1183 = vadd.f32 %v771, %v1182
          %v1184 = vpop.f32.mrb[0].mxu0
          %v1185 = vadd.f32 %v775, %v1184
          %v1186 = vpop.f32.mrb[0].mxu0
          %v1187 = vadd.f32 %v771, %v1186
          %v1188 = vpop.f32.mrb[0].mxu0
          %v1189 = vadd.f32 %v775, %v1188
          %1190 = vmatprep.mubr.bf16.mxu0 %v681
          %1191 = vmatmul.mubr.bf16.gmra.mrb[0].mxu0 %v680
          %v1192 = vpop.f32.mrb[0].mxu0
          %v1193 = vadd.f32 %v771, %v1192
          %v1194 = vpop.f32.mrb[0].mxu0
          %v1195 = vadd.f32 %v775, %v1194
          %v1196 = vpop.f32.mrb[0].mxu0
          %v1197 = vadd.f32 %v771, %v1196
          %v1198 = vpop.f32.mrb[0].mxu0
          %v1199 = vadd.f32 %v775, %v1198
          %1200 = vmatprep.mubr.bf16.mxu0 %v683
          %1201 = vmatmul.mubr.bf16.gmra.mrb[0].mxu0 %v682
          %v1202 = vpop.f32.mrb[0].mxu0
          %v1203 = vadd.f32 %v771, %v1202
          %v1204 = vpop.f32.mrb[0].mxu0
          %v1205 = vadd.f32 %v775, %v1204
          %v1206 = vpop.f32.mrb[0].mxu0
          %v1207 = vadd.f32 %v771, %v1206
          %v1208 = vpop.f32.mrb[0].mxu0
          %v1209 = vadd.f32 %v775, %v1208
          %1210 = vmatprep.mubr.bf16.mxu0 %v685
          %1211 = vmatmul.mubr.bf16.gmra.mrb[0].mxu0 %v684
          %v1212 = vpop.f32.mrb[0].mxu0
          %v1213 = vadd.f32 %v771, %v1212
          %v1214 = vpop.f32.mrb[0].mxu0
          %v1215 = vadd.f32 %v775, %v1214
          %v1216 = vpop.f32.mrb[0].mxu0
          %v1217 = vadd.f32 %v771, %v1216
          %v1218 = vpop.f32.mrb[0].mxu0
          %v1219 = vadd.f32 %v775, %v1218
          %1220 = vmatprep.mubr.bf16.mxu0 %v687
          %1221 = vmatmul.mubr.bf16.gmra.mrb[0].mxu0 %v686
          %v1222 = vpop.f32.mrb[0].mxu0
          %v1223 = vadd.f32 %v771, %v1222
          %v1224 = vpop.f32.mrb[0].mxu0
          %v1225 = vadd.f32 %v775, %v1224
          %v1226 = vpop.f32.mrb[0].mxu0
          %v1227 = vadd.f32 %v771, %v1226
          %v1228 = vpop.f32.mrb[0].mxu0
          %v1229 = vadd.f32 %v775, %v1228
          %1230 = vmatprep.mubr.bf16.mxu0 %v689
          %1231 = vmatmul.mubr.bf16.gmra.mrb[0].mxu0 %v688
          %v1232 = vpop.f32.mrb[0].mxu0
          %v1233 = vadd.f32 %v771, %v1232
          %v1234 = vpop.f32.mrb[0].mxu0
          %v1235 = vadd.f32 %v775, %v1234
          %v1236 = vpop.f32.mrb[0].mxu0
          %v1237 = vadd.f32 %v771, %v1236
          %v1238 = vpop.f32.mrb[0].mxu0
          %v1239 = vadd.f32 %v775, %v1238
          %1240 = vmatprep.mubr.bf16.mxu0 %v691
          %1241 = vmatmul.mubr.bf16.gmra.mrb[0].mxu0 %v690
          %v1242 = vpop.f32.mrb[0].mxu0
          %v1243 = vadd.f32 %v771, %v1242
          %v1244 = vpop.f32.mrb[0].mxu0
          %v1245 = vadd.f32 %v775, %v1244
          %v1246 = vpop.f32.mrb[0].mxu0
          %v1247 = vadd.f32 %v771, %v1246
          %v1248 = vpop.f32.mrb[0].mxu0
          %v1249 = vadd.f32 %v775, %v1248
          %1250 = vmatprep.mubr.bf16.mxu0 %v693
          %1251 = vmatmul.mubr.bf16.gmra.mrb[0].mxu0 %v692
          %v1252 = vpop.f32.mrb[0].mxu0
          %v1253 = vadd.f32 %v771, %v1252
          %v1254 = vpop.f32.mrb[0].mxu0
          %v1255 = vadd.f32 %v775, %v1254
          %v1256 = vpop.f32.mrb[0].mxu0
          %v1257 = vadd.f32 %v771, %v1256
          %v1258 = vpop.f32.mrb[0].mxu0
          %v1259 = vadd.f32 %v775, %v1258
          %1260 = vmatprep.mubr.bf16.mxu0 %v695
          %1261 = vmatmul.mubr.bf16.gmra.mrb[0].mxu0 %v694
          %v1262 = vpop.f32.mrb[0].mxu0
          %v1263 = vadd.f32 %v771, %v1262
          %v1264 = vpop.f32.mrb[0].mxu0
          %v1265 = vadd.f32 %v775, %v1264
          %v1266 = vpop.f32.mrb[0].mxu0
          %v1267 = vadd.f32 %v771, %v1266
          %v1268 = vpop.f32.mrb[0].mxu0
          %v1269 = vadd.f32 %v775, %v1268
          %1270 = vmatprep.mubr.bf16.mxu0 %v697
          %1271 = vmatmul.mubr.bf16.gmra.mrb[0].mxu0 %v696
          %v1272 = vpop.f32.mrb[0].mxu0
          %v1273 = vadd.f32 %v771, %v1272
          %v1274 = vpop.f32.mrb[0].mxu0
          %v1275 = vadd.f32 %v775, %v1274
          %v1276 = vpop.f32.mrb[0].mxu0
          %v1277 = vadd.f32 %v771, %v1276
          %v1278 = vpop.f32.mrb[0].mxu0
          %v1279 = vadd.f32 %v775, %v1278
          %1280 = vmatprep.mubr.bf16.mxu0 %v699
          %1281 = vmatmul.mubr.bf16.gmra.mrb[0].mxu0 %v698
          %v1282 = vpop.f32.mrb[0].mxu0
          %v1283 = vadd.f32 %v771, %v1282
          %v1284 = vpop.f32.mrb[0].mxu0
          %v1285 = vadd.f32 %v775, %v1284
          %v1286 = vpop.f32.mrb[0].mxu0
          %v1287 = vadd.f32 %v771, %v1286
          %v1288 = vpop.f32.mrb[0].mxu0
          %v1289 = vadd.f32 %v775, %v1288
          %1290 = vmatprep.mubr.bf16.mxu0 %v701
          %1291 = vmatmul.mubr.bf16.gmra.mrb[0].mxu0 %v700
          %v1292 = vpop.f32.mrb[0].mxu0
          %v1293 = vadd.f32 %v771, %v1292
          %v1294 = vpop.f32.mrb[0].mxu0
          %v1295 = vadd.f32 %v775, %v1294
          %v1296 = vpop.f32.mrb[0].mxu0
          %v1297 = vadd.f32 %v771, %v1296
          %v1298 = vpop.f32.mrb[0].mxu0
          %v1299 = vadd.f32 %v775, %v1298
          %1300 = vdwg.mxu0
          %1301 = vmatprep.subr.bf16.mxu0 %v983
          %1302 = vmatpush1.bf16.msra.mxu0 %v982
          %1303 = vmatprep.subr.bf16.mxu0 %v987
          %1304 = vmatpush1.bf16.msra.mxu0 %v986
          %1305 = vmatprep.subr.bf16.mxu0 %v991
          %1306 = vmatpush1.bf16.msra.mxu0 %v990
          %1307 = vmatprep.subr.bf16.mxu0 %v995
          %1308 = vmatpush1.bf16.msra.mxu0 %v994
          %1309 = vmatprep.subr.bf16.mxu0 %v999
          %1310 = vmatpush1.bf16.msra.mxu0 %v998
          %1311 = vmatprep.subr.bf16.mxu0 %v1003
          %1312 = vmatpush1.bf16.msra.mxu0 %v1002
          %1313 = vmatprep.subr.bf16.mxu0 %v1007
          %1314 = vmatpush1.bf16.msra.mxu0 %v1006
          %1315 = vmatprep.subr.bf16.mxu0 %v1011
          %1316 = vmatpush1.bf16.msra.mxu0 %v1010
          %1317 = vmatprep.subr.bf16.mxu0 %v1015
          %1318 = vmatpush1.bf16.msra.mxu0 %v1014
          %1319 = vmatprep.subr.bf16.mxu0 %v1019
          %1320 = vmatpush1.bf16.msra.mxu0 %v1018
          %1321 = vmatprep.subr.bf16.mxu0 %v1023
          %1322 = vmatpush1.bf16.msra.mxu0 %v1022
          %1323 = vmatprep.subr.bf16.mxu0 %v1027
          %1324 = vmatpush1.bf16.msra.mxu0 %v1026
          %1325 = vmatprep.subr.bf16.mxu0 %v1031
          %1326 = vmatpush1.bf16.msra.mxu0 %v1030
          %1327 = vmatprep.subr.bf16.mxu0 %v1035
          %1328 = vmatpush1.bf16.msra.mxu0 %v1034
          %1329 = vmatprep.subr.bf16.mxu0 %v1039
          %1330 = vmatpush1.bf16.msra.mxu0 %v1038
          %1331 = vmatprep.subr.bf16.mxu0 %v1043
          %1332 = vmatpush1.bf16.msra.mxu0 %v1042
          %1333 = vmatprep.mubr.bf16.mxu0 %v671
          %1334 = vmatmul.mubr.bf16.gmra.mrb[0].mxu0 %v670
          %v1335 = vpop.f32.mrb[0].mxu0
          %v1336 = vadd.f32 %v779, %v1335
          %v1337 = vpop.f32.mrb[0].mxu0
          %v1338 = vadd.f32 %v783, %v1337
          %v1339 = vpop.f32.mrb[0].mxu0
          %v1340 = vadd.f32 %v779, %v1339
          %v1341 = vpop.f32.mrb[0].mxu0
          %v1342 = vadd.f32 %v783, %v1341
          %1343 = vmatprep.mubr.bf16.mxu0 %v673
          %1344 = vmatmul.mubr.bf16.gmra.mrb[0].mxu0 %v672
          %v1345 = vpop.f32.mrb[0].mxu0
          %v1346 = vadd.f32 %v779, %v1345
          %v1347 = vpop.f32.mrb[0].mxu0
          %v1348 = vadd.f32 %v783, %v1347
          %v1349 = vpop.f32.mrb[0].mxu0
          %v1350 = vadd.f32 %v779, %v1349
          %v1351 = vpop.f32.mrb[0].mxu0
          %v1352 = vadd.f32 %v783, %v1351
          %1353 = vmatprep.mubr.bf16.mxu0 %v675
          %1354 = vmatmul.mubr.bf16.gmra.mrb[0].mxu0 %v674
          %v1355 = vpop.f32.mrb[0].mxu0
          %v1356 = vadd.f32 %v779, %v1355
          %v1357 = vpop.f32.mrb[0].mxu0
          %v1358 = vadd.f32 %v783, %v1357
          %v1359 = vpop.f32.mrb[0].mxu0
          %v1360 = vadd.f32 %v779, %v1359
          %v1361 = vpop.f32.mrb[0].mxu0
          %v1362 = vadd.f32 %v783, %v1361
          %1363 = vmatprep.mubr.bf16.mxu0 %v677
          %1364 = vmatmul.mubr.bf16.gmra.mrb[0].mxu0 %v676
          %v1365 = vpop.f32.mrb[0].mxu0
          %v1366 = vadd.f32 %v779, %v1365
          %v1367 = vpop.f32.mrb[0].mxu0
          %v1368 = vadd.f32 %v783, %v1367
          %v1369 = vpop.f32.mrb[0].mxu0
          %v1370 = vadd.f32 %v779, %v1369
          %v1371 = vpop.f32.mrb[0].mxu0
          %v1372 = vadd.f32 %v783, %v1371
          %1373 = vmatprep.mubr.bf16.mxu0 %v679
          %1374 = vmatmul.mubr.bf16.gmra.mrb[0].mxu0 %v678
          %v1375 = vpop.f32.mrb[0].mxu0
          %v1376 = vadd.f32 %v779, %v1375
          %v1377 = vpop.f32.mrb[0].mxu0
          %v1378 = vadd.f32 %v783, %v1377
          %v1379 = vpop.f32.mrb[0].mxu0
          %v1380 = vadd.f32 %v779, %v1379
          %v1381 = vpop.f32.mrb[0].mxu0
          %v1382 = vadd.f32 %v783, %v1381
          %1383 = vmatprep.mubr.bf16.mxu0 %v681
          %1384 = vmatmul.mubr.bf16.gmra.mrb[0].mxu0 %v680
          %v1385 = vpop.f32.mrb[0].mxu0
          %v1386 = vadd.f32 %v779, %v1385
          %v1387 = vpop.f32.mrb[0].mxu0
          %v1388 = vadd.f32 %v783, %v1387
          %v1389 = vpop.f32.mrb[0].mxu0
          %v1390 = vadd.f32 %v779, %v1389
          %v1391 = vpop.f32.mrb[0].mxu0
          %v1392 = vadd.f32 %v783, %v1391
          %1393 = vmatprep.mubr.bf16.mxu0 %v683
          %1394 = vmatmul.mubr.bf16.gmra.mrb[0].mxu0 %v682
          %v1395 = vpop.f32.mrb[0].mxu0
          %v1396 = vadd.f32 %v779, %v1395
          %v1397 = vpop.f32.mrb[0].mxu0
          %v1398 = vadd.f32 %v783, %v1397
          %v1399 = vpop.f32.mrb[0].mxu0
          %v1400 = vadd.f32 %v779, %v1399
          %v1401 = vpop.f32.mrb[0].mxu0
          %v1402 = vadd.f32 %v783, %v1401
          %1403 = vmatprep.mubr.bf16.mxu0 %v685
          %1404 = vmatmul.mubr.bf16.gmra.mrb[0].mxu0 %v684
          %v1405 = vpop.f32.mrb[0].mxu0
          %v1406 = vadd.f32 %v779, %v1405
          %v1407 = vpop.f32.mrb[0].mxu0
          %v1408 = vadd.f32 %v783, %v1407
          %v1409 = vpop.f32.mrb[0].mxu0
          %v1410 = vadd.f32 %v779, %v1409
          %v1411 = vpop.f32.mrb[0].mxu0
          %v1412 = vadd.f32 %v783, %v1411
          %1413 = vmatprep.mubr.bf16.mxu0 %v687
          %1414 = vmatmul.mubr.bf16.gmra.mrb[0].mxu0 %v686
          %v1415 = vpop.f32.mrb[0].mxu0
          %v1416 = vadd.f32 %v779, %v1415
          %v1417 = vpop.f32.mrb[0].mxu0
          %v1418 = vadd.f32 %v783, %v1417
          %v1419 = vpop.f32.mrb[0].mxu0
          %v1420 = vadd.f32 %v779, %v1419
          %v1421 = vpop.f32.mrb[0].mxu0
          %v1422 = vadd.f32 %v783, %v1421
          %1423 = vmatprep.mubr.bf16.mxu0 %v689
          %1424 = vmatmul.mubr.bf16.gmra.mrb[0].mxu0 %v688
          %v1425 = vpop.f32.mrb[0].mxu0
          %v1426 = vadd.f32 %v779, %v1425
          %v1427 = vpop.f32.mrb[0].mxu0
          %v1428 = vadd.f32 %v783, %v1427
          %v1429 = vpop.f32.mrb[0].mxu0
          %v1430 = vadd.f32 %v779, %v1429
          %v1431 = vpop.f32.mrb[0].mxu0
          %v1432 = vadd.f32 %v783, %v1431
          %1433 = vmatprep.mubr.bf16.mxu0 %v691
          %1434 = vmatmul.mubr.bf16.gmra.mrb[0].mxu0 %v690
          %v1435 = vpop.f32.mrb[0].mxu0
          %v1436 = vadd.f32 %v779, %v1435
          %v1437 = vpop.f32.mrb[0].mxu0
          %v1438 = vadd.f32 %v783, %v1437
          %v1439 = vpop.f32.mrb[0].mxu0
          %v1440 = vadd.f32 %v779, %v1439
          %v1441 = vpop.f32.mrb[0].mxu0
          %v1442 = vadd.f32 %v783, %v1441
          %1443 = vmatprep.mubr.bf16.mxu0 %v693
          %1444 = vmatmul.mubr.bf16.gmra.mrb[0].mxu0 %v692
          %v1445 = vpop.f32.mrb[0].mxu0
          %v1446 = vadd.f32 %v779, %v1445
          %v1447 = vpop.f32.mrb[0].mxu0
          %v1448 = vadd.f32 %v783, %v1447
          %v1449 = vpop.f32.mrb[0].mxu0
          %v1450 = vadd.f32 %v779, %v1449
          %v1451 = vpop.f32.mrb[0].mxu0
          %v1452 = vadd.f32 %v783, %v1451
          %1453 = vmatprep.mubr.bf16.mxu0 %v695
          %1454 = vmatmul.mubr.bf16.gmra.mrb[0].mxu0 %v694
          %v1455 = vpop.f32.mrb[0].mxu0
          %v1456 = vadd.f32 %v779, %v1455
          %v1457 = vpop.f32.mrb[0].mxu0
          %v1458 = vadd.f32 %v783, %v1457
          %v1459 = vpop.f32.mrb[0].mxu0
          %v1460 = vadd.f32 %v779, %v1459
          %v1461 = vpop.f32.mrb[0].mxu0
          %v1462 = vadd.f32 %v783, %v1461
          %1463 = vmatprep.mubr.bf16.mxu0 %v697
          %1464 = vmatmul.mubr.bf16.gmra.mrb[0].mxu0 %v696
          %v1465 = vpop.f32.mrb[0].mxu0
          %v1466 = vadd.f32 %v779, %v1465
          %v1467 = vpop.f32.mrb[0].mxu0
          %v1468 = vadd.f32 %v783, %v1467
          %v1469 = vpop.f32.mrb[0].mxu0
          %v1470 = vadd.f32 %v779, %v1469
          %v1471 = vpop.f32.mrb[0].mxu0
          %v1472 = vadd.f32 %v783, %v1471
          %1473 = vmatprep.mubr.bf16.mxu0 %v699
          %1474 = vmatmul.mubr.bf16.gmra.mrb[0].mxu0 %v698
          %v1475 = vpop.f32.mrb[0].mxu0
          %v1476 = vadd.f32 %v779, %v1475
          %v1477 = vpop.f32.mrb[0].mxu0
          %v1478 = vadd.f32 %v783, %v1477
          %v1479 = vpop.f32.mrb[0].mxu0
          %v1480 = vadd.f32 %v779, %v1479
          %v1481 = vpop.f32.mrb[0].mxu0
          %v1482 = vadd.f32 %v783, %v1481
          %1483 = vmatprep.mubr.bf16.mxu0 %v701
          %1484 = vmatmul.mubr.bf16.gmra.mrb[0].mxu0 %v700
          %v1485 = vpop.f32.mrb[0].mxu0
          %v1486 = vadd.f32 %v779, %v1485
          %v1487 = vpop.f32.mrb[0].mxu0
          %v1488 = vadd.f32 %v783, %v1487
          %v1489 = vpop.f32.mrb[0].mxu0
          %v1490 = vadd.f32 %v779, %v1489
          %v1491 = vpop.f32.mrb[0].mxu0
          %v1492 = vadd.f32 %v783, %v1491
          %1493 = vdwg.mxu0
          %1494 = vxpose.xlu0.b32.start [1/16] %v1143, 128
          %1495 = vxpose.xlu0.b32.cont [2/16] %v1147, 128
          %1496 = vxpose.xlu0.b32.cont [3/16] %v1153, 128
          %1497 = vxpose.xlu0.b32.cont [4/16] %v1157, 128
          %1498 = vxpose.xlu0.b32.cont [5/16] %v1163, 128
          %1499 = vxpose.xlu0.b32.cont [6/16] %v1167, 128
          %1500 = vxpose.xlu0.b32.cont [7/16] %v1173, 128
          %1501 = vxpose.xlu0.b32.cont [8/16] %v1177, 128
          %1502 = vxpose.xlu0.b32.cont [9/16] %v1183, 128
          %1503 = vxpose.xlu0.b32.cont [10/16] %v1187, 128
          %1504 = vxpose.xlu0.b32.cont [11/16] %v1193, 128
          %1505 = vxpose.xlu0.b32.cont [12/16] %v1197, 128
          %1506 = vxpose.xlu0.b32.cont [13/16] %v1203, 128
          %1507 = vxpose.xlu0.b32.cont [14/16] %v1207, 128
          %1508 = vxpose.xlu0.b32.cont [15/16] %v1213, 128
          %1509 = vxpose.xlu0.b32.end [16/16] %v1217, 128
          %v1510 = vpop.trf.xlu0
          %v1511 = vpop.trf.xlu0
          %v1512 = vpop.trf.xlu0
          %v1513 = vpop.trf.xlu0
          %v1514 = vpop.trf.xlu0
          %v1515 = vpop.trf.xlu0
          %v1516 = vpop.trf.xlu0
          %v1517 = vpop.trf.xlu0
          %v1518 = vpop.trf.xlu0
          %v1519 = vpop.trf.xlu0
          %v1520 = vpop.trf.xlu0
          %v1521 = vpop.trf.xlu0
          %v1522 = vpop.trf.xlu0
          %v1523 = vpop.trf.xlu0
          %v1524 = vpop.trf.xlu0
          %v1525 = vpop.trf.xlu0
          %1526 = vxpose.xlu0.b32.start [1/16] %v1145, 128
          %1527 = vxpose.xlu0.b32.cont [2/16] %v1149, 128
          %1528 = vxpose.xlu0.b32.cont [3/16] %v1155, 128
          %1529 = vxpose.xlu0.b32.cont [4/16] %v1159, 128
          %1530 = vxpose.xlu0.b32.cont [5/16] %v1165, 128
          %1531 = vxpose.xlu0.b32.cont [6/16] %v1169, 128
          %1532 = vxpose.xlu0.b32.cont [7/16] %v1175, 128
          %1533 = vxpose.xlu0.b32.cont [8/16] %v1179, 128
          %1534 = vxpose.xlu0.b32.cont [9/16] %v1185, 128
          %1535 = vxpose.xlu0.b32.cont [10/16] %v1189, 128
          %1536 = vxpose.xlu0.b32.cont [11/16] %v1195, 128
          %1537 = vxpose.xlu0.b32.cont [12/16] %v1199, 128
          %1538 = vxpose.xlu0.b32.cont [13/16] %v1205, 128
          %1539 = vxpose.xlu0.b32.cont [14/16] %v1209, 128
          %1540 = vxpose.xlu0.b32.cont [15/16] %v1215, 128
          %1541 = vxpose.xlu0.b32.end [16/16] %v1219, 128
          %v1542 = vpop.trf.xlu0
          %v1543 = vpop.trf.xlu0
          %v1544 = vpop.trf.xlu0
          %v1545 = vpop.trf.xlu0
          %v1546 = vpop.trf.xlu0
          %v1547 = vpop.trf.xlu0
          %v1548 = vpop.trf.xlu0
          %v1549 = vpop.trf.xlu0
          %v1550 = vpop.trf.xlu0
          %v1551 = vpop.trf.xlu0
          %v1552 = vpop.trf.xlu0
          %v1553 = vpop.trf.xlu0
          %v1554 = vpop.trf.xlu0
          %v1555 = vpop.trf.xlu0
          %v1556 = vpop.trf.xlu0
          %v1557 = vpop.trf.xlu0
          %1558 = vxpose.xlu0.b32.start [1/16] %v1223, 128
          %1559 = vxpose.xlu0.b32.cont [2/16] %v1227, 128
          %1560 = vxpose.xlu0.b32.cont [3/16] %v1233, 128
          %1561 = vxpose.xlu0.b32.cont [4/16] %v1237, 128
          %1562 = vxpose.xlu0.b32.cont [5/16] %v1243, 128
          %1563 = vxpose.xlu0.b32.cont [6/16] %v1247, 128
          %1564 = vxpose.xlu0.b32.cont [7/16] %v1253, 128
          %1565 = vxpose.xlu0.b32.cont [8/16] %v1257, 128
          %1566 = vxpose.xlu0.b32.cont [9/16] %v1263, 128
          %1567 = vxpose.xlu0.b32.cont [10/16] %v1267, 128
          %1568 = vxpose.xlu0.b32.cont [11/16] %v1273, 128
          %1569 = vxpose.xlu0.b32.cont [12/16] %v1277, 128
          %1570 = vxpose.xlu0.b32.cont [13/16] %v1283, 128
          %1571 = vxpose.xlu0.b32.cont [14/16] %v1287, 128
          %1572 = vxpose.xlu0.b32.cont [15/16] %v1293, 128
          %1573 = vxpose.xlu0.b32.end [16/16] %v1297, 128
          %v1574 = vpop.trf.xlu0
          %v1575 = vpop.trf.xlu0
          %v1576 = vpop.trf.xlu0
          %v1577 = vpop.trf.xlu0
          %v1578 = vpop.trf.xlu0
          %v1579 = vpop.trf.xlu0
          %v1580 = vpop.trf.xlu0
          %v1581 = vpop.trf.xlu0
          %v1582 = vpop.trf.xlu0
          %v1583 = vpop.trf.xlu0
          %v1584 = vpop.trf.xlu0
          %v1585 = vpop.trf.xlu0
          %v1586 = vpop.trf.xlu0
          %v1587 = vpop.trf.xlu0
          %v1588 = vpop.trf.xlu0
          %v1589 = vpop.trf.xlu0
          %1590 = vxpose.xlu0.b32.start [1/16] %v1225, 128
          %1591 = vxpose.xlu0.b32.cont [2/16] %v1229, 128
          %1592 = vxpose.xlu0.b32.cont [3/16] %v1235, 128
          %1593 = vxpose.xlu0.b32.cont [4/16] %v1239, 128
          %1594 = vxpose.xlu0.b32.cont [5/16] %v1245, 128
          %1595 = vxpose.xlu0.b32.cont [6/16] %v1249, 128
          %1596 = vxpose.xlu0.b32.cont [7/16] %v1255, 128
          %1597 = vxpose.xlu0.b32.cont [8/16] %v1259, 128
          %1598 = vxpose.xlu0.b32.cont [9/16] %v1265, 128
          %1599 = vxpose.xlu0.b32.cont [10/16] %v1269, 128
          %1600 = vxpose.xlu0.b32.cont [11/16] %v1275, 128
          %1601 = vxpose.xlu0.b32.cont [12/16] %v1279, 128
          %1602 = vxpose.xlu0.b32.cont [13/16] %v1285, 128
          %1603 = vxpose.xlu0.b32.cont [14/16] %v1289, 128
          %1604 = vxpose.xlu0.b32.cont [15/16] %v1295, 128
          %1605 = vxpose.xlu0.b32.end [16/16] %v1299, 128
          %v1606 = vpop.trf.xlu0
          %v1607 = vpop.trf.xlu0
          %v1608 = vpop.trf.xlu0
          %v1609 = vpop.trf.xlu0
          %v1610 = vpop.trf.xlu0
          %v1611 = vpop.trf.xlu0
          %v1612 = vpop.trf.xlu0
          %v1613 = vpop.trf.xlu0
          %v1614 = vpop.trf.xlu0
          %v1615 = vpop.trf.xlu0
          %v1616 = vpop.trf.xlu0
          %v1617 = vpop.trf.xlu0
          %v1618 = vpop.trf.xlu0
          %v1619 = vpop.trf.xlu0
          %v1620 = vpop.trf.xlu0
          %v1621 = vpop.trf.xlu0
          %v1622 = vpack.c.bf16 %v1511, %v1510
          %v1623 = vpack.c.bf16 %v1575, %v1574
          %v1624 = vpack.c.bf16 %v1513, %v1512
          %v1625 = vpack.c.bf16 %v1577, %v1576
          %v1626 = vpack.c.bf16 %v1515, %v1514
          %v1627 = vpack.c.bf16 %v1579, %v1578
          %v1628 = vpack.c.bf16 %v1517, %v1516
          %v1629 = vpack.c.bf16 %v1581, %v1580
          %v1630 = vpack.c.bf16 %v1519, %v1518
          %v1631 = vpack.c.bf16 %v1583, %v1582
          %v1632 = vpack.c.bf16 %v1521, %v1520
          %v1633 = vpack.c.bf16 %v1585, %v1584
          %v1634 = vpack.c.bf16 %v1523, %v1522
          %v1635 = vpack.c.bf16 %v1587, %v1586
          %v1636 = vpack.c.bf16 %v1525, %v1524
          %v1637 = vpack.c.bf16 %v1589, %v1588
          %v1638 = vpack.c.bf16 %v1543, %v1542
          %v1639 = vpack.c.bf16 %v1607, %v1606
          %v1640 = vpack.c.bf16 %v1545, %v1544
          %v1641 = vpack.c.bf16 %v1609, %v1608
          %v1642 = vpack.c.bf16 %v1547, %v1546
          %v1643 = vpack.c.bf16 %v1611, %v1610
          %v1644 = vpack.c.bf16 %v1549, %v1548
          %v1645 = vpack.c.bf16 %v1613, %v1612
          %v1646 = vpack.c.bf16 %v1551, %v1550
          %v1647 = vpack.c.bf16 %v1615, %v1614
          %v1648 = vpack.c.bf16 %v1553, %v1552
          %v1649 = vpack.c.bf16 %v1617, %v1616
          %v1650 = vpack.c.bf16 %v1555, %v1554
          %v1651 = vpack.c.bf16 %v1619, %v1618
          %v1652 = vpack.c.bf16 %v1557, %v1556
          %v1653 = vpack.c.bf16 %v1621, %v1620
          %1654 = vst [vmem:[#allocation2] sm:$0xff] %v1622
          %1655 = vst [vmem:[#allocation2 + $0x8] sm:$0xff] %v1623
          %1656 = vst [vmem:[#allocation2 + $0x10] sm:$0xff] %v1624
          %1657 = vst [vmem:[#allocation2 + $0x18] sm:$0xff] %v1625
          %1658 = vst [vmem:[#allocation2 + $0x20] sm:$0xff] %v1626
          %1659 = vst [vmem:[#allocation2 + $0x28] sm:$0xff] %v1627
          %1660 = vst [vmem:[#allocation2 + $0x30] sm:$0xff] %v1628
          %1661 = vst [vmem:[#allocation2 + $0x38] sm:$0xff] %v1629
          %1662 = vst [vmem:[#allocation2 + $0x40] sm:$0xff] %v1630
          %1663 = vst [vmem:[#allocation2 + $0x48] sm:$0xff] %v1631
          %1664 = vst [vmem:[#allocation2 + $0x50] sm:$0xff] %v1632
          %1665 = vst [vmem:[#allocation2 + $0x58] sm:$0xff] %v1633
          %1666 = vst [vmem:[#allocation2 + $0x60] sm:$0xff] %v1634
          %1667 = vst [vmem:[#allocation2 + $0x68] sm:$0xff] %v1635
          %1668 = vst [vmem:[#allocation2 + $0x70] sm:$0xff] %v1636
          %1669 = vst [vmem:[#allocation2 + $0x78] sm:$0xff] %v1637
          %1670 = vst [vmem:[#allocation2 + $0x80] sm:$0xff] %v1638
          %1671 = vst [vmem:[#allocation2 + $0x88] sm:$0xff] %v1639
          %1672 = vst [vmem:[#allocation2 + $0x90] sm:$0xff] %v1640
          %1673 = vst [vmem:[#allocation2 + $0x98] sm:$0xff] %v1641
          %1674 = vst [vmem:[#allocation2 + $0xa0] sm:$0xff] %v1642
          %1675 = vst [vmem:[#allocation2 + $0xa8] sm:$0xff] %v1643
          %1676 = vst [vmem:[#allocation2 + $0xb0] sm:$0xff] %v1644
          %1677 = vst [vmem:[#allocation2 + $0xb8] sm:$0xff] %v1645
          %1678 = vst [vmem:[#allocation2 + $0xc0] sm:$0xff] %v1646
          %1679 = vst [vmem:[#allocation2 + $0xc8] sm:$0xff] %v1647
          %1680 = vst [vmem:[#allocation2 + $0xd0] sm:$0xff] %v1648
          %1681 = vst [vmem:[#allocation2 + $0xd8] sm:$0xff] %v1649
          %1682 = vst [vmem:[#allocation2 + $0xe0] sm:$0xff] %v1650
          %1683 = vst [vmem:[#allocation2 + $0xe8] sm:$0xff] %v1651
          %1684 = vst [vmem:[#allocation2 + $0xf0] sm:$0xff] %v1652
          %1685 = vst [vmem:[#allocation2 + $0xf8] sm:$0xff] %v1653
          %v1686 = vpack.c.bf16 %v1340, %v1336
          %v1687 = vpack.c.bf16 %v1342, %v1338
          %v1688 = vpack.c.bf16 %v1350, %v1346
          %v1689 = vpack.c.bf16 %v1352, %v1348
          %v1690 = vpack.c.bf16 %v1360, %v1356
          %v1691 = vpack.c.bf16 %v1362, %v1358
          %v1692 = vpack.c.bf16 %v1370, %v1366
          %v1693 = vpack.c.bf16 %v1372, %v1368
          %v1694 = vpack.c.bf16 %v1380, %v1376
          %v1695 = vpack.c.bf16 %v1382, %v1378
          %v1696 = vpack.c.bf16 %v1390, %v1386
          %v1697 = vpack.c.bf16 %v1392, %v1388
          %v1698 = vpack.c.bf16 %v1400, %v1396
          %v1699 = vpack.c.bf16 %v1402, %v1398
          %v1700 = vpack.c.bf16 %v1410, %v1406
          %v1701 = vpack.c.bf16 %v1412, %v1408
          %v1702 = vpack.c.bf16 %v1420, %v1416
          %v1703 = vpack.c.bf16 %v1422, %v1418
          %v1704 = vpack.c.bf16 %v1430, %v1426
          %v1705 = vpack.c.bf16 %v1432, %v1428
          %v1706 = vpack.c.bf16 %v1440, %v1436
          %v1707 = vpack.c.bf16 %v1442, %v1438
          %v1708 = vpack.c.bf16 %v1450, %v1446
          %v1709 = vpack.c.bf16 %v1452, %v1448
          %v1710 = vpack.c.bf16 %v1460, %v1456
          %v1711 = vpack.c.bf16 %v1462, %v1458
          %v1712 = vpack.c.bf16 %v1470, %v1466
          %v1713 = vpack.c.bf16 %v1472, %v1468
          %v1714 = vpack.c.bf16 %v1480, %v1476
          %v1715 = vpack.c.bf16 %v1482, %v1478
          %v1716 = vpack.c.bf16 %v1490, %v1486
          %v1717 = vpack.c.bf16 %v1492, %v1488
          %1718 = vst [vmem:[#allocation3] sm:$0xff] %v1686
          %1719 = vst [vmem:[#allocation3 + $0x8] sm:$0xff] %v1687
          %1720 = vst [vmem:[#allocation3 + $0x10] sm:$0xff] %v1688
          %1721 = vst [vmem:[#allocation3 + $0x18] sm:$0xff] %v1689
          %1722 = vst [vmem:[#allocation3 + $0x20] sm:$0xff] %v1690
          %1723 = vst [vmem:[#allocation3 + $0x28] sm:$0xff] %v1691
          %1724 = vst [vmem:[#allocation3 + $0x30] sm:$0xff] %v1692
          %1725 = vst [vmem:[#allocation3 + $0x38] sm:$0xff] %v1693
          %1726 = vst [vmem:[#allocation3 + $0x40] sm:$0xff] %v1694
          %1727 = vst [vmem:[#allocation3 + $0x48] sm:$0xff] %v1695
          %1728 = vst [vmem:[#allocation3 + $0x50] sm:$0xff] %v1696
          %1729 = vst [vmem:[#allocation3 + $0x58] sm:$0xff] %v1697
          %1730 = vst [vmem:[#allocation3 + $0x60] sm:$0xff] %v1698
          %1731 = vst [vmem:[#allocation3 + $0x68] sm:$0xff] %v1699
          %1732 = vst [vmem:[#allocation3 + $0x70] sm:$0xff] %v1700
          %1733 = vst [vmem:[#allocation3 + $0x78] sm:$0xff] %v1701
          %1734 = vst [vmem:[#allocation3 + $0x80] sm:$0xff] %v1702
          %1735 = vst [vmem:[#allocation3 + $0x88] sm:$0xff] %v1703
          %1736 = vst [vmem:[#allocation3 + $0x90] sm:$0xff] %v1704
          %1737 = vst [vmem:[#allocation3 + $0x98] sm:$0xff] %v1705
          %1738 = vst [vmem:[#allocation3 + $0xa0] sm:$0xff] %v1706
          %1739 = vst [vmem:[#allocation3 + $0xa8] sm:$0xff] %v1707
          %1740 = vst [vmem:[#allocation3 + $0xb0] sm:$0xff] %v1708
          %1741 = vst [vmem:[#allocation3 + $0xb8] sm:$0xff] %v1709
          %1742 = vst [vmem:[#allocation3 + $0xc0] sm:$0xff] %v1710
          %1743 = vst [vmem:[#allocation3 + $0xc8] sm:$0xff] %v1711
          %1744 = vst [vmem:[#allocation3 + $0xd0] sm:$0xff] %v1712
          %1745 = vst [vmem:[#allocation3 + $0xd8] sm:$0xff] %v1713
          %1746 = vst [vmem:[#allocation3 + $0xe0] sm:$0xff] %v1714
          %1747 = vst [vmem:[#allocation3 + $0xe8] sm:$0xff] %v1715
          %1748 = vst [vmem:[#allocation3 + $0xf0] sm:$0xff] %v1716
          %1749 = vst [vmem:[#allocation3 + $0xf8] sm:$0xff] %v1717
        $region108: #{tpu_custom_call.1} parent=79 // pred_fallthru
          _
        %s1750 = smul.u32 %s40, 128
        %s1751 = sshra.s32 %s1750, 3
        %s1752 = sand.u32 %s1750, 7
        %s1753 = smul.u32 %s1751, 2
        %s1754 = smul.addr %s1753, 8
        %s1755 = scalar_lea.vmem %s533, %s1754 [#allocation5]
        %v1756 = vld [vmem:[%s1755] sm:$0xff]
        %v1757 = vld [vmem:[%s1755 + $0x8] sm:$0xff]
        %v1758 = vld [vmem:[%s1755 + $0x10] sm:$0xff]
        %v1759 = vld [vmem:[%s1755 + $0x18] sm:$0xff]
        %v1760 = vld [vmem:[%s1755 + $0x20] sm:$0xff]
        %v1761 = vld [vmem:[%s1755 + $0x28] sm:$0xff]
        %v1762 = vld [vmem:[%s1755 + $0x30] sm:$0xff]
        %v1763 = vld [vmem:[%s1755 + $0x38] sm:$0xff]
        %v1764 = vld [vmem:[%s1755 + $0x40] sm:$0xff]
        %v1765 = vld [vmem:[%s1755 + $0x48] sm:$0xff]
        %v1766 = vld [vmem:[%s1755 + $0x50] sm:$0xff]
        %v1767 = vld [vmem:[%s1755 + $0x58] sm:$0xff]
        %v1768 = vld [vmem:[%s1755 + $0x60] sm:$0xff]
        %v1769 = vld [vmem:[%s1755 + $0x68] sm:$0xff]
        %v1770 = vld [vmem:[%s1755 + $0x70] sm:$0xff]
        %v1771 = vld [vmem:[%s1755 + $0x78] sm:$0xff]
        %v1772 = vld [vmem:[%s1755 + $0x80] sm:$0xff]
        %v1773 = vld [vmem:[%s1755 + $0x88] sm:$0xff]
        %v1774 = vld [vmem:[%s1755 + $0x90] sm:$0xff]
        %v1775 = vld [vmem:[%s1755 + $0x98] sm:$0xff]
        %v1776 = vld [vmem:[%s1755 + $0xa0] sm:$0xff]
        %v1777 = vld [vmem:[%s1755 + $0xa8] sm:$0xff]
        %v1778 = vld [vmem:[%s1755 + $0xb0] sm:$0xff]
        %v1779 = vld [vmem:[%s1755 + $0xb8] sm:$0xff]
        %v1780 = vld [vmem:[%s1755 + $0xc0] sm:$0xff]
        %v1781 = vld [vmem:[%s1755 + $0xc8] sm:$0xff]
        %v1782 = vld [vmem:[%s1755 + $0xd0] sm:$0xff]
        %v1783 = vld [vmem:[%s1755 + $0xd8] sm:$0xff]
        %v1784 = vld [vmem:[%s1755 + $0xe0] sm:$0xff]
        %v1785 = vld [vmem:[%s1755 + $0xe8] sm:$0xff]
        %v1786 = vld [vmem:[%s1755 + $0xf0] sm:$0xff]
        %v1787 = vld [vmem:[%s1755 + $0xf8] sm:$0xff]
        %v1788 = vpack.c.bf16 %v1758, %v1756
        %v1789 = vpack.c.bf16 %v1759, %v1757
        %v1790 = vpack.c.bf16 %v1762, %v1760
        %v1791 = vpack.c.bf16 %v1763, %v1761
        %v1792 = vpack.c.bf16 %v1766, %v1764
        %v1793 = vpack.c.bf16 %v1767, %v1765
        %v1794 = vpack.c.bf16 %v1770, %v1768
        %v1795 = vpack.c.bf16 %v1771, %v1769
        %v1796 = vpack.c.bf16 %v1774, %v1772
        %v1797 = vpack.c.bf16 %v1775, %v1773
        %v1798 = vpack.c.bf16 %v1778, %v1776
        %v1799 = vpack.c.bf16 %v1779, %v1777
        %v1800 = vpack.c.bf16 %v1782, %v1780
        %v1801 = vpack.c.bf16 %v1783, %v1781
        %v1802 = vpack.c.bf16 %v1786, %v1784
        %v1803 = vpack.c.bf16 %v1787, %v1785
        %v1804 = vld [vmem:[#allocation8] sm:$0xff]
        %v1805 = vld [vmem:[#allocation8 + $0x8] sm:$0xff]
        %v1806 = vld [vmem:[#allocation8 + $0x10] sm:$0xff]
        %v1807 = vld [vmem:[#allocation8 + $0x18] sm:$0xff]
        %v1808 = vld [vmem:[#allocation8 + $0x20] sm:$0xff]
        %v1809 = vld [vmem:[#allocation8 + $0x28] sm:$0xff]
        %v1810 = vld [vmem:[#allocation8 + $0x30] sm:$0xff]
        %v1811 = vld [vmem:[#allocation8 + $0x38] sm:$0xff]
        %v1812 = vld [vmem:[#allocation8 + $0x40] sm:$0xff]
        %v1813 = vld [vmem:[#allocation8 + $0x48] sm:$0xff]
        %v1814 = vld [vmem:[#allocation8 + $0x50] sm:$0xff]
        %v1815 = vld [vmem:[#allocation8 + $0x58] sm:$0xff]
        %v1816 = vld [vmem:[#allocation8 + $0x60] sm:$0xff]
        %v1817 = vld [vmem:[#allocation8 + $0x68] sm:$0xff]
        %v1818 = vld [vmem:[#allocation8 + $0x70] sm:$0xff]
        %v1819 = vld [vmem:[#allocation8 + $0x78] sm:$0xff]
        %v1820 = vld [vmem:[#allocation8 + $0x80] sm:$0xff]
        %v1821 = vld [vmem:[#allocation8 + $0x88] sm:$0xff]
        %v1822 = vld [vmem:[#allocation8 + $0x90] sm:$0xff]
        %v1823 = vld [vmem:[#allocation8 + $0x98] sm:$0xff]
        %v1824 = vld [vmem:[#allocation8 + $0xa0] sm:$0xff]
        %v1825 = vld [vmem:[#allocation8 + $0xa8] sm:$0xff]
        %v1826 = vld [vmem:[#allocation8 + $0xb0] sm:$0xff]
        %v1827 = vld [vmem:[#allocation8 + $0xb8] sm:$0xff]
        %v1828 = vld [vmem:[#allocation8 + $0xc0] sm:$0xff]
        %v1829 = vld [vmem:[#allocation8 + $0xc8] sm:$0xff]
        %v1830 = vld [vmem:[#allocation8 + $0xd0] sm:$0xff]
        %v1831 = vld [vmem:[#allocation8 + $0xd8] sm:$0xff]
        %v1832 = vld [vmem:[#allocation8 + $0xe0] sm:$0xff]
        %v1833 = vld [vmem:[#allocation8 + $0xe8] sm:$0xff]
        %v1834 = vld [vmem:[#allocation8 + $0xf0] sm:$0xff]
        %v1835 = vld [vmem:[#allocation8 + $0xf8] sm:$0xff]
        %v1836 = vld [vmem:[%s2] sm:$0x3]
        %v1838 = vlaneseq
        %v1839 = vshrl.u32 %v1838, 7
        %v1840 = vsub.s32 0, %v1839
        %v1841 = vrot.slane %v1836, %v1840
        %v1842 = vlaneseq
        %v1843 = vshrl.u32 %v1842, 7
        %v1844 = vsub.s32 1, %v1843
        %v1845 = vrot.slane %v1836, %v1844
        %v1880 = vunpack.c.l.b16 %v1804
        %v1881 = vunpack.c.h.b16 %v1804
        %v1882 = vunpack.c.l.b16 %v1805
        %v1883 = vunpack.c.h.b16 %v1805
        %v1884 = vunpack.c.l.b16 %v1806
        %v1885 = vunpack.c.h.b16 %v1806
        %v1886 = vunpack.c.l.b16 %v1807
        %v1887 = vunpack.c.h.b16 %v1807
        %v1888 = vunpack.c.l.b16 %v1808
        %v1889 = vunpack.c.h.b16 %v1808
        %v1890 = vunpack.c.l.b16 %v1809
        %v1891 = vunpack.c.h.b16 %v1809
        %v1892 = vunpack.c.l.b16 %v1810
        %v1893 = vunpack.c.h.b16 %v1810
        %v1894 = vunpack.c.l.b16 %v1811
        %v1895 = vunpack.c.h.b16 %v1811
        %v1896 = vunpack.c.l.b16 %v1812
        %v1897 = vunpack.c.h.b16 %v1812
        %v1898 = vunpack.c.l.b16 %v1813
        %v1899 = vunpack.c.h.b16 %v1813
        %v1900 = vunpack.c.l.b16 %v1814
        %v1901 = vunpack.c.h.b16 %v1814
        %v1902 = vunpack.c.l.b16 %v1815
        %v1903 = vunpack.c.h.b16 %v1815
        %v1904 = vunpack.c.l.b16 %v1816
        %v1905 = vunpack.c.h.b16 %v1816
        %v1906 = vunpack.c.l.b16 %v1817
        %v1907 = vunpack.c.h.b16 %v1817
        %v1908 = vunpack.c.l.b16 %v1818
        %v1909 = vunpack.c.h.b16 %v1818
        %v1910 = vunpack.c.l.b16 %v1819
        %v1911 = vunpack.c.h.b16 %v1819
        %v1912 = vunpack.c.l.b16 %v1820
        %v1913 = vunpack.c.h.b16 %v1820
        %v1914 = vunpack.c.l.b16 %v1821
        %v1915 = vunpack.c.h.b16 %v1821
        %v1916 = vunpack.c.l.b16 %v1822
        %v1917 = vunpack.c.h.b16 %v1822
        %v1918 = vunpack.c.l.b16 %v1823
        %v1919 = vunpack.c.h.b16 %v1823
        %v1920 = vunpack.c.l.b16 %v1824
        %v1921 = vunpack.c.h.b16 %v1824
        %v1922 = vunpack.c.l.b16 %v1825
        %v1923 = vunpack.c.h.b16 %v1825
        %v1924 = vunpack.c.l.b16 %v1826
        %v1925 = vunpack.c.h.b16 %v1826
        %v1926 = vunpack.c.l.b16 %v1827
        %v1927 = vunpack.c.h.b16 %v1827
        %v1928 = vunpack.c.l.b16 %v1828
        %v1929 = vunpack.c.h.b16 %v1828
        %v1930 = vunpack.c.l.b16 %v1829
        %v1931 = vunpack.c.h.b16 %v1829
        %v1932 = vunpack.c.l.b16 %v1830
        %v1933 = vunpack.c.h.b16 %v1830
        %v1934 = vunpack.c.l.b16 %v1831
        %v1935 = vunpack.c.h.b16 %v1831
        %v1936 = vunpack.c.l.b16 %v1832
        %v1937 = vunpack.c.h.b16 %v1832
        %v1938 = vunpack.c.l.b16 %v1833
        %v1939 = vunpack.c.h.b16 %v1833
        %v1940 = vunpack.c.l.b16 %v1834
        %v1941 = vunpack.c.h.b16 %v1834
        %v1942 = vunpack.c.l.b16 %v1835
        %v1943 = vunpack.c.h.b16 %v1835
        %v1944 = vpack.c.b16 %v1882, %v1880
        %v1945 = vpack.c.b16 %v1883, %v1881
        %v1946 = vpack.c.b16 %v1886, %v1884
        %v1947 = vpack.c.b16 %v1887, %v1885
        %v1948 = vpack.c.b16 %v1890, %v1888
        %v1949 = vpack.c.b16 %v1891, %v1889
        %v1950 = vpack.c.b16 %v1894, %v1892
        %v1951 = vpack.c.b16 %v1895, %v1893
        %v1952 = vpack.c.b16 %v1898, %v1896
        %v1953 = vpack.c.b16 %v1899, %v1897
        %v1954 = vpack.c.b16 %v1902, %v1900
        %v1955 = vpack.c.b16 %v1903, %v1901
        %v1956 = vpack.c.b16 %v1906, %v1904
        %v1957 = vpack.c.b16 %v1907, %v1905
        %v1958 = vpack.c.b16 %v1910, %v1908
        %v1959 = vpack.c.b16 %v1911, %v1909
        %v1960 = vpack.c.b16 %v1914, %v1912
        %v1961 = vpack.c.b16 %v1915, %v1913
        %v1962 = vpack.c.b16 %v1918, %v1916
        %v1963 = vpack.c.b16 %v1919, %v1917
        %v1964 = vpack.c.b16 %v1922, %v1920
        %v1965 = vpack.c.b16 %v1923, %v1921
        %v1966 = vpack.c.b16 %v1926, %v1924
        %v1967 = vpack.c.b16 %v1927, %v1925
        %v1968 = vpack.c.b16 %v1930, %v1928
        %v1969 = vpack.c.b16 %v1931, %v1929
        %v1970 = vpack.c.b16 %v1934, %v1932
        %v1971 = vpack.c.b16 %v1935, %v1933
        %v1972 = vpack.c.b16 %v1938, %v1936
        %v1973 = vpack.c.b16 %v1939, %v1937
        %v1974 = vpack.c.b16 %v1942, %v1940
        %v1975 = vpack.c.b16 %v1943, %v1941
        %2008 = vmatprep.subr.bf16.mxu0 %v1945
        %2009 = vmatpush1.bf16.msra.mxu0 %v1944
        %2010 = vmatprep.subr.bf16.mxu0 %v1947
        %2011 = vmatpush1.bf16.msra.mxu0 %v1946
        %2012 = vmatprep.subr.bf16.mxu0 %v1949
        %2013 = vmatpush1.bf16.msra.mxu0 %v1948
        %2014 = vmatprep.subr.bf16.mxu0 %v1951
        %2015 = vmatpush1.bf16.msra.mxu0 %v1950
        %2016 = vmatprep.subr.bf16.mxu0 %v1953
        %2017 = vmatpush1.bf16.msra.mxu0 %v1952
        %2018 = vmatprep.subr.bf16.mxu0 %v1955
        %2019 = vmatpush1.bf16.msra.mxu0 %v1954
        %2020 = vmatprep.subr.bf16.mxu0 %v1957
        %2021 = vmatpush1.bf16.msra.mxu0 %v1956
        %2022 = vmatprep.subr.bf16.mxu0 %v1959
        %2023 = vmatpush1.bf16.msra.mxu0 %v1958
        %2024 = vmatprep.subr.bf16.mxu0 %v1961
        %2025 = vmatpush1.bf16.msra.mxu0 %v1960
        %2026 = vmatprep.subr.bf16.mxu0 %v1963
        %2027 = vmatpush1.bf16.msra.mxu0 %v1962
        %2028 = vmatprep.subr.bf16.mxu0 %v1965
        %2029 = vmatpush1.bf16.msra.mxu0 %v1964
        %2030 = vmatprep.subr.bf16.mxu0 %v1967
        %2031 = vmatpush1.bf16.msra.mxu0 %v1966
        %2032 = vmatprep.subr.bf16.mxu0 %v1969
        %2033 = vmatpush1.bf16.msra.mxu0 %v1968
        %2034 = vmatprep.subr.bf16.mxu0 %v1971
        %2035 = vmatpush1.bf16.msra.mxu0 %v1970
        %2036 = vmatprep.subr.bf16.mxu0 %v1973
        %2037 = vmatpush1.bf16.msra.mxu0 %v1972
        %2038 = vmatprep.subr.bf16.mxu0 %v1975
        %2039 = vmatpush1.bf16.msra.mxu0 %v1974
        %2040 = vmatprep.mubr.bf16.mxu0 %v1789
        %2041 = vmatmul.mubr.bf16.gmra.mrb[0].mxu0 %v1788
        %v2042 = vpop.f32.mrb[0].mxu0
        %v2043 = vadd.f32 %v1841, %v2042
        %v2044 = vpop.f32.mrb[0].mxu0
        %v2045 = vadd.f32 %v1845, %v2044
        %v2046 = vpop.f32.mrb[0].mxu0
        %v2047 = vadd.f32 %v1841, %v2046
        %v2048 = vpop.f32.mrb[0].mxu0
        %v2049 = vadd.f32 %v1845, %v2048
        %2050 = vmatprep.mubr.bf16.mxu0 %v1791
        %2051 = vmatmul.mubr.bf16.gmra.mrb[0].mxu0 %v1790
        %v2052 = vpop.f32.mrb[0].mxu0
        %v2053 = vadd.f32 %v1841, %v2052
        %v2054 = vpop.f32.mrb[0].mxu0
        %v2055 = vadd.f32 %v1845, %v2054
        %v2056 = vpop.f32.mrb[0].mxu0
        %v2057 = vadd.f32 %v1841, %v2056
        %v2058 = vpop.f32.mrb[0].mxu0
        %v2059 = vadd.f32 %v1845, %v2058
        %2060 = vmatprep.mubr.bf16.mxu0 %v1793
        %2061 = vmatmul.mubr.bf16.gmra.mrb[0].mxu0 %v1792
        %v2062 = vpop.f32.mrb[0].mxu0
        %v2063 = vadd.f32 %v1841, %v2062
        %v2064 = vpop.f32.mrb[0].mxu0
        %v2065 = vadd.f32 %v1845, %v2064
        %v2066 = vpop.f32.mrb[0].mxu0
        %v2067 = vadd.f32 %v1841, %v2066
        %v2068 = vpop.f32.mrb[0].mxu0
        %v2069 = vadd.f32 %v1845, %v2068
        %2070 = vmatprep.mubr.bf16.mxu0 %v1795
        %2071 = vmatmul.mubr.bf16.gmra.mrb[0].mxu0 %v1794
        %v2072 = vpop.f32.mrb[0].mxu0
        %v2073 = vadd.f32 %v1841, %v2072
        %v2074 = vpop.f32.mrb[0].mxu0
        %v2075 = vadd.f32 %v1845, %v2074
        %v2076 = vpop.f32.mrb[0].mxu0
        %v2077 = vadd.f32 %v1841, %v2076
        %v2078 = vpop.f32.mrb[0].mxu0
        %v2079 = vadd.f32 %v1845, %v2078
        %2080 = vmatprep.mubr.bf16.mxu0 %v1797
        %2081 = vmatmul.mubr.bf16.gmra.mrb[0].mxu0 %v1796
        %v2082 = vpop.f32.mrb[0].mxu0
        %v2083 = vadd.f32 %v1841, %v2082
        %v2084 = vpop.f32.mrb[0].mxu0
        %v2085 = vadd.f32 %v1845, %v2084
        %v2086 = vpop.f32.mrb[0].mxu0
        %v2087 = vadd.f32 %v1841, %v2086
        %v2088 = vpop.f32.mrb[0].mxu0
        %v2089 = vadd.f32 %v1845, %v2088
        %2090 = vmatprep.mubr.bf16.mxu0 %v1799
        %2091 = vmatmul.mubr.bf16.gmra.mrb[0].mxu0 %v1798
        %v2092 = vpop.f32.mrb[0].mxu0
        %v2093 = vadd.f32 %v1841, %v2092
        %v2094 = vpop.f32.mrb[0].mxu0
        %v2095 = vadd.f32 %v1845, %v2094
        %v2096 = vpop.f32.mrb[0].mxu0
        %v2097 = vadd.f32 %v1841, %v2096
        %v2098 = vpop.f32.mrb[0].mxu0
        %v2099 = vadd.f32 %v1845, %v2098
        %2100 = vmatprep.mubr.bf16.mxu0 %v1801
        %2101 = vmatmul.mubr.bf16.gmra.mrb[0].mxu0 %v1800
        %v2102 = vpop.f32.mrb[0].mxu0
        %v2103 = vadd.f32 %v1841, %v2102
        %v2104 = vpop.f32.mrb[0].mxu0
        %v2105 = vadd.f32 %v1845, %v2104
        %v2106 = vpop.f32.mrb[0].mxu0
        %v2107 = vadd.f32 %v1841, %v2106
        %v2108 = vpop.f32.mrb[0].mxu0
        %v2109 = vadd.f32 %v1845, %v2108
        %2110 = vmatprep.mubr.bf16.mxu0 %v1803
        %2111 = vmatmul.mubr.bf16.gmra.mrb[0].mxu0 %v1802
        %v2112 = vpop.f32.mrb[0].mxu0
        %v2113 = vadd.f32 %v1841, %v2112
        %v2114 = vpop.f32.mrb[0].mxu0
        %v2115 = vadd.f32 %v1845, %v2114
        %v2116 = vpop.f32.mrb[0].mxu0
        %v2117 = vadd.f32 %v1841, %v2116
        %v2118 = vpop.f32.mrb[0].mxu0
        %v2119 = vadd.f32 %v1845, %v2118
        %2120 = vdwg.mxu0
        %v2121 = vpack.c.bf16 %v2047, %v2043
        %v2122 = vpack.c.bf16 %v2049, %v2045
        %v2123 = vpack.c.bf16 %v2057, %v2053
        %v2124 = vpack.c.bf16 %v2059, %v2055
        %v2125 = vpack.c.bf16 %v2067, %v2063
        %v2126 = vpack.c.bf16 %v2069, %v2065
        %v2127 = vpack.c.bf16 %v2077, %v2073
        %v2128 = vpack.c.bf16 %v2079, %v2075
        %v2129 = vpack.c.bf16 %v2087, %v2083
        %v2130 = vpack.c.bf16 %v2089, %v2085
        %v2131 = vpack.c.bf16 %v2097, %v2093
        %v2132 = vpack.c.bf16 %v2099, %v2095
        %v2133 = vpack.c.bf16 %v2107, %v2103
        %v2134 = vpack.c.bf16 %v2109, %v2105
        %v2135 = vpack.c.bf16 %v2117, %v2113
        %v2136 = vpack.c.bf16 %v2119, %v2115
        %v2137 = vld [vmem:[#allocation2] sm:$0xff]
        %v2138 = vld [vmem:[#allocation2 + $0x8] sm:$0xff]
        %v2139 = vld [vmem:[#allocation2 + $0x10] sm:$0xff]
        %v2140 = vld [vmem:[#allocation2 + $0x18] sm:$0xff]
        %v2141 = vld [vmem:[#allocation2 + $0x20] sm:$0xff]
        %v2142 = vld [vmem:[#allocation2 + $0x28] sm:$0xff]
        %v2143 = vld [vmem:[#allocation2 + $0x30] sm:$0xff]
        %v2144 = vld [vmem:[#allocation2 + $0x38] sm:$0xff]
        %v2145 = vld [vmem:[#allocation2 + $0x40] sm:$0xff]
        %v2146 = vld [vmem:[#allocation2 + $0x48] sm:$0xff]
        %v2147 = vld [vmem:[#allocation2 + $0x50] sm:$0xff]
        %v2148 = vld [vmem:[#allocation2 + $0x58] sm:$0xff]
        %v2149 = vld [vmem:[#allocation2 + $0x60] sm:$0xff]
        %v2150 = vld [vmem:[#allocation2 + $0x68] sm:$0xff]
        %v2151 = vld [vmem:[#allocation2 + $0x70] sm:$0xff]
        %v2152 = vld [vmem:[#allocation2 + $0x78] sm:$0xff]
        %v2153 = vld [vmem:[#allocation3] sm:$0xff]
        %v2154 = vld [vmem:[#allocation3 + $0x10] sm:$0xff]
        %v2155 = vld [vmem:[#allocation3 + $0x20] sm:$0xff]
        %v2156 = vld [vmem:[#allocation3 + $0x30] sm:$0xff]
        %v2157 = vld [vmem:[#allocation3 + $0x40] sm:$0xff]
        %v2158 = vld [vmem:[#allocation3 + $0x50] sm:$0xff]
        %v2159 = vld [vmem:[#allocation3 + $0x60] sm:$0xff]
        %v2160 = vld [vmem:[#allocation3 + $0x70] sm:$0xff]
        %v2161 = vld [vmem:[#allocation3 + $0x80] sm:$0xff]
        %v2162 = vld [vmem:[#allocation3 + $0x90] sm:$0xff]
        %v2163 = vld [vmem:[#allocation3 + $0xa0] sm:$0xff]
        %v2164 = vld [vmem:[#allocation3 + $0xb0] sm:$0xff]
        %v2165 = vld [vmem:[#allocation3 + $0xc0] sm:$0xff]
        %v2166 = vld [vmem:[#allocation3 + $0xd0] sm:$0xff]
        %v2167 = vld [vmem:[#allocation3 + $0xe0] sm:$0xff]
        %v2168 = vld [vmem:[#allocation3 + $0xf0] sm:$0xff]
        %2169 = vmatprep.subr.bf16.mxu0 %v2138
        %2170 = vmatpush1.bf16.msra.mxu0 %v2137
        %2171 = vmatprep.subr.bf16.mxu0 %v2140
        %2172 = vmatpush1.bf16.msra.mxu0 %v2139
        %2173 = vmatprep.subr.bf16.mxu0 %v2142
        %2174 = vmatpush1.bf16.msra.mxu0 %v2141
        %2175 = vmatprep.subr.bf16.mxu0 %v2144
        %2176 = vmatpush1.bf16.msra.mxu0 %v2143
        %2177 = vmatprep.subr.bf16.mxu0 %v2146
        %2178 = vmatpush1.bf16.msra.mxu0 %v2145
        %2179 = vmatprep.subr.bf16.mxu0 %v2148
        %2180 = vmatpush1.bf16.msra.mxu0 %v2147
        %2181 = vmatprep.subr.bf16.mxu0 %v2150
        %2182 = vmatpush1.bf16.msra.mxu0 %v2149
        %2183 = vmatprep.subr.bf16.mxu0 %v2152
        %2184 = vmatpush1.bf16.msra.mxu0 %v2151
        %2185 = vmatprep.subr.bf16.mxu0 0
        %2186 = vmatpush1.bf16.msra.mxu0 0
        %2187 = vmatprep.subr.bf16.mxu0 0
        %2188 = vmatpush1.bf16.msra.mxu0 0
        %2189 = vmatprep.subr.bf16.mxu0 0
        %2190 = vmatpush1.bf16.msra.mxu0 0
        %2191 = vmatprep.subr.bf16.mxu0 0
        %2192 = vmatpush1.bf16.msra.mxu0 0
        %2193 = vmatprep.subr.bf16.mxu0 0
        %2194 = vmatpush1.bf16.msra.mxu0 0
        %2195 = vmatprep.subr.bf16.mxu0 0
        %2196 = vmatpush1.bf16.msra.mxu0 0
        %2197 = vmatprep.subr.bf16.mxu0 0
        %2198 = vmatpush1.bf16.msra.mxu0 0
        %2199 = vmatprep.subr.bf16.mxu0 0
        %2200 = vmatpush1.bf16.msra.mxu0 0
        %2201 = vmatprep.mubr.bf16.mxu0 0
        %2202 = vmatmul.mubr.bf16.gmra.mrb[0].mxu0 %v2121
        %v2203 = vpop.f32.mrb[0].mxu0
        %v2204 = vadd.f32 0.0, %v2203
        %v2205 = vpop.f32.mrb[0].mxu0
        %v2206 = vadd.f32 0.0, %v2205
        %v2207 = vpop.f32.mrb[0].mxu0
        %v2208 = vadd.f32 0.0, %v2207
        %v2209 = vpop.f32.mrb[0].mxu0
        %v2210 = vadd.f32 0.0, %v2209
        %2211 = vmatprep.mubr.bf16.mxu0 0
        %2212 = vmatmul.mubr.bf16.gmra.mrb[0].mxu0 %v2123
        %v2213 = vpop.f32.mrb[0].mxu0
        %v2214 = vadd.f32 0.0, %v2213
        %v2215 = vpop.f32.mrb[0].mxu0
        %v2216 = vadd.f32 0.0, %v2215
        %v2217 = vpop.f32.mrb[0].mxu0
        %v2218 = vadd.f32 0.0, %v2217
        %v2219 = vpop.f32.mrb[0].mxu0
        %v2220 = vadd.f32 0.0, %v2219
        %2221 = vmatprep.mubr.bf16.mxu0 0
        %2222 = vmatmul.mubr.bf16.gmra.mrb[0].mxu0 %v2125
        %v2223 = vpop.f32.mrb[0].mxu0
        %v2224 = vadd.f32 0.0, %v2223
        %v2225 = vpop.f32.mrb[0].mxu0
        %v2226 = vadd.f32 0.0, %v2225
        %v2227 = vpop.f32.mrb[0].mxu0
        %v2228 = vadd.f32 0.0, %v2227
        %v2229 = vpop.f32.mrb[0].mxu0
        %v2230 = vadd.f32 0.0, %v2229
        %2231 = vmatprep.mubr.bf16.mxu0 0
        %2232 = vmatmul.mubr.bf16.gmra.mrb[0].mxu0 %v2127
        %v2233 = vpop.f32.mrb[0].mxu0
        %v2234 = vadd.f32 0.0, %v2233
        %v2235 = vpop.f32.mrb[0].mxu0
        %v2236 = vadd.f32 0.0, %v2235
        %v2237 = vpop.f32.mrb[0].mxu0
        %v2238 = vadd.f32 0.0, %v2237
        %v2239 = vpop.f32.mrb[0].mxu0
        %v2240 = vadd.f32 0.0, %v2239
        %2241 = vmatprep.mubr.bf16.mxu0 0
        %2242 = vmatmul.mubr.bf16.gmra.mrb[0].mxu0 %v2129
        %v2243 = vpop.f32.mrb[0].mxu0
        %v2244 = vadd.f32 0.0, %v2243
        %v2245 = vpop.f32.mrb[0].mxu0
        %v2246 = vadd.f32 0.0, %v2245
        %v2247 = vpop.f32.mrb[0].mxu0
        %v2248 = vadd.f32 0.0, %v2247
        %v2249 = vpop.f32.mrb[0].mxu0
        %v2250 = vadd.f32 0.0, %v2249
        %2251 = vmatprep.mubr.bf16.mxu0 0
        %2252 = vmatmul.mubr.bf16.gmra.mrb[0].mxu0 %v2131
        %v2253 = vpop.f32.mrb[0].mxu0
        %v2254 = vadd.f32 0.0, %v2253
        %v2255 = vpop.f32.mrb[0].mxu0
        %v2256 = vadd.f32 0.0, %v2255
        %v2257 = vpop.f32.mrb[0].mxu0
        %v2258 = vadd.f32 0.0, %v2257
        %v2259 = vpop.f32.mrb[0].mxu0
        %v2260 = vadd.f32 0.0, %v2259
        %2261 = vmatprep.mubr.bf16.mxu0 0
        %2262 = vmatmul.mubr.bf16.gmra.mrb[0].mxu0 %v2133
        %v2263 = vpop.f32.mrb[0].mxu0
        %v2264 = vadd.f32 0.0, %v2263
        %v2265 = vpop.f32.mrb[0].mxu0
        %v2266 = vadd.f32 0.0, %v2265
        %v2267 = vpop.f32.mrb[0].mxu0
        %v2268 = vadd.f32 0.0, %v2267
        %v2269 = vpop.f32.mrb[0].mxu0
        %v2270 = vadd.f32 0.0, %v2269
        %2271 = vmatprep.mubr.bf16.mxu0 0
        %2272 = vmatmul.mubr.bf16.gmra.mrb[0].mxu0 %v2135
        %v2273 = vpop.f32.mrb[0].mxu0
        %v2274 = vadd.f32 0.0, %v2273
        %v2275 = vpop.f32.mrb[0].mxu0
        %v2276 = vadd.f32 0.0, %v2275
        %v2277 = vpop.f32.mrb[0].mxu0
        %v2278 = vadd.f32 0.0, %v2277
        %v2279 = vpop.f32.mrb[0].mxu0
        %v2280 = vadd.f32 0.0, %v2279
        %2281 = vdwg.mxu0
        %v2282 = vmax.f32 %v2204, %v2206
        %2283 = vmax.xlane.f32.xlu0 %v2282
        %v2284 = vpop.xlane.xlu0 %2283
        %v2285 = vmax.f32 %v2208, %v2210
        %2286 = vmax.xlane.f32.xlu0 %v2285
        %v2287 = vpop.xlane.xlu0 %2286
        %v2288 = vmax.f32 %v2214, %v2216
        %2289 = vmax.xlane.f32.xlu0 %v2288
        %v2290 = vpop.xlane.xlu0 %2289
        %v2291 = vmax.f32 %v2218, %v2220
        %2292 = vmax.xlane.f32.xlu0 %v2291
        %v2293 = vpop.xlane.xlu0 %2292
        %v2294 = vmax.f32 %v2224, %v2226
        %2295 = vmax.xlane.f32.xlu0 %v2294
        %v2296 = vpop.xlane.xlu0 %2295
        %v2297 = vmax.f32 %v2228, %v2230
        %2298 = vmax.xlane.f32.xlu0 %v2297
        %v2299 = vpop.xlane.xlu0 %2298
        %v2300 = vmax.f32 %v2234, %v2236
        %2301 = vmax.xlane.f32.xlu0 %v2300
        %v2302 = vpop.xlane.xlu0 %2301
        %v2303 = vmax.f32 %v2238, %v2240
        %2304 = vmax.xlane.f32.xlu0 %v2303
        %v2305 = vpop.xlane.xlu0 %2304
        %v2306 = vmax.f32 %v2244, %v2246
        %2307 = vmax.xlane.f32.xlu0 %v2306
        %v2308 = vpop.xlane.xlu0 %2307
        %v2309 = vmax.f32 %v2248, %v2250
        %2310 = vmax.xlane.f32.xlu0 %v2309
        %v2311 = vpop.xlane.xlu0 %2310
        %v2312 = vmax.f32 %v2254, %v2256
        %2313 = vmax.xlane.f32.xlu0 %v2312
        %v2314 = vpop.xlane.xlu0 %2313
        %v2315 = vmax.f32 %v2258, %v2260
        %2316 = vmax.xlane.f32.xlu0 %v2315
        %v2317 = vpop.xlane.xlu0 %2316
        %v2318 = vmax.f32 %v2264, %v2266
        %2319 = vmax.xlane.f32.xlu0 %v2318
        %v2320 = vpop.xlane.xlu0 %2319
        %v2321 = vmax.f32 %v2268, %v2270
        %2322 = vmax.xlane.f32.xlu0 %v2321
        %v2323 = vpop.xlane.xlu0 %2322
        %v2324 = vmax.f32 %v2274, %v2276
        %2325 = vmax.xlane.f32.xlu0 %v2324
        %v2326 = vpop.xlane.xlu0 %2325
        %v2327 = vmax.f32 %v2278, %v2280
        %2328 = vmax.xlane.f32.xlu0 %v2327
        %v2329 = vpop.xlane.xlu0 %2328
        %v2330 = vsub.f32 %v2204, %v2284
        %v2331 = vsub.f32 %v2206, %v2284
        %v2332 = vsub.f32 %v2208, %v2287
        %v2333 = vsub.f32 %v2210, %v2287
        %v2334 = vsub.f32 %v2214, %v2290
        %v2335 = vsub.f32 %v2216, %v2290
        %v2336 = vsub.f32 %v2218, %v2293
        %v2337 = vsub.f32 %v2220, %v2293
        %v2338 = vsub.f32 %v2224, %v2296
        %v2339 = vsub.f32 %v2226, %v2296
        %v2340 = vsub.f32 %v2228, %v2299
        %v2341 = vsub.f32 %v2230, %v2299
        %v2342 = vsub.f32 %v2234, %v2302
        %v2343 = vsub.f32 %v2236, %v2302
        %v2344 = vsub.f32 %v2238, %v2305
        %v2345 = vsub.f32 %v2240, %v2305
        %v2346 = vsub.f32 %v2244, %v2308
        %v2347 = vsub.f32 %v2246, %v2308
        %v2348 = vsub.f32 %v2248, %v2311
        %v2349 = vsub.f32 %v2250, %v2311
        %v2350 = vsub.f32 %v2254, %v2314
        %v2351 = vsub.f32 %v2256, %v2314
        %v2352 = vsub.f32 %v2258, %v2317
        %v2353 = vsub.f32 %v2260, %v2317
        %v2354 = vsub.f32 %v2264, %v2320
        %v2355 = vsub.f32 %v2266, %v2320
        %v2356 = vsub.f32 %v2268, %v2323
        %v2357 = vsub.f32 %v2270, %v2323
        %v2358 = vsub.f32 %v2274, %v2326
        %v2359 = vsub.f32 %v2276, %v2326
        %v2360 = vsub.f32 %v2278, %v2329
        %v2361 = vsub.f32 %v2280, %v2329
        %v2362 = vpack.c.bf16 %v2332, %v2330
        %v2363 = vpack.c.bf16 %v2333, %v2331
        %v2364 = vpack.c.bf16 %v2336, %v2334
        %v2365 = vpack.c.bf16 %v2337, %v2335
        %v2366 = vpack.c.bf16 %v2340, %v2338
        %v2367 = vpack.c.bf16 %v2341, %v2339
        %v2368 = vpack.c.bf16 %v2344, %v2342
        %v2369 = vpack.c.bf16 %v2345, %v2343
        %v2370 = vpack.c.bf16 %v2348, %v2346
        %v2371 = vpack.c.bf16 %v2349, %v2347
        %v2372 = vpack.c.bf16 %v2352, %v2350
        %v2373 = vpack.c.bf16 %v2353, %v2351
        %v2374 = vpack.c.bf16 %v2356, %v2354
        %v2375 = vpack.c.bf16 %v2357, %v2355
        %v2376 = vpack.c.bf16 %v2360, %v2358
        %v2377 = vpack.c.bf16 %v2361, %v2359
        %v2379 = vmul.bf16 %v2362, 1069105081
        %v2380 = vpow.bf16.pop %v2379
        %v2382 = vmul.bf16 %v2363, 1069105081
        %v2383 = vpow.bf16.pop %v2382
        %v2385 = vmul.bf16 %v2364, 1069105081
        %v2386 = vpow.bf16.pop %v2385
        %v2388 = vmul.bf16 %v2365, 1069105081
        %v2389 = vpow.bf16.pop %v2388
        %v2391 = vmul.bf16 %v2366, 1069105081
        %v2392 = vpow.bf16.pop %v2391
        %v2394 = vmul.bf16 %v2367, 1069105081
        %v2395 = vpow.bf16.pop %v2394
        %v2397 = vmul.bf16 %v2368, 1069105081
        %v2398 = vpow.bf16.pop %v2397
        %v2400 = vmul.bf16 %v2369, 1069105081
        %v2401 = vpow.bf16.pop %v2400
        %v2403 = vmul.bf16 %v2370, 1069105081
        %v2404 = vpow.bf16.pop %v2403
        %v2406 = vmul.bf16 %v2371, 1069105081
        %v2407 = vpow.bf16.pop %v2406
        %v2409 = vmul.bf16 %v2372, 1069105081
        %v2410 = vpow.bf16.pop %v2409
        %v2412 = vmul.bf16 %v2373, 1069105081
        %v2413 = vpow.bf16.pop %v2412
        %v2415 = vmul.bf16 %v2374, 1069105081
        %v2416 = vpow.bf16.pop %v2415
        %v2418 = vmul.bf16 %v2375, 1069105081
        %v2419 = vpow.bf16.pop %v2418
        %v2421 = vmul.bf16 %v2376, 1069105081
        %v2422 = vpow.bf16.pop %v2421
        %v2424 = vmul.bf16 %v2377, 1069105081
        %v2425 = vpow.bf16.pop %v2424
        %v2426 = vunpack.c.l.bf16 %v2380
        %v2427 = vunpack.c.l.bf16 %v2383
        %v2428 = vunpack.c.h.bf16 %v2380
        %v2429 = vunpack.c.h.bf16 %v2383
        %v2430 = vunpack.c.l.bf16 %v2386
        %v2431 = vunpack.c.l.bf16 %v2389
        %v2432 = vunpack.c.h.bf16 %v2386
        %v2433 = vunpack.c.h.bf16 %v2389
        %v2434 = vunpack.c.l.bf16 %v2392
        %v2435 = vunpack.c.l.bf16 %v2395
        %v2436 = vunpack.c.h.bf16 %v2392
        %v2437 = vunpack.c.h.bf16 %v2395
        %v2438 = vunpack.c.l.bf16 %v2398
        %v2439 = vunpack.c.l.bf16 %v2401
        %v2440 = vunpack.c.h.bf16 %v2398
        %v2441 = vunpack.c.h.bf16 %v2401
        %v2442 = vunpack.c.l.bf16 %v2404
        %v2443 = vunpack.c.l.bf16 %v2407
        %v2444 = vunpack.c.h.bf16 %v2404
        %v2445 = vunpack.c.h.bf16 %v2407
        %v2446 = vunpack.c.l.bf16 %v2410
        %v2447 = vunpack.c.l.bf16 %v2413
        %v2448 = vunpack.c.h.bf16 %v2410
        %v2449 = vunpack.c.h.bf16 %v2413
        %v2450 = vunpack.c.l.bf16 %v2416
        %v2451 = vunpack.c.l.bf16 %v2419
        %v2452 = vunpack.c.h.bf16 %v2416
        %v2453 = vunpack.c.h.bf16 %v2419
        %v2454 = vunpack.c.l.bf16 %v2422
        %v2455 = vunpack.c.l.bf16 %v2425
        %v2456 = vunpack.c.h.bf16 %v2422
        %v2457 = vunpack.c.h.bf16 %v2425
        %v2458 = vadd.f32 %v2426, %v2427
        %2459 = vadd.xlane.f32.xlu0 %v2458
        %v2460 = vpop.xlane.xlu0 %2459
        %v2461 = vadd.f32 %v2428, %v2429
        %2462 = vadd.xlane.f32.xlu0 %v2461
        %v2463 = vpop.xlane.xlu0 %2462
        %v2464 = vadd.f32 %v2430, %v2431
        %2465 = vadd.xlane.f32.xlu0 %v2464
        %v2466 = vpop.xlane.xlu0 %2465
        %v2467 = vadd.f32 %v2432, %v2433
        %2468 = vadd.xlane.f32.xlu0 %v2467
        %v2469 = vpop.xlane.xlu0 %2468
        %v2470 = vadd.f32 %v2434, %v2435
        %2471 = vadd.xlane.f32.xlu0 %v2470
        %v2472 = vpop.xlane.xlu0 %2471
        %v2473 = vadd.f32 %v2436, %v2437
        %2474 = vadd.xlane.f32.xlu0 %v2473
        %v2475 = vpop.xlane.xlu0 %2474
        %v2476 = vadd.f32 %v2438, %v2439
        %2477 = vadd.xlane.f32.xlu0 %v2476
        %v2478 = vpop.xlane.xlu0 %2477
        %v2479 = vadd.f32 %v2440, %v2441
        %2480 = vadd.xlane.f32.xlu0 %v2479
        %v2481 = vpop.xlane.xlu0 %2480
        %v2482 = vadd.f32 %v2442, %v2443
        %2483 = vadd.xlane.f32.xlu0 %v2482
        %v2484 = vpop.xlane.xlu0 %2483
        %v2485 = vadd.f32 %v2444, %v2445
        %2486 = vadd.xlane.f32.xlu0 %v2485
        %v2487 = vpop.xlane.xlu0 %2486
        %v2488 = vadd.f32 %v2446, %v2447
        %2489 = vadd.xlane.f32.xlu0 %v2488
        %v2490 = vpop.xlane.xlu0 %2489
        %v2491 = vadd.f32 %v2448, %v2449
        %2492 = vadd.xlane.f32.xlu0 %v2491
        %v2493 = vpop.xlane.xlu0 %2492
        %v2494 = vadd.f32 %v2450, %v2451
        %2495 = vadd.xlane.f32.xlu0 %v2494
        %v2496 = vpop.xlane.xlu0 %2495
        %v2497 = vadd.f32 %v2452, %v2453
        %2498 = vadd.xlane.f32.xlu0 %v2497
        %v2499 = vpop.xlane.xlu0 %2498
        %v2500 = vadd.f32 %v2454, %v2455
        %2501 = vadd.xlane.f32.xlu0 %v2500
        %v2502 = vpop.xlane.xlu0 %2501
        %v2503 = vadd.f32 %v2456, %v2457
        %2504 = vadd.xlane.f32.xlu0 %v2503
        %v2505 = vpop.xlane.xlu0 %2504
        %2506 = vmatprep.subr.bf16.mxu0 0
        %2507 = vmatpush1.bf16.msra.mxu0 %v2153
        %2508 = vmatprep.subr.bf16.mxu0 0
        %2509 = vmatpush1.bf16.msra.mxu0 %v2154
        %2510 = vmatprep.subr.bf16.mxu0 0
        %2511 = vmatpush1.bf16.msra.mxu0 %v2155
        %2512 = vmatprep.subr.bf16.mxu0 0
        %2513 = vmatpush1.bf16.msra.mxu0 %v2156
        %2514 = vmatprep.subr.bf16.mxu0 0
        %2515 = vmatpush1.bf16.msra.mxu0 %v2157
        %2516 = vmatprep.subr.bf16.mxu0 0
        %2517 = vmatpush1.bf16.msra.mxu0 %v2158
        %2518 = vmatprep.subr.bf16.mxu0 0
        %2519 = vmatpush1.bf16.msra.mxu0 %v2159
        %2520 = vmatprep.subr.bf16.mxu0 0
        %2521 = vmatpush1.bf16.msra.mxu0 %v2160
        %2522 = vmatprep.subr.bf16.mxu0 0
        %2523 = vmatpush1.bf16.msra.mxu0 %v2161
        %2524 = vmatprep.subr.bf16.mxu0 0
        %2525 = vmatpush1.bf16.msra.mxu0 %v2162
        %2526 = vmatprep.subr.bf16.mxu0 0
        %2527 = vmatpush1.bf16.msra.mxu0 %v2163
        %2528 = vmatprep.subr.bf16.mxu0 0
        %2529 = vmatpush1.bf16.msra.mxu0 %v2164
        %2530 = vmatprep.subr.bf16.mxu0 0
        %2531 = vmatpush1.bf16.msra.mxu0 %v2165
        %2532 = vmatprep.subr.bf16.mxu0 0
        %2533 = vmatpush1.bf16.msra.mxu0 %v2166
        %2534 = vmatprep.subr.bf16.mxu0 0
        %2535 = vmatpush1.bf16.msra.mxu0 %v2167
        %2536 = vmatprep.subr.bf16.mxu0 0
        %2537 = vmatpush1.bf16.msra.mxu0 %v2168
        %2538 = vmatprep.mubr.bf16.mxu0 %v2383
        %2539 = vmatmul.mubr.bf16.gmra.mrb[0].mxu0 %v2380
        %v2540 = vpop.f32.mrb[0].mxu0
        %v2541 = vadd.f32 0.0, %v2540
        %v2542 = vpop.f32.mrb[0].mxu0
        %v2543 = vpop.f32.mrb[0].mxu0
        %v2544 = vadd.f32 0.0, %v2543
        %v2545 = vpop.f32.mrb[0].mxu0
        %2546 = vmatprep.mubr.bf16.mxu0 %v2389
        %2547 = vmatmul.mubr.bf16.gmra.mrb[0].mxu0 %v2386
        %v2548 = vpop.f32.mrb[0].mxu0
        %v2549 = vadd.f32 0.0, %v2548
        %v2550 = vpop.f32.mrb[0].mxu0
        %v2551 = vpop.f32.mrb[0].mxu0
        %v2552 = vadd.f32 0.0, %v2551
        %v2553 = vpop.f32.mrb[0].mxu0
        %2554 = vmatprep.mubr.bf16.mxu0 %v2395
        %2555 = vmatmul.mubr.bf16.gmra.mrb[0].mxu0 %v2392
        %v2556 = vpop.f32.mrb[0].mxu0
        %v2557 = vadd.f32 0.0, %v2556
        %v2558 = vpop.f32.mrb[0].mxu0
        %v2559 = vpop.f32.mrb[0].mxu0
        %v2560 = vadd.f32 0.0, %v2559
        %v2561 = vpop.f32.mrb[0].mxu0
        %2562 = vmatprep.mubr.bf16.mxu0 %v2401
        %2563 = vmatmul.mubr.bf16.gmra.mrb[0].mxu0 %v2398
        %v2564 = vpop.f32.mrb[0].mxu0
        %v2565 = vadd.f32 0.0, %v2564
        %v2566 = vpop.f32.mrb[0].mxu0
        %v2567 = vpop.f32.mrb[0].mxu0
        %v2568 = vadd.f32 0.0, %v2567
        %v2569 = vpop.f32.mrb[0].mxu0
        %2570 = vmatprep.mubr.bf16.mxu0 %v2407
        %2571 = vmatmul.mubr.bf16.gmra.mrb[0].mxu0 %v2404
        %v2572 = vpop.f32.mrb[0].mxu0
        %v2573 = vadd.f32 0.0, %v2572
        %v2574 = vpop.f32.mrb[0].mxu0
        %v2575 = vpop.f32.mrb[0].mxu0
        %v2576 = vadd.f32 0.0, %v2575
        %v2577 = vpop.f32.mrb[0].mxu0
        %2578 = vmatprep.mubr.bf16.mxu0 %v2413
        %2579 = vmatmul.mubr.bf16.gmra.mrb[0].mxu0 %v2410
        %v2580 = vpop.f32.mrb[0].mxu0
        %v2581 = vadd.f32 0.0, %v2580
        %v2582 = vpop.f32.mrb[0].mxu0
        %v2583 = vpop.f32.mrb[0].mxu0
        %v2584 = vadd.f32 0.0, %v2583
        %v2585 = vpop.f32.mrb[0].mxu0
        %2586 = vmatprep.mubr.bf16.mxu0 %v2419
        %2587 = vmatmul.mubr.bf16.gmra.mrb[0].mxu0 %v2416
        %v2588 = vpop.f32.mrb[0].mxu0
        %v2589 = vadd.f32 0.0, %v2588
        %v2590 = vpop.f32.mrb[0].mxu0
        %v2591 = vpop.f32.mrb[0].mxu0
        %v2592 = vadd.f32 0.0, %v2591
        %v2593 = vpop.f32.mrb[0].mxu0
        %2594 = vmatprep.mubr.bf16.mxu0 %v2425
        %2595 = vmatmul.mubr.bf16.gmra.mrb[0].mxu0 %v2422
        %v2596 = vpop.f32.mrb[0].mxu0
        %v2597 = vadd.f32 0.0, %v2596
        %v2598 = vpop.f32.mrb[0].mxu0
        %v2599 = vpop.f32.mrb[0].mxu0
        %v2600 = vadd.f32 0.0, %v2599
        %v2601 = vpop.f32.mrb[0].mxu0
        %2602 = vdwg.mxu0
        %v2603 = vrcp.pop %v2460
        %v2604 = vrcp.pop %v2463
        %v2605 = vrcp.pop %v2466
        %v2606 = vrcp.pop %v2469
        %v2607 = vrcp.pop %v2472
        %v2608 = vrcp.pop %v2475
        %v2609 = vrcp.pop %v2478
        %v2610 = vrcp.pop %v2481
        %v2611 = vrcp.pop %v2484
        %v2612 = vrcp.pop %v2487
        %v2613 = vrcp.pop %v2490
        %v2614 = vrcp.pop %v2493
        %v2615 = vrcp.pop %v2496
        %v2616 = vrcp.pop %v2499
        %v2617 = vrcp.pop %v2502
        %v2618 = vrcp.pop %v2505
        %v2619 = vmul.f32 %v2541, %v2603
        %v2620 = vmul.f32 %v2544, %v2604
        %v2621 = vmul.f32 %v2549, %v2605
        %v2622 = vmul.f32 %v2552, %v2606
        %v2623 = vmul.f32 %v2557, %v2607
        %v2624 = vmul.f32 %v2560, %v2608
        %v2625 = vmul.f32 %v2565, %v2609
        %v2626 = vmul.f32 %v2568, %v2610
        %v2627 = vmul.f32 %v2573, %v2611
        %v2628 = vmul.f32 %v2576, %v2612
        %v2629 = vmul.f32 %v2581, %v2613
        %v2630 = vmul.f32 %v2584, %v2614
        %v2631 = vmul.f32 %v2589, %v2615
        %v2632 = vmul.f32 %v2592, %v2616
        %v2633 = vmul.f32 %v2597, %v2617
        %v2634 = vmul.f32 %v2600, %v2618
        %v2635 = vpack.c.bf16 %v2620, %v2619
        %v2636 = vpack.c.bf16 %v2622, %v2621
        %v2637 = vpack.c.bf16 %v2624, %v2623
        %v2638 = vpack.c.bf16 %v2626, %v2625
        %v2639 = vpack.c.bf16 %v2628, %v2627
        %v2640 = vpack.c.bf16 %v2630, %v2629
        %v2641 = vpack.c.bf16 %v2632, %v2631
        %v2642 = vpack.c.bf16 %v2634, %v2633
        %2643 = vst [vmem:[#allocation4] sm:$0xff] %v2635
        %2644 = vst [vmem:[#allocation4 + $0x10] sm:$0xff] %v2636
        %2645 = vst [vmem:[#allocation4 + $0x20] sm:$0xff] %v2637
        %2646 = vst [vmem:[#allocation4 + $0x30] sm:$0xff] %v2638
        %2647 = vst [vmem:[#allocation4 + $0x40] sm:$0xff] %v2639
        %2648 = vst [vmem:[#allocation4 + $0x50] sm:$0xff] %v2640
        %2649 = vst [vmem:[#allocation4 + $0x60] sm:$0xff] %v2641
        %2650 = vst [vmem:[#allocation4 + $0x70] sm:$0xff] %v2642
        %v2651 = vld [vmem:[#allocation2 + $0x80] sm:$0xff]
        %v2652 = vld [vmem:[#allocation2 + $0x88] sm:$0xff]
        %v2653 = vld [vmem:[#allocation2 + $0x90] sm:$0xff]
        %v2654 = vld [vmem:[#allocation2 + $0x98] sm:$0xff]
        %v2655 = vld [vmem:[#allocation2 + $0xa0] sm:$0xff]
        %v2656 = vld [vmem:[#allocation2 + $0xa8] sm:$0xff]
        %v2657 = vld [vmem:[#allocation2 + $0xb0] sm:$0xff]
        %v2658 = vld [vmem:[#allocation2 + $0xb8] sm:$0xff]
        %v2659 = vld [vmem:[#allocation2 + $0xc0] sm:$0xff]
        %v2660 = vld [vmem:[#allocation2 + $0xc8] sm:$0xff]
        %v2661 = vld [vmem:[#allocation2 + $0xd0] sm:$0xff]
        %v2662 = vld [vmem:[#allocation2 + $0xd8] sm:$0xff]
        %v2663 = vld [vmem:[#allocation2 + $0xe0] sm:$0xff]
        %v2664 = vld [vmem:[#allocation2 + $0xe8] sm:$0xff]
        %v2665 = vld [vmem:[#allocation2 + $0xf0] sm:$0xff]
        %v2666 = vld [vmem:[#allocation2 + $0xf8] sm:$0xff]
        %v2667 = vld [vmem:[#allocation3 + $0x8] sm:$0xff]
        %v2668 = vld [vmem:[#allocation3 + $0x18] sm:$0xff]
        %v2669 = vld [vmem:[#allocation3 + $0x28] sm:$0xff]
        %v2670 = vld [vmem:[#allocation3 + $0x38] sm:$0xff]
        %v2671 = vld [vmem:[#allocation3 + $0x48] sm:$0xff]
        %v2672 = vld [vmem:[#allocation3 + $0x58] sm:$0xff]
        %v2673 = vld [vmem:[#allocation3 + $0x68] sm:$0xff]
        %v2674 = vld [vmem:[#allocation3 + $0x78] sm:$0xff]
        %v2675 = vld [vmem:[#allocation3 + $0x88] sm:$0xff]
        %v2676 = vld [vmem:[#allocation3 + $0x98] sm:$0xff]
        %v2677 = vld [vmem:[#allocation3 + $0xa8] sm:$0xff]
        %v2678 = vld [vmem:[#allocation3 + $0xb8] sm:$0xff]
        %v2679 = vld [vmem:[#allocation3 + $0xc8] sm:$0xff]
        %v2680 = vld [vmem:[#allocation3 + $0xd8] sm:$0xff]
        %v2681 = vld [vmem:[#allocation3 + $0xe8] sm:$0xff]
        %v2682 = vld [vmem:[#allocation3 + $0xf8] sm:$0xff]
        %2683 = vmatprep.subr.bf16.mxu0 %v2652
        %2684 = vmatpush1.bf16.msra.mxu0 %v2651
        %2685 = vmatprep.subr.bf16.mxu0 %v2654
        %2686 = vmatpush1.bf16.msra.mxu0 %v2653
        %2687 = vmatprep.subr.bf16.mxu0 %v2656
        %2688 = vmatpush1.bf16.msra.mxu0 %v2655
        %2689 = vmatprep.subr.bf16.mxu0 %v2658
        %2690 = vmatpush1.bf16.msra.mxu0 %v2657
        %2691 = vmatprep.subr.bf16.mxu0 %v2660
        %2692 = vmatpush1.bf16.msra.mxu0 %v2659
        %2693 = vmatprep.subr.bf16.mxu0 %v2662
        %2694 = vmatpush1.bf16.msra.mxu0 %v2661
        %2695 = vmatprep.subr.bf16.mxu0 %v2664
        %2696 = vmatpush1.bf16.msra.mxu0 %v2663
        %2697 = vmatprep.subr.bf16.mxu0 %v2666
        %2698 = vmatpush1.bf16.msra.mxu0 %v2665
        %2699 = vmatprep.subr.bf16.mxu0 0
        %2700 = vmatpush1.bf16.msra.mxu0 0
        %2701 = vmatprep.subr.bf16.mxu0 0
        %2702 = vmatpush1.bf16.msra.mxu0 0
        %2703 = vmatprep.subr.bf16.mxu0 0
        %2704 = vmatpush1.bf16.msra.mxu0 0
        %2705 = vmatprep.subr.bf16.mxu0 0
        %2706 = vmatpush1.bf16.msra.mxu0 0
        %2707 = vmatprep.subr.bf16.mxu0 0
        %2708 = vmatpush1.bf16.msra.mxu0 0
        %2709 = vmatprep.subr.bf16.mxu0 0
        %2710 = vmatpush1.bf16.msra.mxu0 0
        %2711 = vmatprep.subr.bf16.mxu0 0
        %2712 = vmatpush1.bf16.msra.mxu0 0
        %2713 = vmatprep.subr.bf16.mxu0 0
        %2714 = vmatpush1.bf16.msra.mxu0 0
        %2715 = vmatprep.mubr.bf16.mxu0 0
        %2716 = vmatmul.mubr.bf16.gmra.mrb[0].mxu0 %v2122
        %v2717 = vpop.f32.mrb[0].mxu0
        %v2718 = vadd.f32 0.0, %v2717
        %v2719 = vpop.f32.mrb[0].mxu0
        %v2720 = vadd.f32 0.0, %v2719
        %v2721 = vpop.f32.mrb[0].mxu0
        %v2722 = vadd.f32 0.0, %v2721
        %v2723 = vpop.f32.mrb[0].mxu0
        %v2724 = vadd.f32 0.0, %v2723
        %2725 = vmatprep.mubr.bf16.mxu0 0
        %2726 = vmatmul.mubr.bf16.gmra.mrb[0].mxu0 %v2124
        %v2727 = vpop.f32.mrb[0].mxu0
        %v2728 = vadd.f32 0.0, %v2727
        %v2729 = vpop.f32.mrb[0].mxu0
        %v2730 = vadd.f32 0.0, %v2729
        %v2731 = vpop.f32.mrb[0].mxu0
        %v2732 = vadd.f32 0.0, %v2731
        %v2733 = vpop.f32.mrb[0].mxu0
        %v2734 = vadd.f32 0.0, %v2733
        %2735 = vmatprep.mubr.bf16.mxu0 0
        %2736 = vmatmul.mubr.bf16.gmra.mrb[0].mxu0 %v2126
        %v2737 = vpop.f32.mrb[0].mxu0
        %v2738 = vadd.f32 0.0, %v2737
        %v2739 = vpop.f32.mrb[0].mxu0
        %v2740 = vadd.f32 0.0, %v2739
        %v2741 = vpop.f32.mrb[0].mxu0
        %v2742 = vadd.f32 0.0, %v2741
        %v2743 = vpop.f32.mrb[0].mxu0
        %v2744 = vadd.f32 0.0, %v2743
        %2745 = vmatprep.mubr.bf16.mxu0 0
        %2746 = vmatmul.mubr.bf16.gmra.mrb[0].mxu0 %v2128
        %v2747 = vpop.f32.mrb[0].mxu0
        %v2748 = vadd.f32 0.0, %v2747
        %v2749 = vpop.f32.mrb[0].mxu0
        %v2750 = vadd.f32 0.0, %v2749
        %v2751 = vpop.f32.mrb[0].mxu0
        %v2752 = vadd.f32 0.0, %v2751
        %v2753 = vpop.f32.mrb[0].mxu0
        %v2754 = vadd.f32 0.0, %v2753
        %2755 = vmatprep.mubr.bf16.mxu0 0
        %2756 = vmatmul.mubr.bf16.gmra.mrb[0].mxu0 %v2130
        %v2757 = vpop.f32.mrb[0].mxu0
        %v2758 = vadd.f32 0.0, %v2757
        %v2759 = vpop.f32.mrb[0].mxu0
        %v2760 = vadd.f32 0.0, %v2759
        %v2761 = vpop.f32.mrb[0].mxu0
        %v2762 = vadd.f32 0.0, %v2761
        %v2763 = vpop.f32.mrb[0].mxu0
        %v2764 = vadd.f32 0.0, %v2763
        %2765 = vmatprep.mubr.bf16.mxu0 0
        %2766 = vmatmul.mubr.bf16.gmra.mrb[0].mxu0 %v2132
        %v2767 = vpop.f32.mrb[0].mxu0
        %v2768 = vadd.f32 0.0, %v2767
        %v2769 = vpop.f32.mrb[0].mxu0
        %v2770 = vadd.f32 0.0, %v2769
        %v2771 = vpop.f32.mrb[0].mxu0
        %v2772 = vadd.f32 0.0, %v2771
        %v2773 = vpop.f32.mrb[0].mxu0
        %v2774 = vadd.f32 0.0, %v2773
        %2775 = vmatprep.mubr.bf16.mxu0 0
        %2776 = vmatmul.mubr.bf16.gmra.mrb[0].mxu0 %v2134
        %v2777 = vpop.f32.mrb[0].mxu0
        %v2778 = vadd.f32 0.0, %v2777
        %v2779 = vpop.f32.mrb[0].mxu0
        %v2780 = vadd.f32 0.0, %v2779
        %v2781 = vpop.f32.mrb[0].mxu0
        %v2782 = vadd.f32 0.0, %v2781
        %v2783 = vpop.f32.mrb[0].mxu0
        %v2784 = vadd.f32 0.0, %v2783
        %2785 = vmatprep.mubr.bf16.mxu0 0
        %2786 = vmatmul.mubr.bf16.gmra.mrb[0].mxu0 %v2136
        %v2787 = vpop.f32.mrb[0].mxu0
        %v2788 = vadd.f32 0.0, %v2787
        %v2789 = vpop.f32.mrb[0].mxu0
        %v2790 = vadd.f32 0.0, %v2789
        %v2791 = vpop.f32.mrb[0].mxu0
        %v2792 = vadd.f32 0.0, %v2791
        %v2793 = vpop.f32.mrb[0].mxu0
        %v2794 = vadd.f32 0.0, %v2793
        %2795 = vdwg.mxu0
        %v2796 = vmax.f32 %v2718, %v2720
        %2797 = vmax.xlane.f32.xlu0 %v2796
        %v2798 = vpop.xlane.xlu0 %2797
        %v2799 = vmax.f32 %v2722, %v2724
        %2800 = vmax.xlane.f32.xlu0 %v2799
        %v2801 = vpop.xlane.xlu0 %2800
        %v2802 = vmax.f32 %v2728, %v2730
        %2803 = vmax.xlane.f32.xlu0 %v2802
        %v2804 = vpop.xlane.xlu0 %2803
        %v2805 = vmax.f32 %v2732, %v2734
        %2806 = vmax.xlane.f32.xlu0 %v2805
        %v2807 = vpop.xlane.xlu0 %2806
        %v2808 = vmax.f32 %v2738, %v2740
        %2809 = vmax.xlane.f32.xlu0 %v2808
        %v2810 = vpop.xlane.xlu0 %2809
        %v2811 = vmax.f32 %v2742, %v2744
        %2812 = vmax.xlane.f32.xlu0 %v2811
        %v2813 = vpop.xlane.xlu0 %2812
        %v2814 = vmax.f32 %v2748, %v2750
        %2815 = vmax.xlane.f32.xlu0 %v2814
        %v2816 = vpop.xlane.xlu0 %2815
        %v2817 = vmax.f32 %v2752, %v2754
        %2818 = vmax.xlane.f32.xlu0 %v2817
        %v2819 = vpop.xlane.xlu0 %2818
        %v2820 = vmax.f32 %v2758, %v2760
        %2821 = vmax.xlane.f32.xlu0 %v2820
        %v2822 = vpop.xlane.xlu0 %2821
        %v2823 = vmax.f32 %v2762, %v2764
        %2824 = vmax.xlane.f32.xlu0 %v2823
        %v2825 = vpop.xlane.xlu0 %2824
        %v2826 = vmax.f32 %v2768, %v2770
        %2827 = vmax.xlane.f32.xlu0 %v2826
        %v2828 = vpop.xlane.xlu0 %2827
        %v2829 = vmax.f32 %v2772, %v2774
        %2830 = vmax.xlane.f32.xlu0 %v2829
        %v2831 = vpop.xlane.xlu0 %2830
        %v2832 = vmax.f32 %v2778, %v2780
        %2833 = vmax.xlane.f32.xlu0 %v2832
        %v2834 = vpop.xlane.xlu0 %2833
        %v2835 = vmax.f32 %v2782, %v2784
        %2836 = vmax.xlane.f32.xlu0 %v2835
        %v2837 = vpop.xlane.xlu0 %2836
        %v2838 = vmax.f32 %v2788, %v2790
        %2839 = vmax.xlane.f32.xlu0 %v2838
        %v2840 = vpop.xlane.xlu0 %2839
        %v2841 = vmax.f32 %v2792, %v2794
        %2842 = vmax.xlane.f32.xlu0 %v2841
        %v2843 = vpop.xlane.xlu0 %2842
        %v2844 = vsub.f32 %v2718, %v2798
        %v2845 = vsub.f32 %v2720, %v2798
        %v2846 = vsub.f32 %v2722, %v2801
        %v2847 = vsub.f32 %v2724, %v2801
        %v2848 = vsub.f32 %v2728, %v2804
        %v2849 = vsub.f32 %v2730, %v2804
        %v2850 = vsub.f32 %v2732, %v2807
        %v2851 = vsub.f32 %v2734, %v2807
        %v2852 = vsub.f32 %v2738, %v2810
        %v2853 = vsub.f32 %v2740, %v2810
        %v2854 = vsub.f32 %v2742, %v2813
        %v2855 = vsub.f32 %v2744, %v2813
        %v2856 = vsub.f32 %v2748, %v2816
        %v2857 = vsub.f32 %v2750, %v2816
        %v2858 = vsub.f32 %v2752, %v2819
        %v2859 = vsub.f32 %v2754, %v2819
        %v2860 = vsub.f32 %v2758, %v2822
        %v2861 = vsub.f32 %v2760, %v2822
        %v2862 = vsub.f32 %v2762, %v2825
        %v2863 = vsub.f32 %v2764, %v2825
        %v2864 = vsub.f32 %v2768, %v2828
        %v2865 = vsub.f32 %v2770, %v2828
        %v2866 = vsub.f32 %v2772, %v2831
        %v2867 = vsub.f32 %v2774, %v2831
        %v2868 = vsub.f32 %v2778, %v2834
        %v2869 = vsub.f32 %v2780, %v2834
        %v2870 = vsub.f32 %v2782, %v2837
        %v2871 = vsub.f32 %v2784, %v2837
        %v2872 = vsub.f32 %v2788, %v2840
        %v2873 = vsub.f32 %v2790, %v2840
        %v2874 = vsub.f32 %v2792, %v2843
        %v2875 = vsub.f32 %v2794, %v2843
        %v2876 = vpack.c.bf16 %v2846, %v2844
        %v2877 = vpack.c.bf16 %v2847, %v2845
        %v2878 = vpack.c.bf16 %v2850, %v2848
        %v2879 = vpack.c.bf16 %v2851, %v2849
        %v2880 = vpack.c.bf16 %v2854, %v2852
        %v2881 = vpack.c.bf16 %v2855, %v2853
        %v2882 = vpack.c.bf16 %v2858, %v2856
        %v2883 = vpack.c.bf16 %v2859, %v2857
        %v2884 = vpack.c.bf16 %v2862, %v2860
        %v2885 = vpack.c.bf16 %v2863, %v2861
        %v2886 = vpack.c.bf16 %v2866, %v2864
        %v2887 = vpack.c.bf16 %v2867, %v2865
        %v2888 = vpack.c.bf16 %v2870, %v2868
        %v2889 = vpack.c.bf16 %v2871, %v2869
        %v2890 = vpack.c.bf16 %v2874, %v2872
        %v2891 = vpack.c.bf16 %v2875, %v2873
        %v2893 = vmul.bf16 %v2876, 1069105081
        %v2894 = vpow.bf16.pop %v2893
        %v2896 = vmul.bf16 %v2877, 1069105081
        %v2897 = vpow.bf16.pop %v2896
        %v2899 = vmul.bf16 %v2878, 1069105081
        %v2900 = vpow.bf16.pop %v2899
        %v2902 = vmul.bf16 %v2879, 1069105081
        %v2903 = vpow.bf16.pop %v2902
        %v2905 = vmul.bf16 %v2880, 1069105081
        %v2906 = vpow.bf16.pop %v2905
        %v2908 = vmul.bf16 %v2881, 1069105081
        %v2909 = vpow.bf16.pop %v2908
        %v2911 = vmul.bf16 %v2882, 1069105081
        %v2912 = vpow.bf16.pop %v2911
        %v2914 = vmul.bf16 %v2883, 1069105081
        %v2915 = vpow.bf16.pop %v2914
        %v2917 = vmul.bf16 %v2884, 1069105081
        %v2918 = vpow.bf16.pop %v2917
        %v2920 = vmul.bf16 %v2885, 1069105081
        %v2921 = vpow.bf16.pop %v2920
        %v2923 = vmul.bf16 %v2886, 1069105081
        %v2924 = vpow.bf16.pop %v2923
        %v2926 = vmul.bf16 %v2887, 1069105081
        %v2927 = vpow.bf16.pop %v2926
        %v2929 = vmul.bf16 %v2888, 1069105081
        %v2930 = vpow.bf16.pop %v2929
        %v2932 = vmul.bf16 %v2889, 1069105081
        %v2933 = vpow.bf16.pop %v2932
        %v2935 = vmul.bf16 %v2890, 1069105081
        %v2936 = vpow.bf16.pop %v2935
        %v2938 = vmul.bf16 %v2891, 1069105081
        %v2939 = vpow.bf16.pop %v2938
        %v2940 = vunpack.c.l.bf16 %v2894
        %v2941 = vunpack.c.l.bf16 %v2897
        %v2942 = vunpack.c.h.bf16 %v2894
        %v2943 = vunpack.c.h.bf16 %v2897
        %v2944 = vunpack.c.l.bf16 %v2900
        %v2945 = vunpack.c.l.bf16 %v2903
        %v2946 = vunpack.c.h.bf16 %v2900
        %v2947 = vunpack.c.h.bf16 %v2903
        %v2948 = vunpack.c.l.bf16 %v2906
        %v2949 = vunpack.c.l.bf16 %v2909
        %v2950 = vunpack.c.h.bf16 %v2906
        %v2951 = vunpack.c.h.bf16 %v2909
        %v2952 = vunpack.c.l.bf16 %v2912
        %v2953 = vunpack.c.l.bf16 %v2915
        %v2954 = vunpack.c.h.bf16 %v2912
        %v2955 = vunpack.c.h.bf16 %v2915
        %v2956 = vunpack.c.l.bf16 %v2918
        %v2957 = vunpack.c.l.bf16 %v2921
        %v2958 = vunpack.c.h.bf16 %v2918
        %v2959 = vunpack.c.h.bf16 %v2921
        %v2960 = vunpack.c.l.bf16 %v2924
        %v2961 = vunpack.c.l.bf16 %v2927
        %v2962 = vunpack.c.h.bf16 %v2924
        %v2963 = vunpack.c.h.bf16 %v2927
        %v2964 = vunpack.c.l.bf16 %v2930
        %v2965 = vunpack.c.l.bf16 %v2933
        %v2966 = vunpack.c.h.bf16 %v2930
        %v2967 = vunpack.c.h.bf16 %v2933
        %v2968 = vunpack.c.l.bf16 %v2936
        %v2969 = vunpack.c.l.bf16 %v2939
        %v2970 = vunpack.c.h.bf16 %v2936
        %v2971 = vunpack.c.h.bf16 %v2939
        %v2972 = vadd.f32 %v2940, %v2941
        %2973 = vadd.xlane.f32.xlu0 %v2972
        %v2974 = vpop.xlane.xlu0 %2973
        %v2975 = vadd.f32 %v2942, %v2943
        %2976 = vadd.xlane.f32.xlu0 %v2975
        %v2977 = vpop.xlane.xlu0 %2976
        %v2978 = vadd.f32 %v2944, %v2945
        %2979 = vadd.xlane.f32.xlu0 %v2978
        %v2980 = vpop.xlane.xlu0 %2979
        %v2981 = vadd.f32 %v2946, %v2947
        %2982 = vadd.xlane.f32.xlu0 %v2981
        %v2983 = vpop.xlane.xlu0 %2982
        %v2984 = vadd.f32 %v2948, %v2949
        %2985 = vadd.xlane.f32.xlu0 %v2984
        %v2986 = vpop.xlane.xlu0 %2985
        %v2987 = vadd.f32 %v2950, %v2951
        %2988 = vadd.xlane.f32.xlu0 %v2987
        %v2989 = vpop.xlane.xlu0 %2988
        %v2990 = vadd.f32 %v2952, %v2953
        %2991 = vadd.xlane.f32.xlu0 %v2990
        %v2992 = vpop.xlane.xlu0 %2991
        %v2993 = vadd.f32 %v2954, %v2955
        %2994 = vadd.xlane.f32.xlu0 %v2993
        %v2995 = vpop.xlane.xlu0 %2994
        %v2996 = vadd.f32 %v2956, %v2957
        %2997 = vadd.xlane.f32.xlu0 %v2996
        %v2998 = vpop.xlane.xlu0 %2997
        %v2999 = vadd.f32 %v2958, %v2959
        %3000 = vadd.xlane.f32.xlu0 %v2999
        %v3001 = vpop.xlane.xlu0 %3000
        %v3002 = vadd.f32 %v2960, %v2961
        %3003 = vadd.xlane.f32.xlu0 %v3002
        %v3004 = vpop.xlane.xlu0 %3003
        %v3005 = vadd.f32 %v2962, %v2963
        %3006 = vadd.xlane.f32.xlu0 %v3005
        %v3007 = vpop.xlane.xlu0 %3006
        %v3008 = vadd.f32 %v2964, %v2965
        %3009 = vadd.xlane.f32.xlu0 %v3008
        %v3010 = vpop.xlane.xlu0 %3009
        %v3011 = vadd.f32 %v2966, %v2967
        %3012 = vadd.xlane.f32.xlu0 %v3011
        %v3013 = vpop.xlane.xlu0 %3012
        %v3014 = vadd.f32 %v2968, %v2969
        %3015 = vadd.xlane.f32.xlu0 %v3014
        %v3016 = vpop.xlane.xlu0 %3015
        %v3017 = vadd.f32 %v2970, %v2971
        %3018 = vadd.xlane.f32.xlu0 %v3017
        %v3019 = vpop.xlane.xlu0 %3018
        %3020 = vmatprep.subr.bf16.mxu0 0
        %3021 = vmatpush1.bf16.msra.mxu0 %v2667
        %3022 = vmatprep.subr.bf16.mxu0 0
        %3023 = vmatpush1.bf16.msra.mxu0 %v2668
        %3024 = vmatprep.subr.bf16.mxu0 0
        %3025 = vmatpush1.bf16.msra.mxu0 %v2669
        %3026 = vmatprep.subr.bf16.mxu0 0
        %3027 = vmatpush1.bf16.msra.mxu0 %v2670
        %3028 = vmatprep.subr.bf16.mxu0 0
        %3029 = vmatpush1.bf16.msra.mxu0 %v2671
        %3030 = vmatprep.subr.bf16.mxu0 0
        %3031 = vmatpush1.bf16.msra.mxu0 %v2672
        %3032 = vmatprep.subr.bf16.mxu0 0
        %3033 = vmatpush1.bf16.msra.mxu0 %v2673
        %3034 = vmatprep.subr.bf16.mxu0 0
        %3035 = vmatpush1.bf16.msra.mxu0 %v2674
        %3036 = vmatprep.subr.bf16.mxu0 0
        %3037 = vmatpush1.bf16.msra.mxu0 %v2675
        %3038 = vmatprep.subr.bf16.mxu0 0
        %3039 = vmatpush1.bf16.msra.mxu0 %v2676
        %3040 = vmatprep.subr.bf16.mxu0 0
        %3041 = vmatpush1.bf16.msra.mxu0 %v2677
        %3042 = vmatprep.subr.bf16.mxu0 0
        %3043 = vmatpush1.bf16.msra.mxu0 %v2678
        %3044 = vmatprep.subr.bf16.mxu0 0
        %3045 = vmatpush1.bf16.msra.mxu0 %v2679
        %3046 = vmatprep.subr.bf16.mxu0 0
        %3047 = vmatpush1.bf16.msra.mxu0 %v2680
        %3048 = vmatprep.subr.bf16.mxu0 0
        %3049 = vmatpush1.bf16.msra.mxu0 %v2681
        %3050 = vmatprep.subr.bf16.mxu0 0
        %3051 = vmatpush1.bf16.msra.mxu0 %v2682
        %3052 = vmatprep.mubr.bf16.mxu0 %v2897
        %3053 = vmatmul.mubr.bf16.gmra.mrb[0].mxu0 %v2894
        %v3054 = vpop.f32.mrb[0].mxu0
        %v3055 = vadd.f32 0.0, %v3054
        %v3056 = vpop.f32.mrb[0].mxu0
        %v3057 = vpop.f32.mrb[0].mxu0
        %v3058 = vadd.f32 0.0, %v3057
        %v3059 = vpop.f32.mrb[0].mxu0
        %3060 = vmatprep.mubr.bf16.mxu0 %v2903
        %3061 = vmatmul.mubr.bf16.gmra.mrb[0].mxu0 %v2900
        %v3062 = vpop.f32.mrb[0].mxu0
        %v3063 = vadd.f32 0.0, %v3062
        %v3064 = vpop.f32.mrb[0].mxu0
        %v3065 = vpop.f32.mrb[0].mxu0
        %v3066 = vadd.f32 0.0, %v3065
        %v3067 = vpop.f32.mrb[0].mxu0
        %3068 = vmatprep.mubr.bf16.mxu0 %v2909
        %3069 = vmatmul.mubr.bf16.gmra.mrb[0].mxu0 %v2906
        %v3070 = vpop.f32.mrb[0].mxu0
        %v3071 = vadd.f32 0.0, %v3070
        %v3072 = vpop.f32.mrb[0].mxu0
        %v3073 = vpop.f32.mrb[0].mxu0
        %v3074 = vadd.f32 0.0, %v3073
        %v3075 = vpop.f32.mrb[0].mxu0
        %3076 = vmatprep.mubr.bf16.mxu0 %v2915
        %3077 = vmatmul.mubr.bf16.gmra.mrb[0].mxu0 %v2912
        %v3078 = vpop.f32.mrb[0].mxu0
        %v3079 = vadd.f32 0.0, %v3078
        %v3080 = vpop.f32.mrb[0].mxu0
        %v3081 = vpop.f32.mrb[0].mxu0
        %v3082 = vadd.f32 0.0, %v3081
        %v3083 = vpop.f32.mrb[0].mxu0
        %3084 = vmatprep.mubr.bf16.mxu0 %v2921
        %3085 = vmatmul.mubr.bf16.gmra.mrb[0].mxu0 %v2918
        %v3086 = vpop.f32.mrb[0].mxu0
        %v3087 = vadd.f32 0.0, %v3086
        %v3088 = vpop.f32.mrb[0].mxu0
        %v3089 = vpop.f32.mrb[0].mxu0
        %v3090 = vadd.f32 0.0, %v3089
        %v3091 = vpop.f32.mrb[0].mxu0
        %3092 = vmatprep.mubr.bf16.mxu0 %v2927
        %3093 = vmatmul.mubr.bf16.gmra.mrb[0].mxu0 %v2924
        %v3094 = vpop.f32.mrb[0].mxu0
        %v3095 = vadd.f32 0.0, %v3094
        %v3096 = vpop.f32.mrb[0].mxu0
        %v3097 = vpop.f32.mrb[0].mxu0
        %v3098 = vadd.f32 0.0, %v3097
        %v3099 = vpop.f32.mrb[0].mxu0
        %3100 = vmatprep.mubr.bf16.mxu0 %v2933
        %3101 = vmatmul.mubr.bf16.gmra.mrb[0].mxu0 %v2930
        %v3102 = vpop.f32.mrb[0].mxu0
        %v3103 = vadd.f32 0.0, %v3102
        %v3104 = vpop.f32.mrb[0].mxu0
        %v3105 = vpop.f32.mrb[0].mxu0
        %v3106 = vadd.f32 0.0, %v3105
        %v3107 = vpop.f32.mrb[0].mxu0
        %3108 = vmatprep.mubr.bf16.mxu0 %v2939
        %3109 = vmatmul.mubr.bf16.gmra.mrb[0].mxu0 %v2936
        %v3110 = vpop.f32.mrb[0].mxu0
        %v3111 = vadd.f32 0.0, %v3110
        %v3112 = vpop.f32.mrb[0].mxu0
        %v3113 = vpop.f32.mrb[0].mxu0
        %v3114 = vadd.f32 0.0, %v3113
        %v3115 = vpop.f32.mrb[0].mxu0
        %3116 = vdwg.mxu0
        %v3117 = vrcp.pop %v2974
        %v3118 = vrcp.pop %v2977
        %v3119 = vrcp.pop %v2980
        %v3120 = vrcp.pop %v2983
        %v3121 = vrcp.pop %v2986
        %v3122 = vrcp.pop %v2989
        %v3123 = vrcp.pop %v2992
        %v3124 = vrcp.pop %v2995
        %v3125 = vrcp.pop %v2998
        %v3126 = vrcp.pop %v3001
        %v3127 = vrcp.pop %v3004
        %v3128 = vrcp.pop %v3007
        %v3129 = vrcp.pop %v3010
        %v3130 = vrcp.pop %v3013
        %v3131 = vrcp.pop %v3016
        %v3132 = vrcp.pop %v3019
        %v3133 = vmul.f32 %v3055, %v3117
        %v3134 = vmul.f32 %v3058, %v3118
        %v3135 = vmul.f32 %v3063, %v3119
        %v3136 = vmul.f32 %v3066, %v3120
        %v3137 = vmul.f32 %v3071, %v3121
        %v3138 = vmul.f32 %v3074, %v3122
        %v3139 = vmul.f32 %v3079, %v3123
        %v3140 = vmul.f32 %v3082, %v3124
        %v3141 = vmul.f32 %v3087, %v3125
        %v3142 = vmul.f32 %v3090, %v3126
        %v3143 = vmul.f32 %v3095, %v3127
        %v3144 = vmul.f32 %v3098, %v3128
        %v3145 = vmul.f32 %v3103, %v3129
        %v3146 = vmul.f32 %v3106, %v3130
        %v3147 = vmul.f32 %v3111, %v3131
        %v3148 = vmul.f32 %v3114, %v3132
        %v3149 = vpack.c.bf16 %v3134, %v3133
        %v3150 = vpack.c.bf16 %v3136, %v3135
        %v3151 = vpack.c.bf16 %v3138, %v3137
        %v3152 = vpack.c.bf16 %v3140, %v3139
        %v3153 = vpack.c.bf16 %v3142, %v3141
        %v3154 = vpack.c.bf16 %v3144, %v3143
        %v3155 = vpack.c.bf16 %v3146, %v3145
        %v3156 = vpack.c.bf16 %v3148, %v3147
        %3157 = vst [vmem:[#allocation4 + $0x8] sm:$0xff] %v3149
        %3158 = vst [vmem:[#allocation4 + $0x18] sm:$0xff] %v3150
        %3159 = vst [vmem:[#allocation4 + $0x28] sm:$0xff] %v3151
        %3160 = vst [vmem:[#allocation4 + $0x38] sm:$0xff] %v3152
        %3161 = vst [vmem:[#allocation4 + $0x48] sm:$0xff] %v3153
        %3162 = vst [vmem:[#allocation4 + $0x58] sm:$0xff] %v3154
        %3163 = vst [vmem:[#allocation4 + $0x68] sm:$0xff] %v3155
        %3164 = vst [vmem:[#allocation4 + $0x78] sm:$0xff] %v3156
        %v3165 = vld [vmem:[#allocation4] sm:$0xff]
        %v3166 = vld [vmem:[#allocation4 + $0x8] sm:$0xff]
        %v3167 = vld [vmem:[#allocation4 + $0x10] sm:$0xff]
        %v3168 = vld [vmem:[#allocation4 + $0x18] sm:$0xff]
        %v3169 = vld [vmem:[#allocation4 + $0x20] sm:$0xff]
        %v3170 = vld [vmem:[#allocation4 + $0x28] sm:$0xff]
        %v3171 = vld [vmem:[#allocation4 + $0x30] sm:$0xff]
        %v3172 = vld [vmem:[#allocation4 + $0x38] sm:$0xff]
        %v3173 = vld [vmem:[#allocation4 + $0x40] sm:$0xff]
        %v3174 = vld [vmem:[#allocation4 + $0x48] sm:$0xff]
        %v3175 = vld [vmem:[#allocation4 + $0x50] sm:$0xff]
        %v3176 = vld [vmem:[#allocation4 + $0x58] sm:$0xff]
        %v3177 = vld [vmem:[#allocation4 + $0x60] sm:$0xff]
        %v3178 = vld [vmem:[#allocation4 + $0x68] sm:$0xff]
        %v3179 = vld [vmem:[#allocation4 + $0x70] sm:$0xff]
        %v3180 = vld [vmem:[#allocation4 + $0x78] sm:$0xff]
        %v3181 = vld [vmem:[#allocation11] sm:$0xff]
        %v3182 = vld [vmem:[#allocation11 + $0x8] sm:$0xff]
        %v3183 = vld [vmem:[#allocation11 + $0x10] sm:$0xff]
        %v3184 = vld [vmem:[#allocation11 + $0x18] sm:$0xff]
        %v3185 = vld [vmem:[#allocation11 + $0x20] sm:$0xff]
        %v3186 = vld [vmem:[#allocation11 + $0x28] sm:$0xff]
        %v3187 = vld [vmem:[#allocation11 + $0x30] sm:$0xff]
        %v3188 = vld [vmem:[#allocation11 + $0x38] sm:$0xff]
        %v3189 = vld [vmem:[#allocation11 + $0x40] sm:$0xff]
        %v3190 = vld [vmem:[#allocation11 + $0x48] sm:$0xff]
        %v3191 = vld [vmem:[#allocation11 + $0x50] sm:$0xff]
        %v3192 = vld [vmem:[#allocation11 + $0x58] sm:$0xff]
        %v3193 = vld [vmem:[#allocation11 + $0x60] sm:$0xff]
        %v3194 = vld [vmem:[#allocation11 + $0x68] sm:$0xff]
        %v3195 = vld [vmem:[#allocation11 + $0x70] sm:$0xff]
        %v3196 = vld [vmem:[#allocation11 + $0x78] sm:$0xff]
        %v3197 = vld [vmem:[#allocation11 + $0x80] sm:$0xff]
        %v3198 = vld [vmem:[#allocation11 + $0x88] sm:$0xff]
        %v3199 = vld [vmem:[#allocation11 + $0x90] sm:$0xff]
        %v3200 = vld [vmem:[#allocation11 + $0x98] sm:$0xff]
        %v3201 = vld [vmem:[#allocation11 + $0xa0] sm:$0xff]
        %v3202 = vld [vmem:[#allocation11 + $0xa8] sm:$0xff]
        %v3203 = vld [vmem:[#allocation11 + $0xb0] sm:$0xff]
        %v3204 = vld [vmem:[#allocation11 + $0xb8] sm:$0xff]
        %v3205 = vld [vmem:[#allocation11 + $0xc0] sm:$0xff]
        %v3206 = vld [vmem:[#allocation11 + $0xc8] sm:$0xff]
        %v3207 = vld [vmem:[#allocation11 + $0xd0] sm:$0xff]
        %v3208 = vld [vmem:[#allocation11 + $0xd8] sm:$0xff]
        %v3209 = vld [vmem:[#allocation11 + $0xe0] sm:$0xff]
        %v3210 = vld [vmem:[#allocation11 + $0xe8] sm:$0xff]
        %v3211 = vld [vmem:[#allocation11 + $0xf0] sm:$0xff]
        %v3212 = vld [vmem:[#allocation11 + $0xf8] sm:$0xff]
        %v3213 = vld [vmem:[%s6] sm:$0x3]
        %v3215 = vlaneseq
        %v3216 = vshrl.u32 %v3215, 7
        %v3217 = vsub.s32 0, %v3216
        %v3218 = vrot.slane %v3213, %v3217
        %v3219 = vlaneseq
        %v3220 = vshrl.u32 %v3219, 7
        %v3221 = vsub.s32 1, %v3220
        %v3222 = vrot.slane %v3213, %v3221
        %v3257 = vunpack.c.l.b16 %v3181
        %v3258 = vunpack.c.h.b16 %v3181
        %v3259 = vunpack.c.l.b16 %v3182
        %v3260 = vunpack.c.h.b16 %v3182
        %v3261 = vunpack.c.l.b16 %v3183
        %v3262 = vunpack.c.h.b16 %v3183
        %v3263 = vunpack.c.l.b16 %v3184
        %v3264 = vunpack.c.h.b16 %v3184
        %v3265 = vunpack.c.l.b16 %v3185
        %v3266 = vunpack.c.h.b16 %v3185
        %v3267 = vunpack.c.l.b16 %v3186
        %v3268 = vunpack.c.h.b16 %v3186
        %v3269 = vunpack.c.l.b16 %v3187
        %v3270 = vunpack.c.h.b16 %v3187
        %v3271 = vunpack.c.l.b16 %v3188
        %v3272 = vunpack.c.h.b16 %v3188
        %v3273 = vunpack.c.l.b16 %v3189
        %v3274 = vunpack.c.h.b16 %v3189
        %v3275 = vunpack.c.l.b16 %v3190
        %v3276 = vunpack.c.h.b16 %v3190
        %v3277 = vunpack.c.l.b16 %v3191
        %v3278 = vunpack.c.h.b16 %v3191
        %v3279 = vunpack.c.l.b16 %v3192
        %v3280 = vunpack.c.h.b16 %v3192
        %v3281 = vunpack.c.l.b16 %v3193
        %v3282 = vunpack.c.h.b16 %v3193
        %v3283 = vunpack.c.l.b16 %v3194
        %v3284 = vunpack.c.h.b16 %v3194
        %v3285 = vunpack.c.l.b16 %v3195
        %v3286 = vunpack.c.h.b16 %v3195
        %v3287 = vunpack.c.l.b16 %v3196
        %v3288 = vunpack.c.h.b16 %v3196
        %v3289 = vunpack.c.l.b16 %v3197
        %v3290 = vunpack.c.h.b16 %v3197
        %v3291 = vunpack.c.l.b16 %v3198
        %v3292 = vunpack.c.h.b16 %v3198
        %v3293 = vunpack.c.l.b16 %v3199
        %v3294 = vunpack.c.h.b16 %v3199
        %v3295 = vunpack.c.l.b16 %v3200
        %v3296 = vunpack.c.h.b16 %v3200
        %v3297 = vunpack.c.l.b16 %v3201
        %v3298 = vunpack.c.h.b16 %v3201
        %v3299 = vunpack.c.l.b16 %v3202
        %v3300 = vunpack.c.h.b16 %v3202
        %v3301 = vunpack.c.l.b16 %v3203
        %v3302 = vunpack.c.h.b16 %v3203
        %v3303 = vunpack.c.l.b16 %v3204
        %v3304 = vunpack.c.h.b16 %v3204
        %v3305 = vunpack.c.l.b16 %v3205
        %v3306 = vunpack.c.h.b16 %v3205
        %v3307 = vunpack.c.l.b16 %v3206
        %v3308 = vunpack.c.h.b16 %v3206
        %v3309 = vunpack.c.l.b16 %v3207
        %v3310 = vunpack.c.h.b16 %v3207
        %v3311 = vunpack.c.l.b16 %v3208
        %v3312 = vunpack.c.h.b16 %v3208
        %v3313 = vunpack.c.l.b16 %v3209
        %v3314 = vunpack.c.h.b16 %v3209
        %v3315 = vunpack.c.l.b16 %v3210
        %v3316 = vunpack.c.h.b16 %v3210
        %v3317 = vunpack.c.l.b16 %v3211
        %v3318 = vunpack.c.h.b16 %v3211
        %v3319 = vunpack.c.l.b16 %v3212
        %v3320 = vunpack.c.h.b16 %v3212
        %v3321 = vpack.c.b16 %v3259, %v3257
        %v3322 = vpack.c.b16 %v3260, %v3258
        %v3323 = vpack.c.b16 %v3263, %v3261
        %v3324 = vpack.c.b16 %v3264, %v3262
        %v3325 = vpack.c.b16 %v3267, %v3265
        %v3326 = vpack.c.b16 %v3268, %v3266
        %v3327 = vpack.c.b16 %v3271, %v3269
        %v3328 = vpack.c.b16 %v3272, %v3270
        %v3329 = vpack.c.b16 %v3275, %v3273
        %v3330 = vpack.c.b16 %v3276, %v3274
        %v3331 = vpack.c.b16 %v3279, %v3277
        %v3332 = vpack.c.b16 %v3280, %v3278
        %v3333 = vpack.c.b16 %v3283, %v3281
        %v3334 = vpack.c.b16 %v3284, %v3282
        %v3335 = vpack.c.b16 %v3287, %v3285
        %v3336 = vpack.c.b16 %v3288, %v3286
        %v3337 = vpack.c.b16 %v3291, %v3289
        %v3338 = vpack.c.b16 %v3292, %v3290
        %v3339 = vpack.c.b16 %v3295, %v3293
        %v3340 = vpack.c.b16 %v3296, %v3294
        %v3341 = vpack.c.b16 %v3299, %v3297
        %v3342 = vpack.c.b16 %v3300, %v3298
        %v3343 = vpack.c.b16 %v3303, %v3301
        %v3344 = vpack.c.b16 %v3304, %v3302
        %v3345 = vpack.c.b16 %v3307, %v3305
        %v3346 = vpack.c.b16 %v3308, %v3306
        %v3347 = vpack.c.b16 %v3311, %v3309
        %v3348 = vpack.c.b16 %v3312, %v3310
        %v3349 = vpack.c.b16 %v3315, %v3313
        %v3350 = vpack.c.b16 %v3316, %v3314
        %v3351 = vpack.c.b16 %v3319, %v3317
        %v3352 = vpack.c.b16 %v3320, %v3318
        %3385 = vmatprep.subr.bf16.mxu0 %v3322
        %3386 = vmatpush1.bf16.msra.mxu0 %v3321
        %3387 = vmatprep.subr.bf16.mxu0 %v3324
        %3388 = vmatpush1.bf16.msra.mxu0 %v3323
        %3389 = vmatprep.subr.bf16.mxu0 %v3326
        %3390 = vmatpush1.bf16.msra.mxu0 %v3325
        %3391 = vmatprep.subr.bf16.mxu0 %v3328
        %3392 = vmatpush1.bf16.msra.mxu0 %v3327
        %3393 = vmatprep.subr.bf16.mxu0 %v3330
        %3394 = vmatpush1.bf16.msra.mxu0 %v3329
        %3395 = vmatprep.subr.bf16.mxu0 %v3332
        %3396 = vmatpush1.bf16.msra.mxu0 %v3331
        %3397 = vmatprep.subr.bf16.mxu0 %v3334
        %3398 = vmatpush1.bf16.msra.mxu0 %v3333
        %3399 = vmatprep.subr.bf16.mxu0 %v3336
        %3400 = vmatpush1.bf16.msra.mxu0 %v3335
        %3401 = vmatprep.subr.bf16.mxu0 %v3338
        %3402 = vmatpush1.bf16.msra.mxu0 %v3337
        %3403 = vmatprep.subr.bf16.mxu0 %v3340
        %3404 = vmatpush1.bf16.msra.mxu0 %v3339
        %3405 = vmatprep.subr.bf16.mxu0 %v3342
        %3406 = vmatpush1.bf16.msra.mxu0 %v3341
        %3407 = vmatprep.subr.bf16.mxu0 %v3344
        %3408 = vmatpush1.bf16.msra.mxu0 %v3343
        %3409 = vmatprep.subr.bf16.mxu0 %v3346
        %3410 = vmatpush1.bf16.msra.mxu0 %v3345
        %3411 = vmatprep.subr.bf16.mxu0 %v3348
        %3412 = vmatpush1.bf16.msra.mxu0 %v3347
        %3413 = vmatprep.subr.bf16.mxu0 %v3350
        %3414 = vmatpush1.bf16.msra.mxu0 %v3349
        %3415 = vmatprep.subr.bf16.mxu0 %v3352
        %3416 = vmatpush1.bf16.msra.mxu0 %v3351
        %3417 = vmatprep.mubr.bf16.mxu0 %v3166
        %3418 = vmatmul.mubr.bf16.gmra.mrb[0].mxu0 %v3165
        %v3419 = vpop.f32.mrb[0].mxu0
        %v3420 = vadd.f32 %v3218, %v3419
        %v3421 = vpop.f32.mrb[0].mxu0
        %v3422 = vadd.f32 %v3222, %v3421
        %v3423 = vpop.f32.mrb[0].mxu0
        %v3424 = vadd.f32 %v3218, %v3423
        %v3425 = vpop.f32.mrb[0].mxu0
        %v3426 = vadd.f32 %v3222, %v3425
        %3427 = vmatprep.mubr.bf16.mxu0 %v3168
        %3428 = vmatmul.mubr.bf16.gmra.mrb[0].mxu0 %v3167
        %v3429 = vpop.f32.mrb[0].mxu0
        %v3430 = vadd.f32 %v3218, %v3429
        %v3431 = vpop.f32.mrb[0].mxu0
        %v3432 = vadd.f32 %v3222, %v3431
        %v3433 = vpop.f32.mrb[0].mxu0
        %v3434 = vadd.f32 %v3218, %v3433
        %v3435 = vpop.f32.mrb[0].mxu0
        %v3436 = vadd.f32 %v3222, %v3435
        %3437 = vmatprep.mubr.bf16.mxu0 %v3170
        %3438 = vmatmul.mubr.bf16.gmra.mrb[0].mxu0 %v3169
        %v3439 = vpop.f32.mrb[0].mxu0
        %v3440 = vadd.f32 %v3218, %v3439
        %v3441 = vpop.f32.mrb[0].mxu0
        %v3442 = vadd.f32 %v3222, %v3441
        %v3443 = vpop.f32.mrb[0].mxu0
        %v3444 = vadd.f32 %v3218, %v3443
        %v3445 = vpop.f32.mrb[0].mxu0
        %v3446 = vadd.f32 %v3222, %v3445
        %3447 = vmatprep.mubr.bf16.mxu0 %v3172
        %3448 = vmatmul.mubr.bf16.gmra.mrb[0].mxu0 %v3171
        %v3449 = vpop.f32.mrb[0].mxu0
        %v3450 = vadd.f32 %v3218, %v3449
        %v3451 = vpop.f32.mrb[0].mxu0
        %v3452 = vadd.f32 %v3222, %v3451
        %v3453 = vpop.f32.mrb[0].mxu0
        %v3454 = vadd.f32 %v3218, %v3453
        %v3455 = vpop.f32.mrb[0].mxu0
        %v3456 = vadd.f32 %v3222, %v3455
        %3457 = vmatprep.mubr.bf16.mxu0 %v3174
        %3458 = vmatmul.mubr.bf16.gmra.mrb[0].mxu0 %v3173
        %v3459 = vpop.f32.mrb[0].mxu0
        %v3460 = vadd.f32 %v3218, %v3459
        %v3461 = vpop.f32.mrb[0].mxu0
        %v3462 = vadd.f32 %v3222, %v3461
        %v3463 = vpop.f32.mrb[0].mxu0
        %v3464 = vadd.f32 %v3218, %v3463
        %v3465 = vpop.f32.mrb[0].mxu0
        %v3466 = vadd.f32 %v3222, %v3465
        %3467 = vmatprep.mubr.bf16.mxu0 %v3176
        %3468 = vmatmul.mubr.bf16.gmra.mrb[0].mxu0 %v3175
        %v3469 = vpop.f32.mrb[0].mxu0
        %v3470 = vadd.f32 %v3218, %v3469
        %v3471 = vpop.f32.mrb[0].mxu0
        %v3472 = vadd.f32 %v3222, %v3471
        %v3473 = vpop.f32.mrb[0].mxu0
        %v3474 = vadd.f32 %v3218, %v3473
        %v3475 = vpop.f32.mrb[0].mxu0
        %v3476 = vadd.f32 %v3222, %v3475
        %3477 = vmatprep.mubr.bf16.mxu0 %v3178
        %3478 = vmatmul.mubr.bf16.gmra.mrb[0].mxu0 %v3177
        %v3479 = vpop.f32.mrb[0].mxu0
        %v3480 = vadd.f32 %v3218, %v3479
        %v3481 = vpop.f32.mrb[0].mxu0
        %v3482 = vadd.f32 %v3222, %v3481
        %v3483 = vpop.f32.mrb[0].mxu0
        %v3484 = vadd.f32 %v3218, %v3483
        %v3485 = vpop.f32.mrb[0].mxu0
        %v3486 = vadd.f32 %v3222, %v3485
        %3487 = vmatprep.mubr.bf16.mxu0 %v3180
        %3488 = vmatmul.mubr.bf16.gmra.mrb[0].mxu0 %v3179
        %v3489 = vpop.f32.mrb[0].mxu0
        %v3490 = vadd.f32 %v3218, %v3489
        %v3491 = vpop.f32.mrb[0].mxu0
        %v3492 = vadd.f32 %v3222, %v3491
        %v3493 = vpop.f32.mrb[0].mxu0
        %v3494 = vadd.f32 %v3218, %v3493
        %v3495 = vpop.f32.mrb[0].mxu0
        %v3496 = vadd.f32 %v3222, %v3495
        %3497 = vdwg.mxu0
        %v3498 = vadd.f32 %v1756, %v3420
        %v3499 = vadd.f32 %v1757, %v3422
        %v3500 = vadd.f32 %v1758, %v3424
        %v3501 = vadd.f32 %v1759, %v3426
        %v3502 = vadd.f32 %v1760, %v3430
        %v3503 = vadd.f32 %v1761, %v3432
        %v3504 = vadd.f32 %v1762, %v3434
        %v3505 = vadd.f32 %v1763, %v3436
        %v3506 = vadd.f32 %v1764, %v3440
        %v3507 = vadd.f32 %v1765, %v3442
        %v3508 = vadd.f32 %v1766, %v3444
        %v3509 = vadd.f32 %v1767, %v3446
        %v3510 = vadd.f32 %v1768, %v3450
        %v3511 = vadd.f32 %v1769, %v3452
        %v3512 = vadd.f32 %v1770, %v3454
        %v3513 = vadd.f32 %v1771, %v3456
        %v3514 = vadd.f32 %v1772, %v3460
        %v3515 = vadd.f32 %v1773, %v3462
        %v3516 = vadd.f32 %v1774, %v3464
        %v3517 = vadd.f32 %v1775, %v3466
        %v3518 = vadd.f32 %v1776, %v3470
        %v3519 = vadd.f32 %v1777, %v3472
        %v3520 = vadd.f32 %v1778, %v3474
        %v3521 = vadd.f32 %v1779, %v3476
        %v3522 = vadd.f32 %v1780, %v3480
        %v3523 = vadd.f32 %v1781, %v3482
        %v3524 = vadd.f32 %v1782, %v3484
        %v3525 = vadd.f32 %v1783, %v3486
        %v3526 = vadd.f32 %v1784, %v3490
        %v3527 = vadd.f32 %v1785, %v3492
        %v3528 = vadd.f32 %v1786, %v3494
        %v3529 = vadd.f32 %v1787, %v3496
        %v3530 = vadd.f32 %v3498, %v3499
        %3531 = vadd.xlane.f32.xlu0 %v3530
        %v3532 = vpop.xlane.xlu0 %3531
        %v3533 = vadd.f32 %v3500, %v3501
        %3534 = vadd.xlane.f32.xlu0 %v3533
        %v3535 = vpop.xlane.xlu0 %3534
        %v3536 = vadd.f32 %v3502, %v3503
        %3537 = vadd.xlane.f32.xlu0 %v3536
        %v3538 = vpop.xlane.xlu0 %3537
        %v3539 = vadd.f32 %v3504, %v3505
        %3540 = vadd.xlane.f32.xlu0 %v3539
        %v3541 = vpop.xlane.xlu0 %3540
        %v3542 = vadd.f32 %v3506, %v3507
        %3543 = vadd.xlane.f32.xlu0 %v3542
        %v3544 = vpop.xlane.xlu0 %3543
        %v3545 = vadd.f32 %v3508, %v3509
        %3546 = vadd.xlane.f32.xlu0 %v3545
        %v3547 = vpop.xlane.xlu0 %3546
        %v3548 = vadd.f32 %v3510, %v3511
        %3549 = vadd.xlane.f32.xlu0 %v3548
        %v3550 = vpop.xlane.xlu0 %3549
        %v3551 = vadd.f32 %v3512, %v3513
        %3552 = vadd.xlane.f32.xlu0 %v3551
        %v3553 = vpop.xlane.xlu0 %3552
        %v3554 = vadd.f32 %v3514, %v3515
        %3555 = vadd.xlane.f32.xlu0 %v3554
        %v3556 = vpop.xlane.xlu0 %3555
        %v3557 = vadd.f32 %v3516, %v3517
        %3558 = vadd.xlane.f32.xlu0 %v3557
        %v3559 = vpop.xlane.xlu0 %3558
        %v3560 = vadd.f32 %v3518, %v3519
        %3561 = vadd.xlane.f32.xlu0 %v3560
        %v3562 = vpop.xlane.xlu0 %3561
        %v3563 = vadd.f32 %v3520, %v3521
        %3564 = vadd.xlane.f32.xlu0 %v3563
        %v3565 = vpop.xlane.xlu0 %3564
        %v3566 = vadd.f32 %v3522, %v3523
        %3567 = vadd.xlane.f32.xlu0 %v3566
        %v3568 = vpop.xlane.xlu0 %3567
        %v3569 = vadd.f32 %v3524, %v3525
        %3570 = vadd.xlane.f32.xlu0 %v3569
        %v3571 = vpop.xlane.xlu0 %3570
        %v3572 = vadd.f32 %v3526, %v3527
        %3573 = vadd.xlane.f32.xlu0 %v3572
        %v3574 = vpop.xlane.xlu0 %3573
        %v3575 = vadd.f32 %v3528, %v3529
        %3576 = vadd.xlane.f32.xlu0 %v3575
        %v3577 = vpop.xlane.xlu0 %3576
        %v3578 = vrcp.pop 256.0
        %v3579 = vmul.f32 %v3532, %v3578
        %v3580 = vmul.f32 %v3535, %v3578
        %v3581 = vmul.f32 %v3538, %v3578
        %v3582 = vmul.f32 %v3541, %v3578
        %v3583 = vmul.f32 %v3544, %v3578
        %v3584 = vmul.f32 %v3547, %v3578
        %v3585 = vmul.f32 %v3550, %v3578
        %v3586 = vmul.f32 %v3553, %v3578
        %v3587 = vmul.f32 %v3556, %v3578
        %v3588 = vmul.f32 %v3559, %v3578
        %v3589 = vmul.f32 %v3562, %v3578
        %v3590 = vmul.f32 %v3565, %v3578
        %v3591 = vmul.f32 %v3568, %v3578
        %v3592 = vmul.f32 %v3571, %v3578
        %v3593 = vmul.f32 %v3574, %v3578
        %v3594 = vmul.f32 %v3577, %v3578
        %v3595 = vsub.f32 %v3498, %v3579
        %v3596 = vsub.f32 %v3499, %v3579
        %v3597 = vsub.f32 %v3500, %v3580
        %v3598 = vsub.f32 %v3501, %v3580
        %v3599 = vsub.f32 %v3502, %v3581
        %v3600 = vsub.f32 %v3503, %v3581
        %v3601 = vsub.f32 %v3504, %v3582
        %v3602 = vsub.f32 %v3505, %v3582
        %v3603 = vsub.f32 %v3506, %v3583
        %v3604 = vsub.f32 %v3507, %v3583
        %v3605 = vsub.f32 %v3508, %v3584
        %v3606 = vsub.f32 %v3509, %v3584
        %v3607 = vsub.f32 %v3510, %v3585
        %v3608 = vsub.f32 %v3511, %v3585
        %v3609 = vsub.f32 %v3512, %v3586
        %v3610 = vsub.f32 %v3513, %v3586
        %v3611 = vsub.f32 %v3514, %v3587
        %v3612 = vsub.f32 %v3515, %v3587
        %v3613 = vsub.f32 %v3516, %v3588
        %v3614 = vsub.f32 %v3517, %v3588
        %v3615 = vsub.f32 %v3518, %v3589
        %v3616 = vsub.f32 %v3519, %v3589
        %v3617 = vsub.f32 %v3520, %v3590
        %v3618 = vsub.f32 %v3521, %v3590
        %v3619 = vsub.f32 %v3522, %v3591
        %v3620 = vsub.f32 %v3523, %v3591
        %v3621 = vsub.f32 %v3524, %v3592
        %v3622 = vsub.f32 %v3525, %v3592
        %v3623 = vsub.f32 %v3526, %v3593
        %v3624 = vsub.f32 %v3527, %v3593
        %v3625 = vsub.f32 %v3528, %v3594
        %v3626 = vsub.f32 %v3529, %v3594
        %v3627 = vmul.f32 %v3595, %v3595
        %v3628 = vmul.f32 %v3596, %v3596
        %v3629 = vmul.f32 %v3597, %v3597
        %v3630 = vmul.f32 %v3598, %v3598
        %v3631 = vmul.f32 %v3599, %v3599
        %v3632 = vmul.f32 %v3600, %v3600
        %v3633 = vmul.f32 %v3601, %v3601
        %v3634 = vmul.f32 %v3602, %v3602
        %v3635 = vmul.f32 %v3603, %v3603
        %v3636 = vmul.f32 %v3604, %v3604
        %v3637 = vmul.f32 %v3605, %v3605
        %v3638 = vmul.f32 %v3606, %v3606
        %v3639 = vmul.f32 %v3607, %v3607
        %v3640 = vmul.f32 %v3608, %v3608
        %v3641 = vmul.f32 %v3609, %v3609
        %v3642 = vmul.f32 %v3610, %v3610
        %v3643 = vmul.f32 %v3611, %v3611
        %v3644 = vmul.f32 %v3612, %v3612
        %v3645 = vmul.f32 %v3613, %v3613
        %v3646 = vmul.f32 %v3614, %v3614
        %v3647 = vmul.f32 %v3615, %v3615
        %v3648 = vmul.f32 %v3616, %v3616
        %v3649 = vmul.f32 %v3617, %v3617
        %v3650 = vmul.f32 %v3618, %v3618
        %v3651 = vmul.f32 %v3619, %v3619
        %v3652 = vmul.f32 %v3620, %v3620
        %v3653 = vmul.f32 %v3621, %v3621
        %v3654 = vmul.f32 %v3622, %v3622
        %v3655 = vmul.f32 %v3623, %v3623
        %v3656 = vmul.f32 %v3624, %v3624
        %v3657 = vmul.f32 %v3625, %v3625
        %v3658 = vmul.f32 %v3626, %v3626
        %v3659 = vadd.f32 %v3627, %v3628
        %3660 = vadd.xlane.f32.xlu0 %v3659
        %v3661 = vpop.xlane.xlu0 %3660
        %v3662 = vadd.f32 %v3629, %v3630
        %3663 = vadd.xlane.f32.xlu0 %v3662
        %v3664 = vpop.xlane.xlu0 %3663
        %v3665 = vadd.f32 %v3631, %v3632
        %3666 = vadd.xlane.f32.xlu0 %v3665
        %v3667 = vpop.xlane.xlu0 %3666
        %v3668 = vadd.f32 %v3633, %v3634
        %3669 = vadd.xlane.f32.xlu0 %v3668
        %v3670 = vpop.xlane.xlu0 %3669
        %v3671 = vadd.f32 %v3635, %v3636
        %3672 = vadd.xlane.f32.xlu0 %v3671
        %v3673 = vpop.xlane.xlu0 %3672
        %v3674 = vadd.f32 %v3637, %v3638
        %3675 = vadd.xlane.f32.xlu0 %v3674
        %v3676 = vpop.xlane.xlu0 %3675
        %v3677 = vadd.f32 %v3639, %v3640
        %3678 = vadd.xlane.f32.xlu0 %v3677
        %v3679 = vpop.xlane.xlu0 %3678
        %v3680 = vadd.f32 %v3641, %v3642
        %3681 = vadd.xlane.f32.xlu0 %v3680
        %v3682 = vpop.xlane.xlu0 %3681
        %v3683 = vadd.f32 %v3643, %v3644
        %3684 = vadd.xlane.f32.xlu0 %v3683
        %v3685 = vpop.xlane.xlu0 %3684
        %v3686 = vadd.f32 %v3645, %v3646
        %3687 = vadd.xlane.f32.xlu0 %v3686
        %v3688 = vpop.xlane.xlu0 %3687
        %v3689 = vadd.f32 %v3647, %v3648
        %3690 = vadd.xlane.f32.xlu0 %v3689
        %v3691 = vpop.xlane.xlu0 %3690
        %v3692 = vadd.f32 %v3649, %v3650
        %3693 = vadd.xlane.f32.xlu0 %v3692
        %v3694 = vpop.xlane.xlu0 %3693
        %v3695 = vadd.f32 %v3651, %v3652
        %3696 = vadd.xlane.f32.xlu0 %v3695
        %v3697 = vpop.xlane.xlu0 %3696
        %v3698 = vadd.f32 %v3653, %v3654
        %3699 = vadd.xlane.f32.xlu0 %v3698
        %v3700 = vpop.xlane.xlu0 %3699
        %v3701 = vadd.f32 %v3655, %v3656
        %3702 = vadd.xlane.f32.xlu0 %v3701
        %v3703 = vpop.xlane.xlu0 %3702
        %v3704 = vadd.f32 %v3657, %v3658
        %3705 = vadd.xlane.f32.xlu0 %v3704
        %v3706 = vpop.xlane.xlu0 %3705
        %v3707 = vmul.f32 %v3661, %v3578
        %v3708 = vmul.f32 %v3664, %v3578
        %v3709 = vmul.f32 %v3667, %v3578
        %v3710 = vmul.f32 %v3670, %v3578
        %v3711 = vmul.f32 %v3673, %v3578
        %v3712 = vmul.f32 %v3676, %v3578
        %v3713 = vmul.f32 %v3679, %v3578
        %v3714 = vmul.f32 %v3682, %v3578
        %v3715 = vmul.f32 %v3685, %v3578
        %v3716 = vmul.f32 %v3688, %v3578
        %v3717 = vmul.f32 %v3691, %v3578
        %v3718 = vmul.f32 %v3694, %v3578
        %v3719 = vmul.f32 %v3697, %v3578
        %v3720 = vmul.f32 %v3700, %v3578
        %v3721 = vmul.f32 %v3703, %v3578
        %v3722 = vmul.f32 %v3706, %v3578
        %v3723 = vadd.f32 %v3707, 1e-06
        %v3724 = vadd.f32 %v3708, 1e-06
        %v3725 = vadd.f32 %v3709, 1e-06
        %v3726 = vadd.f32 %v3710, 1e-06
        %v3727 = vadd.f32 %v3711, 1e-06
        %v3728 = vadd.f32 %v3712, 1e-06
        %v3729 = vadd.f32 %v3713, 1e-06
        %v3730 = vadd.f32 %v3714, 1e-06
        %v3731 = vadd.f32 %v3715, 1e-06
        %v3732 = vadd.f32 %v3716, 1e-06
        %v3733 = vadd.f32 %v3717, 1e-06
        %v3734 = vadd.f32 %v3718, 1e-06
        %v3735 = vadd.f32 %v3719, 1e-06
        %v3736 = vadd.f32 %v3720, 1e-06
        %v3737 = vadd.f32 %v3721, 1e-06
        %v3738 = vadd.f32 %v3722, 1e-06
        %v3739 = vrsqrt.pop %v3723
        %v3740 = vrsqrt.pop %v3724
        %v3741 = vrsqrt.pop %v3725
        %v3742 = vrsqrt.pop %v3726
        %v3743 = vrsqrt.pop %v3727
        %v3744 = vrsqrt.pop %v3728
        %v3745 = vrsqrt.pop %v3729
        %v3746 = vrsqrt.pop %v3730
        %v3747 = vrsqrt.pop %v3731
        %v3748 = vrsqrt.pop %v3732
        %v3749 = vrsqrt.pop %v3733
        %v3750 = vrsqrt.pop %v3734
        %v3751 = vrsqrt.pop %v3735
        %v3752 = vrsqrt.pop %v3736
        %v3753 = vrsqrt.pop %v3737
        %v3754 = vrsqrt.pop %v3738
        %v3755 = vmul.f32 %v3595, %v3739
        %v3756 = vmul.f32 %v3596, %v3739
        %v3757 = vmul.f32 %v3597, %v3740
        %v3758 = vmul.f32 %v3598, %v3740
        %v3759 = vmul.f32 %v3599, %v3741
        %v3760 = vmul.f32 %v3600, %v3741
        %v3761 = vmul.f32 %v3601, %v3742
        %v3762 = vmul.f32 %v3602, %v3742
        %v3763 = vmul.f32 %v3603, %v3743
        %v3764 = vmul.f32 %v3604, %v3743
        %v3765 = vmul.f32 %v3605, %v3744
        %v3766 = vmul.f32 %v3606, %v3744
        %v3767 = vmul.f32 %v3607, %v3745
        %v3768 = vmul.f32 %v3608, %v3745
        %v3769 = vmul.f32 %v3609, %v3746
        %v3770 = vmul.f32 %v3610, %v3746
        %v3771 = vmul.f32 %v3611, %v3747
        %v3772 = vmul.f32 %v3612, %v3747
        %v3773 = vmul.f32 %v3613, %v3748
        %v3774 = vmul.f32 %v3614, %v3748
        %v3775 = vmul.f32 %v3615, %v3749
        %v3776 = vmul.f32 %v3616, %v3749
        %v3777 = vmul.f32 %v3617, %v3750
        %v3778 = vmul.f32 %v3618, %v3750
        %v3779 = vmul.f32 %v3619, %v3751
        %v3780 = vmul.f32 %v3620, %v3751
        %v3781 = vmul.f32 %v3621, %v3752
        %v3782 = vmul.f32 %v3622, %v3752
        %v3783 = vmul.f32 %v3623, %v3753
        %v3784 = vmul.f32 %v3624, %v3753
        %v3785 = vmul.f32 %v3625, %v3754
        %v3786 = vmul.f32 %v3626, %v3754
        %v3787 = vld [vmem:[%s7] sm:$0x3]
        %v3789 = vlaneseq
        %v3790 = vshrl.u32 %v3789, 7
        %v3791 = vsub.s32 0, %v3790
        %v3792 = vrot.slane %v3787, %v3791
        %v3793 = vlaneseq
        %v3794 = vshrl.u32 %v3793, 7
        %v3795 = vsub.s32 1, %v3794
        %v3796 = vrot.slane %v3787, %v3795
        %v3799 = vmul.f32 %v3755, %v3792
        %v3800 = vmul.f32 %v3756, %v3796
        %v3801 = vmul.f32 %v3757, %v3792
        %v3802 = vmul.f32 %v3758, %v3796
        %v3803 = vmul.f32 %v3759, %v3792
        %v3804 = vmul.f32 %v3760, %v3796
        %v3805 = vmul.f32 %v3761, %v3792
        %v3806 = vmul.f32 %v3762, %v3796
        %v3807 = vmul.f32 %v3763, %v3792
        %v3808 = vmul.f32 %v3764, %v3796
        %v3809 = vmul.f32 %v3765, %v3792
        %v3810 = vmul.f32 %v3766, %v3796
        %v3811 = vmul.f32 %v3767, %v3792
        %v3812 = vmul.f32 %v3768, %v3796
        %v3813 = vmul.f32 %v3769, %v3792
        %v3814 = vmul.f32 %v3770, %v3796
        %v3815 = vmul.f32 %v3771, %v3792
        %v3816 = vmul.f32 %v3772, %v3796
        %v3817 = vmul.f32 %v3773, %v3792
        %v3818 = vmul.f32 %v3774, %v3796
        %v3819 = vmul.f32 %v3775, %v3792
        %v3820 = vmul.f32 %v3776, %v3796
        %v3821 = vmul.f32 %v3777, %v3792
        %v3822 = vmul.f32 %v3778, %v3796
        %v3823 = vmul.f32 %v3779, %v3792
        %v3824 = vmul.f32 %v3780, %v3796
        %v3825 = vmul.f32 %v3781, %v3792
        %v3826 = vmul.f32 %v3782, %v3796
        %v3827 = vmul.f32 %v3783, %v3792
        %v3828 = vmul.f32 %v3784, %v3796
        %v3829 = vmul.f32 %v3785, %v3792
        %v3830 = vmul.f32 %v3786, %v3796
        %v3831 = vld [vmem:[%s8] sm:$0x3]
        %v3833 = vlaneseq
        %v3834 = vshrl.u32 %v3833, 7
        %v3835 = vsub.s32 0, %v3834
        %v3836 = vrot.slane %v3831, %v3835
        %v3837 = vlaneseq
        %v3838 = vshrl.u32 %v3837, 7
        %v3839 = vsub.s32 1, %v3838
        %v3840 = vrot.slane %v3831, %v3839
        %v3843 = vadd.f32 %v3799, %v3836
        %v3844 = vadd.f32 %v3800, %v3840
        %v3845 = vadd.f32 %v3801, %v3836
        %v3846 = vadd.f32 %v3802, %v3840
        %v3847 = vadd.f32 %v3803, %v3836
        %v3848 = vadd.f32 %v3804, %v3840
        %v3849 = vadd.f32 %v3805, %v3836
        %v3850 = vadd.f32 %v3806, %v3840
        %v3851 = vadd.f32 %v3807, %v3836
        %v3852 = vadd.f32 %v3808, %v3840
        %v3853 = vadd.f32 %v3809, %v3836
        %v3854 = vadd.f32 %v3810, %v3840
        %v3855 = vadd.f32 %v3811, %v3836
        %v3856 = vadd.f32 %v3812, %v3840
        %v3857 = vadd.f32 %v3813, %v3836
        %v3858 = vadd.f32 %v3814, %v3840
        %v3859 = vadd.f32 %v3815, %v3836
        %v3860 = vadd.f32 %v3816, %v3840
        %v3861 = vadd.f32 %v3817, %v3836
        %v3862 = vadd.f32 %v3818, %v3840
        %v3863 = vadd.f32 %v3819, %v3836
        %v3864 = vadd.f32 %v3820, %v3840
        %v3865 = vadd.f32 %v3821, %v3836
        %v3866 = vadd.f32 %v3822, %v3840
        %v3867 = vadd.f32 %v3823, %v3836
        %v3868 = vadd.f32 %v3824, %v3840
        %v3869 = vadd.f32 %v3825, %v3836
        %v3870 = vadd.f32 %v3826, %v3840
        %v3871 = vadd.f32 %v3827, %v3836
        %v3872 = vadd.f32 %v3828, %v3840
        %v3873 = vadd.f32 %v3829, %v3836
        %v3874 = vadd.f32 %v3830, %v3840
        %v3875 = vpack.c.bf16 %v3845, %v3843
        %v3876 = vpack.c.bf16 %v3846, %v3844
        %v3877 = vpack.c.bf16 %v3849, %v3847
        %v3878 = vpack.c.bf16 %v3850, %v3848
        %v3879 = vpack.c.bf16 %v3853, %v3851
        %v3880 = vpack.c.bf16 %v3854, %v3852
        %v3881 = vpack.c.bf16 %v3857, %v3855
        %v3882 = vpack.c.bf16 %v3858, %v3856
        %v3883 = vpack.c.bf16 %v3861, %v3859
        %v3884 = vpack.c.bf16 %v3862, %v3860
        %v3885 = vpack.c.bf16 %v3865, %v3863
        %v3886 = vpack.c.bf16 %v3866, %v3864
        %v3887 = vpack.c.bf16 %v3869, %v3867
        %v3888 = vpack.c.bf16 %v3870, %v3868
        %v3889 = vpack.c.bf16 %v3873, %v3871
        %v3890 = vpack.c.bf16 %v3874, %v3872
        %v3891 = vld [vmem:[#allocation13] sm:$0xff]
        %v3892 = vld [vmem:[#allocation13 + $0x8] sm:$0xff]
        %v3893 = vld [vmem:[#allocation13 + $0x10] sm:$0xff]
        %v3894 = vld [vmem:[#allocation13 + $0x18] sm:$0xff]
        %v3895 = vld [vmem:[#allocation13 + $0x20] sm:$0xff]
        %v3896 = vld [vmem:[#allocation13 + $0x28] sm:$0xff]
        %v3897 = vld [vmem:[#allocation13 + $0x30] sm:$0xff]
        %v3898 = vld [vmem:[#allocation13 + $0x38] sm:$0xff]
        %v3899 = vld [vmem:[#allocation13 + $0x40] sm:$0xff]
        %v3900 = vld [vmem:[#allocation13 + $0x48] sm:$0xff]
        %v3901 = vld [vmem:[#allocation13 + $0x50] sm:$0xff]
        %v3902 = vld [vmem:[#allocation13 + $0x58] sm:$0xff]
        %v3903 = vld [vmem:[#allocation13 + $0x60] sm:$0xff]
        %v3904 = vld [vmem:[#allocation13 + $0x68] sm:$0xff]
        %v3905 = vld [vmem:[#allocation13 + $0x70] sm:$0xff]
        %v3906 = vld [vmem:[#allocation13 + $0x78] sm:$0xff]
        %v3907 = vld [vmem:[#allocation13 + $0x80] sm:$0xff]
        %v3908 = vld [vmem:[#allocation13 + $0x88] sm:$0xff]
        %v3909 = vld [vmem:[#allocation13 + $0x90] sm:$0xff]
        %v3910 = vld [vmem:[#allocation13 + $0x98] sm:$0xff]
        %v3911 = vld [vmem:[#allocation13 + $0xa0] sm:$0xff]
        %v3912 = vld [vmem:[#allocation13 + $0xa8] sm:$0xff]
        %v3913 = vld [vmem:[#allocation13 + $0xb0] sm:$0xff]
        %v3914 = vld [vmem:[#allocation13 + $0xb8] sm:$0xff]
        %v3915 = vld [vmem:[#allocation13 + $0xc0] sm:$0xff]
        %v3916 = vld [vmem:[#allocation13 + $0xc8] sm:$0xff]
        %v3917 = vld [vmem:[#allocation13 + $0xd0] sm:$0xff]
        %v3918 = vld [vmem:[#allocation13 + $0xd8] sm:$0xff]
        %v3919 = vld [vmem:[#allocation13 + $0xe0] sm:$0xff]
        %v3920 = vld [vmem:[#allocation13 + $0xe8] sm:$0xff]
        %v3921 = vld [vmem:[#allocation13 + $0xf0] sm:$0xff]
        %v3922 = vld [vmem:[#allocation13 + $0xf8] sm:$0xff]
        %v3923 = vld [vmem:[#allocation13 + $0x100] sm:$0xff]
        %v3924 = vld [vmem:[#allocation13 + $0x108] sm:$0xff]
        %v3925 = vld [vmem:[#allocation13 + $0x110] sm:$0xff]
        %v3926 = vld [vmem:[#allocation13 + $0x118] sm:$0xff]
        %v3927 = vld [vmem:[#allocation13 + $0x120] sm:$0xff]
        %v3928 = vld [vmem:[#allocation13 + $0x128] sm:$0xff]
        %v3929 = vld [vmem:[#allocation13 + $0x130] sm:$0xff]
        %v3930 = vld [vmem:[#allocation13 + $0x138] sm:$0xff]
        %v3931 = vld [vmem:[#allocation13 + $0x140] sm:$0xff]
        %v3932 = vld [vmem:[#allocation13 + $0x148] sm:$0xff]
        %v3933 = vld [vmem:[#allocation13 + $0x150] sm:$0xff]
        %v3934 = vld [vmem:[#allocation13 + $0x158] sm:$0xff]
        %v3935 = vld [vmem:[#allocation13 + $0x160] sm:$0xff]
        %v3936 = vld [vmem:[#allocation13 + $0x168] sm:$0xff]
        %v3937 = vld [vmem:[#allocation13 + $0x170] sm:$0xff]
        %v3938 = vld [vmem:[#allocation13 + $0x178] sm:$0xff]
        %v3939 = vld [vmem:[#allocation13 + $0x180] sm:$0xff]
        %v3940 = vld [vmem:[#allocation13 + $0x188] sm:$0xff]
        %v3941 = vld [vmem:[#allocation13 + $0x190] sm:$0xff]
        %v3942 = vld [vmem:[#allocation13 + $0x198] sm:$0xff]
        %v3943 = vld [vmem:[#allocation13 + $0x1a0] sm:$0xff]
        %v3944 = vld [vmem:[#allocation13 + $0x1a8] sm:$0xff]
        %v3945 = vld [vmem:[#allocation13 + $0x1b0] sm:$0xff]
        %v3946 = vld [vmem:[#allocation13 + $0x1b8] sm:$0xff]
        %v3947 = vld [vmem:[#allocation13 + $0x1c0] sm:$0xff]
        %v3948 = vld [vmem:[#allocation13 + $0x1c8] sm:$0xff]
        %v3949 = vld [vmem:[#allocation13 + $0x1d0] sm:$0xff]
        %v3950 = vld [vmem:[#allocation13 + $0x1d8] sm:$0xff]
        %v3951 = vld [vmem:[#allocation13 + $0x1e0] sm:$0xff]
        %v3952 = vld [vmem:[#allocation13 + $0x1e8] sm:$0xff]
        %v3953 = vld [vmem:[#allocation13 + $0x1f0] sm:$0xff]
        %v3954 = vld [vmem:[#allocation13 + $0x1f8] sm:$0xff]
        %v3955 = vld [vmem:[%s12] sm:$0xf]
        %v3957 = vlaneseq
        %v3958 = vshrl.u32 %v3957, 7
        %v3959 = vsub.s32 0, %v3958
        %v3960 = vrot.slane %v3955, %v3959
        %v3961 = vlaneseq
        %v3962 = vshrl.u32 %v3961, 7
        %v3963 = vsub.s32 1, %v3962
        %v3964 = vrot.slane %v3955, %v3963
        %v3965 = vlaneseq
        %v3966 = vshrl.u32 %v3965, 7
        %v3967 = vsub.s32 2, %v3966
        %v3968 = vrot.slane %v3955, %v3967
        %v3969 = vlaneseq
        %v3970 = vshrl.u32 %v3969, 7
        %v3971 = vsub.s32 3, %v3970
        %v3972 = vrot.slane %v3955, %v3971
        %v4041 = vunpack.c.l.b16 %v3891
        %v4042 = vunpack.c.h.b16 %v3891
        %v4043 = vunpack.c.l.b16 %v3892
        %v4044 = vunpack.c.h.b16 %v3892
        %v4045 = vunpack.c.l.b16 %v3893
        %v4046 = vunpack.c.h.b16 %v3893
        %v4047 = vunpack.c.l.b16 %v3894
        %v4048 = vunpack.c.h.b16 %v3894
        %v4049 = vunpack.c.l.b16 %v3895
        %v4050 = vunpack.c.h.b16 %v3895
        %v4051 = vunpack.c.l.b16 %v3896
        %v4052 = vunpack.c.h.b16 %v3896
        %v4053 = vunpack.c.l.b16 %v3897
        %v4054 = vunpack.c.h.b16 %v3897
        %v4055 = vunpack.c.l.b16 %v3898
        %v4056 = vunpack.c.h.b16 %v3898
        %v4057 = vunpack.c.l.b16 %v3899
        %v4058 = vunpack.c.h.b16 %v3899
        %v4059 = vunpack.c.l.b16 %v3900
        %v4060 = vunpack.c.h.b16 %v3900
        %v4061 = vunpack.c.l.b16 %v3901
        %v4062 = vunpack.c.h.b16 %v3901
        %v4063 = vunpack.c.l.b16 %v3902
        %v4064 = vunpack.c.h.b16 %v3902
        %v4065 = vunpack.c.l.b16 %v3903
        %v4066 = vunpack.c.h.b16 %v3903
        %v4067 = vunpack.c.l.b16 %v3904
        %v4068 = vunpack.c.h.b16 %v3904
        %v4069 = vunpack.c.l.b16 %v3905
        %v4070 = vunpack.c.h.b16 %v3905
        %v4071 = vunpack.c.l.b16 %v3906
        %v4072 = vunpack.c.h.b16 %v3906
        %v4073 = vunpack.c.l.b16 %v3907
        %v4074 = vunpack.c.h.b16 %v3907
        %v4075 = vunpack.c.l.b16 %v3908
        %v4076 = vunpack.c.h.b16 %v3908
        %v4077 = vunpack.c.l.b16 %v3909
        %v4078 = vunpack.c.h.b16 %v3909
        %v4079 = vunpack.c.l.b16 %v3910
        %v4080 = vunpack.c.h.b16 %v3910
        %v4081 = vunpack.c.l.b16 %v3911
        %v4082 = vunpack.c.h.b16 %v3911
        %v4083 = vunpack.c.l.b16 %v3912
        %v4084 = vunpack.c.h.b16 %v3912
        %v4085 = vunpack.c.l.b16 %v3913
        %v4086 = vunpack.c.h.b16 %v3913
        %v4087 = vunpack.c.l.b16 %v3914
        %v4088 = vunpack.c.h.b16 %v3914
        %v4089 = vunpack.c.l.b16 %v3915
        %v4090 = vunpack.c.h.b16 %v3915
        %v4091 = vunpack.c.l.b16 %v3916
        %v4092 = vunpack.c.h.b16 %v3916
        %v4093 = vunpack.c.l.b16 %v3917
        %v4094 = vunpack.c.h.b16 %v3917
        %v4095 = vunpack.c.l.b16 %v3918
        %v4096 = vunpack.c.h.b16 %v3918
        %v4097 = vunpack.c.l.b16 %v3919
        %v4098 = vunpack.c.h.b16 %v3919
        %v4099 = vunpack.c.l.b16 %v3920
        %v4100 = vunpack.c.h.b16 %v3920
        %v4101 = vunpack.c.l.b16 %v3921
        %v4102 = vunpack.c.h.b16 %v3921
        %v4103 = vunpack.c.l.b16 %v3922
        %v4104 = vunpack.c.h.b16 %v3922
        %v4105 = vunpack.c.l.b16 %v3923
        %v4106 = vunpack.c.h.b16 %v3923
        %v4107 = vunpack.c.l.b16 %v3924
        %v4108 = vunpack.c.h.b16 %v3924
        %v4109 = vunpack.c.l.b16 %v3925
        %v4110 = vunpack.c.h.b16 %v3925
        %v4111 = vunpack.c.l.b16 %v3926
        %v4112 = vunpack.c.h.b16 %v3926
        %v4113 = vunpack.c.l.b16 %v3927
        %v4114 = vunpack.c.h.b16 %v3927
        %v4115 = vunpack.c.l.b16 %v3928
        %v4116 = vunpack.c.h.b16 %v3928
        %v4117 = vunpack.c.l.b16 %v3929
        %v4118 = vunpack.c.h.b16 %v3929
        %v4119 = vunpack.c.l.b16 %v3930
        %v4120 = vunpack.c.h.b16 %v3930
        %v4121 = vunpack.c.l.b16 %v3931
        %v4122 = vunpack.c.h.b16 %v3931
        %v4123 = vunpack.c.l.b16 %v3932
        %v4124 = vunpack.c.h.b16 %v3932
        %v4125 = vunpack.c.l.b16 %v3933
        %v4126 = vunpack.c.h.b16 %v3933
        %v4127 = vunpack.c.l.b16 %v3934
        %v4128 = vunpack.c.h.b16 %v3934
        %v4129 = vunpack.c.l.b16 %v3935
        %v4130 = vunpack.c.h.b16 %v3935
        %v4131 = vunpack.c.l.b16 %v3936
        %v4132 = vunpack.c.h.b16 %v3936
        %v4133 = vunpack.c.l.b16 %v3937
        %v4134 = vunpack.c.h.b16 %v3937
        %v4135 = vunpack.c.l.b16 %v3938
        %v4136 = vunpack.c.h.b16 %v3938
        %v4137 = vunpack.c.l.b16 %v3939
        %v4138 = vunpack.c.h.b16 %v3939
        %v4139 = vunpack.c.l.b16 %v3940
        %v4140 = vunpack.c.h.b16 %v3940
        %v4141 = vunpack.c.l.b16 %v3941
        %v4142 = vunpack.c.h.b16 %v3941
        %v4143 = vunpack.c.l.b16 %v3942
        %v4144 = vunpack.c.h.b16 %v3942
        %v4145 = vunpack.c.l.b16 %v3943
        %v4146 = vunpack.c.h.b16 %v3943
        %v4147 = vunpack.c.l.b16 %v3944
        %v4148 = vunpack.c.h.b16 %v3944
        %v4149 = vunpack.c.l.b16 %v3945
        %v4150 = vunpack.c.h.b16 %v3945
        %v4151 = vunpack.c.l.b16 %v3946
        %v4152 = vunpack.c.h.b16 %v3946
        %v4153 = vunpack.c.l.b16 %v3947
        %v4154 = vunpack.c.h.b16 %v3947
        %v4155 = vunpack.c.l.b16 %v3948
        %v4156 = vunpack.c.h.b16 %v3948
        %v4157 = vunpack.c.l.b16 %v3949
        %v4158 = vunpack.c.h.b16 %v3949
        %v4159 = vunpack.c.l.b16 %v3950
        %v4160 = vunpack.c.h.b16 %v3950
        %v4161 = vunpack.c.l.b16 %v3951
        %v4162 = vunpack.c.h.b16 %v3951
        %v4163 = vunpack.c.l.b16 %v3952
        %v4164 = vunpack.c.h.b16 %v3952
        %v4165 = vunpack.c.l.b16 %v3953
        %v4166 = vunpack.c.h.b16 %v3953
        %v4167 = vunpack.c.l.b16 %v3954
        %v4168 = vunpack.c.h.b16 %v3954
        %v4169 = vpack.c.b16 %v4045, %v4041
        %v4170 = vpack.c.b16 %v4046, %v4042
        %v4171 = vpack.c.b16 %v4047, %v4043
        %v4172 = vpack.c.b16 %v4048, %v4044
        %v4173 = vpack.c.b16 %v4053, %v4049
        %v4174 = vpack.c.b16 %v4054, %v4050
        %v4175 = vpack.c.b16 %v4055, %v4051
        %v4176 = vpack.c.b16 %v4056, %v4052
        %v4177 = vpack.c.b16 %v4061, %v4057
        %v4178 = vpack.c.b16 %v4062, %v4058
        %v4179 = vpack.c.b16 %v4063, %v4059
        %v4180 = vpack.c.b16 %v4064, %v4060
        %v4181 = vpack.c.b16 %v4069, %v4065
        %v4182 = vpack.c.b16 %v4070, %v4066
        %v4183 = vpack.c.b16 %v4071, %v4067
        %v4184 = vpack.c.b16 %v4072, %v4068
        %v4185 = vpack.c.b16 %v4077, %v4073
        %v4186 = vpack.c.b16 %v4078, %v4074
        %v4187 = vpack.c.b16 %v4079, %v4075
        %v4188 = vpack.c.b16 %v4080, %v4076
        %v4189 = vpack.c.b16 %v4085, %v4081
        %v4190 = vpack.c.b16 %v4086, %v4082
        %v4191 = vpack.c.b16 %v4087, %v4083
        %v4192 = vpack.c.b16 %v4088, %v4084
        %v4193 = vpack.c.b16 %v4093, %v4089
        %v4194 = vpack.c.b16 %v4094, %v4090
        %v4195 = vpack.c.b16 %v4095, %v4091
        %v4196 = vpack.c.b16 %v4096, %v4092
        %v4197 = vpack.c.b16 %v4101, %v4097
        %v4198 = vpack.c.b16 %v4102, %v4098
        %v4199 = vpack.c.b16 %v4103, %v4099
        %v4200 = vpack.c.b16 %v4104, %v4100
        %v4201 = vpack.c.b16 %v4109, %v4105
        %v4202 = vpack.c.b16 %v4110, %v4106
        %v4203 = vpack.c.b16 %v4111, %v4107
        %v4204 = vpack.c.b16 %v4112, %v4108
        %v4205 = vpack.c.b16 %v4117, %v4113
        %v4206 = vpack.c.b16 %v4118, %v4114
        %v4207 = vpack.c.b16 %v4119, %v4115
        %v4208 = vpack.c.b16 %v4120, %v4116
        %v4209 = vpack.c.b16 %v4125, %v4121
        %v4210 = vpack.c.b16 %v4126, %v4122
        %v4211 = vpack.c.b16 %v4127, %v4123
        %v4212 = vpack.c.b16 %v4128, %v4124
        %v4213 = vpack.c.b16 %v4133, %v4129
        %v4214 = vpack.c.b16 %v4134, %v4130
        %v4215 = vpack.c.b16 %v4135, %v4131
        %v4216 = vpack.c.b16 %v4136, %v4132
        %v4217 = vpack.c.b16 %v4141, %v4137
        %v4218 = vpack.c.b16 %v4142, %v4138
        %v4219 = vpack.c.b16 %v4143, %v4139
        %v4220 = vpack.c.b16 %v4144, %v4140
        %v4221 = vpack.c.b16 %v4149, %v4145
        %v4222 = vpack.c.b16 %v4150, %v4146
        %v4223 = vpack.c.b16 %v4151, %v4147
        %v4224 = vpack.c.b16 %v4152, %v4148
        %v4225 = vpack.c.b16 %v4157, %v4153
        %v4226 = vpack.c.b16 %v4158, %v4154
        %v4227 = vpack.c.b16 %v4159, %v4155
        %v4228 = vpack.c.b16 %v4160, %v4156
        %v4229 = vpack.c.b16 %v4165, %v4161
        %v4230 = vpack.c.b16 %v4166, %v4162
        %v4231 = vpack.c.b16 %v4167, %v4163
        %v4232 = vpack.c.b16 %v4168, %v4164
        %4297 = vmatprep.subr.bf16.mxu0 %v4170
        %4298 = vmatpush1.bf16.msra.mxu0 %v4169
        %4299 = vmatprep.subr.bf16.mxu0 %v4174
        %4300 = vmatpush1.bf16.msra.mxu0 %v4173
        %4301 = vmatprep.subr.bf16.mxu0 %v4178
        %4302 = vmatpush1.bf16.msra.mxu0 %v4177
        %4303 = vmatprep.subr.bf16.mxu0 %v4182
        %4304 = vmatpush1.bf16.msra.mxu0 %v4181
        %4305 = vmatprep.subr.bf16.mxu0 %v4186
        %4306 = vmatpush1.bf16.msra.mxu0 %v4185
        %4307 = vmatprep.subr.bf16.mxu0 %v4190
        %4308 = vmatpush1.bf16.msra.mxu0 %v4189
        %4309 = vmatprep.subr.bf16.mxu0 %v4194
        %4310 = vmatpush1.bf16.msra.mxu0 %v4193
        %4311 = vmatprep.subr.bf16.mxu0 %v4198
        %4312 = vmatpush1.bf16.msra.mxu0 %v4197
        %4313 = vmatprep.subr.bf16.mxu0 %v4202
        %4314 = vmatpush1.bf16.msra.mxu0 %v4201
        %4315 = vmatprep.subr.bf16.mxu0 %v4206
        %4316 = vmatpush1.bf16.msra.mxu0 %v4205
        %4317 = vmatprep.subr.bf16.mxu0 %v4210
        %4318 = vmatpush1.bf16.msra.mxu0 %v4209
        %4319 = vmatprep.subr.bf16.mxu0 %v4214
        %4320 = vmatpush1.bf16.msra.mxu0 %v4213
        %4321 = vmatprep.subr.bf16.mxu0 %v4218
        %4322 = vmatpush1.bf16.msra.mxu0 %v4217
        %4323 = vmatprep.subr.bf16.mxu0 %v4222
        %4324 = vmatpush1.bf16.msra.mxu0 %v4221
        %4325 = vmatprep.subr.bf16.mxu0 %v4226
        %4326 = vmatpush1.bf16.msra.mxu0 %v4225
        %4327 = vmatprep.subr.bf16.mxu0 %v4230
        %4328 = vmatpush1.bf16.msra.mxu0 %v4229
        %4329 = vmatprep.mubr.bf16.mxu0 %v3876
        %4330 = vmatmul.mubr.bf16.gmra.mrb[0].mxu0 %v3875
        %v4331 = vpop.f32.mrb[0].mxu0
        %v4332 = vadd.f32 %v3960, %v4331
        %v4333 = vpop.f32.mrb[0].mxu0
        %v4334 = vadd.f32 %v3964, %v4333
        %v4335 = vpop.f32.mrb[0].mxu0
        %v4336 = vadd.f32 %v3960, %v4335
        %v4337 = vpop.f32.mrb[0].mxu0
        %v4338 = vadd.f32 %v3964, %v4337
        %4339 = vmatprep.mubr.bf16.mxu0 %v3878
        %4340 = vmatmul.mubr.bf16.gmra.mrb[0].mxu0 %v3877
        %v4341 = vpop.f32.mrb[0].mxu0
        %v4342 = vadd.f32 %v3960, %v4341
        %v4343 = vpop.f32.mrb[0].mxu0
        %v4344 = vadd.f32 %v3964, %v4343
        %v4345 = vpop.f32.mrb[0].mxu0
        %v4346 = vadd.f32 %v3960, %v4345
        %v4347 = vpop.f32.mrb[0].mxu0
        %v4348 = vadd.f32 %v3964, %v4347
        %4349 = vmatprep.mubr.bf16.mxu0 %v3880
        %4350 = vmatmul.mubr.bf16.gmra.mrb[0].mxu0 %v3879
        %v4351 = vpop.f32.mrb[0].mxu0
        %v4352 = vadd.f32 %v3960, %v4351
        %v4353 = vpop.f32.mrb[0].mxu0
        %v4354 = vadd.f32 %v3964, %v4353
        %v4355 = vpop.f32.mrb[0].mxu0
        %v4356 = vadd.f32 %v3960, %v4355
        %v4357 = vpop.f32.mrb[0].mxu0
        %v4358 = vadd.f32 %v3964, %v4357
        %4359 = vmatprep.mubr.bf16.mxu0 %v3882
        %4360 = vmatmul.mubr.bf16.gmra.mrb[0].mxu0 %v3881
        %v4361 = vpop.f32.mrb[0].mxu0
        %v4362 = vadd.f32 %v3960, %v4361
        %v4363 = vpop.f32.mrb[0].mxu0
        %v4364 = vadd.f32 %v3964, %v4363
        %v4365 = vpop.f32.mrb[0].mxu0
        %v4366 = vadd.f32 %v3960, %v4365
        %v4367 = vpop.f32.mrb[0].mxu0
        %v4368 = vadd.f32 %v3964, %v4367
        %4369 = vmatprep.mubr.bf16.mxu0 %v3884
        %4370 = vmatmul.mubr.bf16.gmra.mrb[0].mxu0 %v3883
        %v4371 = vpop.f32.mrb[0].mxu0
        %v4372 = vadd.f32 %v3960, %v4371
        %v4373 = vpop.f32.mrb[0].mxu0
        %v4374 = vadd.f32 %v3964, %v4373
        %v4375 = vpop.f32.mrb[0].mxu0
        %v4376 = vadd.f32 %v3960, %v4375
        %v4377 = vpop.f32.mrb[0].mxu0
        %v4378 = vadd.f32 %v3964, %v4377
        %4379 = vmatprep.mubr.bf16.mxu0 %v3886
        %4380 = vmatmul.mubr.bf16.gmra.mrb[0].mxu0 %v3885
        %v4381 = vpop.f32.mrb[0].mxu0
        %v4382 = vadd.f32 %v3960, %v4381
        %v4383 = vpop.f32.mrb[0].mxu0
        %v4384 = vadd.f32 %v3964, %v4383
        %v4385 = vpop.f32.mrb[0].mxu0
        %v4386 = vadd.f32 %v3960, %v4385
        %v4387 = vpop.f32.mrb[0].mxu0
        %v4388 = vadd.f32 %v3964, %v4387
        %4389 = vmatprep.mubr.bf16.mxu0 %v3888
        %4390 = vmatmul.mubr.bf16.gmra.mrb[0].mxu0 %v3887
        %v4391 = vpop.f32.mrb[0].mxu0
        %v4392 = vadd.f32 %v3960, %v4391
        %v4393 = vpop.f32.mrb[0].mxu0
        %v4394 = vadd.f32 %v3964, %v4393
        %v4395 = vpop.f32.mrb[0].mxu0
        %v4396 = vadd.f32 %v3960, %v4395
        %v4397 = vpop.f32.mrb[0].mxu0
        %v4398 = vadd.f32 %v3964, %v4397
        %4399 = vmatprep.mubr.bf16.mxu0 %v3890
        %4400 = vmatmul.mubr.bf16.gmra.mrb[0].mxu0 %v3889
        %v4401 = vpop.f32.mrb[0].mxu0
        %v4402 = vadd.f32 %v3960, %v4401
        %v4403 = vpop.f32.mrb[0].mxu0
        %v4404 = vadd.f32 %v3964, %v4403
        %v4405 = vpop.f32.mrb[0].mxu0
        %v4406 = vadd.f32 %v3960, %v4405
        %v4407 = vpop.f32.mrb[0].mxu0
        %v4408 = vadd.f32 %v3964, %v4407
        %4409 = vdwg.mxu0
        %4410 = vmatprep.subr.bf16.mxu0 %v4172
        %4411 = vmatpush1.bf16.msra.mxu0 %v4171
        %4412 = vmatprep.subr.bf16.mxu0 %v4176
        %4413 = vmatpush1.bf16.msra.mxu0 %v4175
        %4414 = vmatprep.subr.bf16.mxu0 %v4180
        %4415 = vmatpush1.bf16.msra.mxu0 %v4179
        %4416 = vmatprep.subr.bf16.mxu0 %v4184
        %4417 = vmatpush1.bf16.msra.mxu0 %v4183
        %4418 = vmatprep.subr.bf16.mxu0 %v4188
        %4419 = vmatpush1.bf16.msra.mxu0 %v4187
        %4420 = vmatprep.subr.bf16.mxu0 %v4192
        %4421 = vmatpush1.bf16.msra.mxu0 %v4191
        %4422 = vmatprep.subr.bf16.mxu0 %v4196
        %4423 = vmatpush1.bf16.msra.mxu0 %v4195
        %4424 = vmatprep.subr.bf16.mxu0 %v4200
        %4425 = vmatpush1.bf16.msra.mxu0 %v4199
        %4426 = vmatprep.subr.bf16.mxu0 %v4204
        %4427 = vmatpush1.bf16.msra.mxu0 %v4203
        %4428 = vmatprep.subr.bf16.mxu0 %v4208
        %4429 = vmatpush1.bf16.msra.mxu0 %v4207
        %4430 = vmatprep.subr.bf16.mxu0 %v4212
        %4431 = vmatpush1.bf16.msra.mxu0 %v4211
        %4432 = vmatprep.subr.bf16.mxu0 %v4216
        %4433 = vmatpush1.bf16.msra.mxu0 %v4215
        %4434 = vmatprep.subr.bf16.mxu0 %v4220
        %4435 = vmatpush1.bf16.msra.mxu0 %v4219
        %4436 = vmatprep.subr.bf16.mxu0 %v4224
        %4437 = vmatpush1.bf16.msra.mxu0 %v4223
        %4438 = vmatprep.subr.bf16.mxu0 %v4228
        %4439 = vmatpush1.bf16.msra.mxu0 %v4227
        %4440 = vmatprep.subr.bf16.mxu0 %v4232
        %4441 = vmatpush1.bf16.msra.mxu0 %v4231
        %4442 = vmatprep.mubr.bf16.mxu0 %v3876
        %4443 = vmatmul.mubr.bf16.gmra.mrb[0].mxu0 %v3875
        %v4444 = vpop.f32.mrb[0].mxu0
        %v4445 = vadd.f32 %v3968, %v4444
        %v4446 = vpop.f32.mrb[0].mxu0
        %v4447 = vadd.f32 %v3972, %v4446
        %v4448 = vpop.f32.mrb[0].mxu0
        %v4449 = vadd.f32 %v3968, %v4448
        %v4450 = vpop.f32.mrb[0].mxu0
        %v4451 = vadd.f32 %v3972, %v4450
        %4452 = vmatprep.mubr.bf16.mxu0 %v3878
        %4453 = vmatmul.mubr.bf16.gmra.mrb[0].mxu0 %v3877
        %v4454 = vpop.f32.mrb[0].mxu0
        %v4455 = vadd.f32 %v3968, %v4454
        %v4456 = vpop.f32.mrb[0].mxu0
        %v4457 = vadd.f32 %v3972, %v4456
        %v4458 = vpop.f32.mrb[0].mxu0
        %v4459 = vadd.f32 %v3968, %v4458
        %v4460 = vpop.f32.mrb[0].mxu0
        %v4461 = vadd.f32 %v3972, %v4460
        %4462 = vmatprep.mubr.bf16.mxu0 %v3880
        %4463 = vmatmul.mubr.bf16.gmra.mrb[0].mxu0 %v3879
        %v4464 = vpop.f32.mrb[0].mxu0
        %v4465 = vadd.f32 %v3968, %v4464
        %v4466 = vpop.f32.mrb[0].mxu0
        %v4467 = vadd.f32 %v3972, %v4466
        %v4468 = vpop.f32.mrb[0].mxu0
        %v4469 = vadd.f32 %v3968, %v4468
        %v4470 = vpop.f32.mrb[0].mxu0
        %v4471 = vadd.f32 %v3972, %v4470
        %4472 = vmatprep.mubr.bf16.mxu0 %v3882
        %4473 = vmatmul.mubr.bf16.gmra.mrb[0].mxu0 %v3881
        %v4474 = vpop.f32.mrb[0].mxu0
        %v4475 = vadd.f32 %v3968, %v4474
        %v4476 = vpop.f32.mrb[0].mxu0
        %v4477 = vadd.f32 %v3972, %v4476
        %v4478 = vpop.f32.mrb[0].mxu0
        %v4479 = vadd.f32 %v3968, %v4478
        %v4480 = vpop.f32.mrb[0].mxu0
        %v4481 = vadd.f32 %v3972, %v4480
        %4482 = vmatprep.mubr.bf16.mxu0 %v3884
        %4483 = vmatmul.mubr.bf16.gmra.mrb[0].mxu0 %v3883
        %v4484 = vpop.f32.mrb[0].mxu0
        %v4485 = vadd.f32 %v3968, %v4484
        %v4486 = vpop.f32.mrb[0].mxu0
        %v4487 = vadd.f32 %v3972, %v4486
        %v4488 = vpop.f32.mrb[0].mxu0
        %v4489 = vadd.f32 %v3968, %v4488
        %v4490 = vpop.f32.mrb[0].mxu0
        %v4491 = vadd.f32 %v3972, %v4490
        %4492 = vmatprep.mubr.bf16.mxu0 %v3886
        %4493 = vmatmul.mubr.bf16.gmra.mrb[0].mxu0 %v3885
        %v4494 = vpop.f32.mrb[0].mxu0
        %v4495 = vadd.f32 %v3968, %v4494
        %v4496 = vpop.f32.mrb[0].mxu0
        %v4497 = vadd.f32 %v3972, %v4496
        %v4498 = vpop.f32.mrb[0].mxu0
        %v4499 = vadd.f32 %v3968, %v4498
        %v4500 = vpop.f32.mrb[0].mxu0
        %v4501 = vadd.f32 %v3972, %v4500
        %4502 = vmatprep.mubr.bf16.mxu0 %v3888
        %4503 = vmatmul.mubr.bf16.gmra.mrb[0].mxu0 %v3887
        %v4504 = vpop.f32.mrb[0].mxu0
        %v4505 = vadd.f32 %v3968, %v4504
        %v4506 = vpop.f32.mrb[0].mxu0
        %v4507 = vadd.f32 %v3972, %v4506
        %v4508 = vpop.f32.mrb[0].mxu0
        %v4509 = vadd.f32 %v3968, %v4508
        %v4510 = vpop.f32.mrb[0].mxu0
        %v4511 = vadd.f32 %v3972, %v4510
        %4512 = vmatprep.mubr.bf16.mxu0 %v3890
        %4513 = vmatmul.mubr.bf16.gmra.mrb[0].mxu0 %v3889
        %v4514 = vpop.f32.mrb[0].mxu0
        %v4515 = vadd.f32 %v3968, %v4514
        %v4516 = vpop.f32.mrb[0].mxu0
        %v4517 = vadd.f32 %v3972, %v4516
        %v4518 = vpop.f32.mrb[0].mxu0
        %v4519 = vadd.f32 %v3968, %v4518
        %v4520 = vpop.f32.mrb[0].mxu0
        %v4521 = vadd.f32 %v3972, %v4520
        %4522 = vdwg.mxu0
        %v4523 = vmax.f32 %v4332, 0.0
        %v4524 = vmax.f32 %v4334, 0.0
        %v4525 = vmax.f32 %v4445, 0.0
        %v4526 = vmax.f32 %v4447, 0.0
        %v4527 = vmax.f32 %v4336, 0.0
        %v4528 = vmax.f32 %v4338, 0.0
        %v4529 = vmax.f32 %v4449, 0.0
        %v4530 = vmax.f32 %v4451, 0.0
        %v4531 = vmax.f32 %v4342, 0.0
        %v4532 = vmax.f32 %v4344, 0.0
        %v4533 = vmax.f32 %v4455, 0.0
        %v4534 = vmax.f32 %v4457, 0.0
        %v4535 = vmax.f32 %v4346, 0.0
        %v4536 = vmax.f32 %v4348, 0.0
        %v4537 = vmax.f32 %v4459, 0.0
        %v4538 = vmax.f32 %v4461, 0.0
        %v4539 = vmax.f32 %v4352, 0.0
        %v4540 = vmax.f32 %v4354, 0.0
        %v4541 = vmax.f32 %v4465, 0.0
        %v4542 = vmax.f32 %v4467, 0.0
        %v4543 = vmax.f32 %v4356, 0.0
        %v4544 = vmax.f32 %v4358, 0.0
        %v4545 = vmax.f32 %v4469, 0.0
        %v4546 = vmax.f32 %v4471, 0.0
        %v4547 = vmax.f32 %v4362, 0.0
        %v4548 = vmax.f32 %v4364, 0.0
        %v4549 = vmax.f32 %v4475, 0.0
        %v4550 = vmax.f32 %v4477, 0.0
        %v4551 = vmax.f32 %v4366, 0.0
        %v4552 = vmax.f32 %v4368, 0.0
        %v4553 = vmax.f32 %v4479, 0.0
        %v4554 = vmax.f32 %v4481, 0.0
        %v4555 = vmax.f32 %v4372, 0.0
        %v4556 = vmax.f32 %v4374, 0.0
        %v4557 = vmax.f32 %v4485, 0.0
        %v4558 = vmax.f32 %v4487, 0.0
        %v4559 = vmax.f32 %v4376, 0.0
        %v4560 = vmax.f32 %v4378, 0.0
        %v4561 = vmax.f32 %v4489, 0.0
        %v4562 = vmax.f32 %v4491, 0.0
        %v4563 = vmax.f32 %v4382, 0.0
        %v4564 = vmax.f32 %v4384, 0.0
        %v4565 = vmax.f32 %v4495, 0.0
        %v4566 = vmax.f32 %v4497, 0.0
        %v4567 = vmax.f32 %v4386, 0.0
        %v4568 = vmax.f32 %v4388, 0.0
        %v4569 = vmax.f32 %v4499, 0.0
        %v4570 = vmax.f32 %v4501, 0.0
        %v4571 = vmax.f32 %v4392, 0.0
        %v4572 = vmax.f32 %v4394, 0.0
        %v4573 = vmax.f32 %v4505, 0.0
        %v4574 = vmax.f32 %v4507, 0.0
        %v4575 = vmax.f32 %v4396, 0.0
        %v4576 = vmax.f32 %v4398, 0.0
        %v4577 = vmax.f32 %v4509, 0.0
        %v4578 = vmax.f32 %v4511, 0.0
        %v4579 = vmax.f32 %v4402, 0.0
        %v4580 = vmax.f32 %v4404, 0.0
        %v4581 = vmax.f32 %v4515, 0.0
        %v4582 = vmax.f32 %v4517, 0.0
        %v4583 = vmax.f32 %v4406, 0.0
        %v4584 = vmax.f32 %v4408, 0.0
        %v4585 = vmax.f32 %v4519, 0.0
        %v4586 = vmax.f32 %v4521, 0.0
        %v4587 = vpack.c.bf16 %v4527, %v4523
        %v4588 = vpack.c.bf16 %v4528, %v4524
        %v4589 = vpack.c.bf16 %v4529, %v4525
        %v4590 = vpack.c.bf16 %v4530, %v4526
        %v4591 = vpack.c.bf16 %v4535, %v4531
        %v4592 = vpack.c.bf16 %v4536, %v4532
        %v4593 = vpack.c.bf16 %v4537, %v4533
        %v4594 = vpack.c.bf16 %v4538, %v4534
        %v4595 = vpack.c.bf16 %v4543, %v4539
        %v4596 = vpack.c.bf16 %v4544, %v4540
        %v4597 = vpack.c.bf16 %v4545, %v4541
        %v4598 = vpack.c.bf16 %v4546, %v4542
        %v4599 = vpack.c.bf16 %v4551, %v4547
        %v4600 = vpack.c.bf16 %v4552, %v4548
        %v4601 = vpack.c.bf16 %v4553, %v4549
        %v4602 = vpack.c.bf16 %v4554, %v4550
        %v4603 = vpack.c.bf16 %v4559, %v4555
        %v4604 = vpack.c.bf16 %v4560, %v4556
        %v4605 = vpack.c.bf16 %v4561, %v4557
        %v4606 = vpack.c.bf16 %v4562, %v4558
        %v4607 = vpack.c.bf16 %v4567, %v4563
        %v4608 = vpack.c.bf16 %v4568, %v4564
        %v4609 = vpack.c.bf16 %v4569, %v4565
        %v4610 = vpack.c.bf16 %v4570, %v4566
        %v4611 = vpack.c.bf16 %v4575, %v4571
        %v4612 = vpack.c.bf16 %v4576, %v4572
        %v4613 = vpack.c.bf16 %v4577, %v4573
        %v4614 = vpack.c.bf16 %v4578, %v4574
        %v4615 = vpack.c.bf16 %v4583, %v4579
        %v4616 = vpack.c.bf16 %v4584, %v4580
        %v4617 = vpack.c.bf16 %v4585, %v4581
        %v4618 = vpack.c.bf16 %v4586, %v4582
        %v4619 = vld [vmem:[#allocation14] sm:$0xff]
        %v4620 = vld [vmem:[#allocation14 + $0x8] sm:$0xff]
        %v4621 = vld [vmem:[#allocation14 + $0x10] sm:$0xff]
        %v4622 = vld [vmem:[#allocation14 + $0x18] sm:$0xff]
        %v4623 = vld [vmem:[#allocation14 + $0x20] sm:$0xff]
        %v4624 = vld [vmem:[#allocation14 + $0x28] sm:$0xff]
        %v4625 = vld [vmem:[#allocation14 + $0x30] sm:$0xff]
        %v4626 = vld [vmem:[#allocation14 + $0x38] sm:$0xff]
        %v4627 = vld [vmem:[#allocation14 + $0x40] sm:$0xff]
        %v4628 = vld [vmem:[#allocation14 + $0x48] sm:$0xff]
        %v4629 = vld [vmem:[#allocation14 + $0x50] sm:$0xff]
        %v4630 = vld [vmem:[#allocation14 + $0x58] sm:$0xff]
        %v4631 = vld [vmem:[#allocation14 + $0x60] sm:$0xff]
        %v4632 = vld [vmem:[#allocation14 + $0x68] sm:$0xff]
        %v4633 = vld [vmem:[#allocation14 + $0x70] sm:$0xff]
        %v4634 = vld [vmem:[#allocation14 + $0x78] sm:$0xff]
        %v4635 = vld [vmem:[#allocation14 + $0x80] sm:$0xff]
        %v4636 = vld [vmem:[#allocation14 + $0x88] sm:$0xff]
        %v4637 = vld [vmem:[#allocation14 + $0x90] sm:$0xff]
        %v4638 = vld [vmem:[#allocation14 + $0x98] sm:$0xff]
        %v4639 = vld [vmem:[#allocation14 + $0xa0] sm:$0xff]
        %v4640 = vld [vmem:[#allocation14 + $0xa8] sm:$0xff]
        %v4641 = vld [vmem:[#allocation14 + $0xb0] sm:$0xff]
        %v4642 = vld [vmem:[#allocation14 + $0xb8] sm:$0xff]
        %v4643 = vld [vmem:[#allocation14 + $0xc0] sm:$0xff]
        %v4644 = vld [vmem:[#allocation14 + $0xc8] sm:$0xff]
        %v4645 = vld [vmem:[#allocation14 + $0xd0] sm:$0xff]
        %v4646 = vld [vmem:[#allocation14 + $0xd8] sm:$0xff]
        %v4647 = vld [vmem:[#allocation14 + $0xe0] sm:$0xff]
        %v4648 = vld [vmem:[#allocation14 + $0xe8] sm:$0xff]
        %v4649 = vld [vmem:[#allocation14 + $0xf0] sm:$0xff]
        %v4650 = vld [vmem:[#allocation14 + $0xf8] sm:$0xff]
        %v4651 = vld [vmem:[#allocation14 + $0x100] sm:$0xff]
        %v4652 = vld [vmem:[#allocation14 + $0x108] sm:$0xff]
        %v4653 = vld [vmem:[#allocation14 + $0x110] sm:$0xff]
        %v4654 = vld [vmem:[#allocation14 + $0x118] sm:$0xff]
        %v4655 = vld [vmem:[#allocation14 + $0x120] sm:$0xff]
        %v4656 = vld [vmem:[#allocation14 + $0x128] sm:$0xff]
        %v4657 = vld [vmem:[#allocation14 + $0x130] sm:$0xff]
        %v4658 = vld [vmem:[#allocation14 + $0x138] sm:$0xff]
        %v4659 = vld [vmem:[#allocation14 + $0x140] sm:$0xff]
        %v4660 = vld [vmem:[#allocation14 + $0x148] sm:$0xff]
        %v4661 = vld [vmem:[#allocation14 + $0x150] sm:$0xff]
        %v4662 = vld [vmem:[#allocation14 + $0x158] sm:$0xff]
        %v4663 = vld [vmem:[#allocation14 + $0x160] sm:$0xff]
        %v4664 = vld [vmem:[#allocation14 + $0x168] sm:$0xff]
        %v4665 = vld [vmem:[#allocation14 + $0x170] sm:$0xff]
        %v4666 = vld [vmem:[#allocation14 + $0x178] sm:$0xff]
        %v4667 = vld [vmem:[#allocation14 + $0x180] sm:$0xff]
        %v4668 = vld [vmem:[#allocation14 + $0x188] sm:$0xff]
        %v4669 = vld [vmem:[#allocation14 + $0x190] sm:$0xff]
        %v4670 = vld [vmem:[#allocation14 + $0x198] sm:$0xff]
        %v4671 = vld [vmem:[#allocation14 + $0x1a0] sm:$0xff]
        %v4672 = vld [vmem:[#allocation14 + $0x1a8] sm:$0xff]
        %v4673 = vld [vmem:[#allocation14 + $0x1b0] sm:$0xff]
        %v4674 = vld [vmem:[#allocation14 + $0x1b8] sm:$0xff]
        %v4675 = vld [vmem:[#allocation14 + $0x1c0] sm:$0xff]
        %v4676 = vld [vmem:[#allocation14 + $0x1c8] sm:$0xff]
        %v4677 = vld [vmem:[#allocation14 + $0x1d0] sm:$0xff]
        %v4678 = vld [vmem:[#allocation14 + $0x1d8] sm:$0xff]
        %v4679 = vld [vmem:[#allocation14 + $0x1e0] sm:$0xff]
        %v4680 = vld [vmem:[#allocation14 + $0x1e8] sm:$0xff]
        %v4681 = vld [vmem:[#allocation14 + $0x1f0] sm:$0xff]
        %v4682 = vld [vmem:[#allocation14 + $0x1f8] sm:$0xff]
        %v4683 = vld [vmem:[%s14] sm:$0x3]
        %v4685 = vlaneseq
        %v4686 = vshrl.u32 %v4685, 7
        %v4687 = vsub.s32 0, %v4686
        %v4688 = vrot.slane %v4683, %v4687
        %v4689 = vlaneseq
        %v4690 = vshrl.u32 %v4689, 7
        %v4691 = vsub.s32 1, %v4690
        %v4692 = vrot.slane %v4683, %v4691
        %v4759 = vunpack.c.l.b16 %v4619
        %v4760 = vunpack.c.h.b16 %v4619
        %v4761 = vunpack.c.l.b16 %v4620
        %v4762 = vunpack.c.h.b16 %v4620
        %v4763 = vunpack.c.l.b16 %v4621
        %v4764 = vunpack.c.h.b16 %v4621
        %v4765 = vunpack.c.l.b16 %v4622
        %v4766 = vunpack.c.h.b16 %v4622
        %v4767 = vunpack.c.l.b16 %v4623
        %v4768 = vunpack.c.h.b16 %v4623
        %v4769 = vunpack.c.l.b16 %v4624
        %v4770 = vunpack.c.h.b16 %v4624
        %v4771 = vunpack.c.l.b16 %v4625
        %v4772 = vunpack.c.h.b16 %v4625
        %v4773 = vunpack.c.l.b16 %v4626
        %v4774 = vunpack.c.h.b16 %v4626
        %v4775 = vunpack.c.l.b16 %v4627
        %v4776 = vunpack.c.h.b16 %v4627
        %v4777 = vunpack.c.l.b16 %v4628
        %v4778 = vunpack.c.h.b16 %v4628
        %v4779 = vunpack.c.l.b16 %v4629
        %v4780 = vunpack.c.h.b16 %v4629
        %v4781 = vunpack.c.l.b16 %v4630
        %v4782 = vunpack.c.h.b16 %v4630
        %v4783 = vunpack.c.l.b16 %v4631
        %v4784 = vunpack.c.h.b16 %v4631
        %v4785 = vunpack.c.l.b16 %v4632
        %v4786 = vunpack.c.h.b16 %v4632
        %v4787 = vunpack.c.l.b16 %v4633
        %v4788 = vunpack.c.h.b16 %v4633
        %v4789 = vunpack.c.l.b16 %v4634
        %v4790 = vunpack.c.h.b16 %v4634
        %v4791 = vunpack.c.l.b16 %v4635
        %v4792 = vunpack.c.h.b16 %v4635
        %v4793 = vunpack.c.l.b16 %v4636
        %v4794 = vunpack.c.h.b16 %v4636
        %v4795 = vunpack.c.l.b16 %v4637
        %v4796 = vunpack.c.h.b16 %v4637
        %v4797 = vunpack.c.l.b16 %v4638
        %v4798 = vunpack.c.h.b16 %v4638
        %v4799 = vunpack.c.l.b16 %v4639
        %v4800 = vunpack.c.h.b16 %v4639
        %v4801 = vunpack.c.l.b16 %v4640
        %v4802 = vunpack.c.h.b16 %v4640
        %v4803 = vunpack.c.l.b16 %v4641
        %v4804 = vunpack.c.h.b16 %v4641
        %v4805 = vunpack.c.l.b16 %v4642
        %v4806 = vunpack.c.h.b16 %v4642
        %v4807 = vunpack.c.l.b16 %v4643
        %v4808 = vunpack.c.h.b16 %v4643
        %v4809 = vunpack.c.l.b16 %v4644
        %v4810 = vunpack.c.h.b16 %v4644
        %v4811 = vunpack.c.l.b16 %v4645
        %v4812 = vunpack.c.h.b16 %v4645
        %v4813 = vunpack.c.l.b16 %v4646
        %v4814 = vunpack.c.h.b16 %v4646
        %v4815 = vunpack.c.l.b16 %v4647
        %v4816 = vunpack.c.h.b16 %v4647
        %v4817 = vunpack.c.l.b16 %v4648
        %v4818 = vunpack.c.h.b16 %v4648
        %v4819 = vunpack.c.l.b16 %v4649
        %v4820 = vunpack.c.h.b16 %v4649
        %v4821 = vunpack.c.l.b16 %v4650
        %v4822 = vunpack.c.h.b16 %v4650
        %v4823 = vunpack.c.l.b16 %v4651
        %v4824 = vunpack.c.h.b16 %v4651
        %v4825 = vunpack.c.l.b16 %v4652
        %v4826 = vunpack.c.h.b16 %v4652
        %v4827 = vunpack.c.l.b16 %v4653
        %v4828 = vunpack.c.h.b16 %v4653
        %v4829 = vunpack.c.l.b16 %v4654
        %v4830 = vunpack.c.h.b16 %v4654
        %v4831 = vunpack.c.l.b16 %v4655
        %v4832 = vunpack.c.h.b16 %v4655
        %v4833 = vunpack.c.l.b16 %v4656
        %v4834 = vunpack.c.h.b16 %v4656
        %v4835 = vunpack.c.l.b16 %v4657
        %v4836 = vunpack.c.h.b16 %v4657
        %v4837 = vunpack.c.l.b16 %v4658
        %v4838 = vunpack.c.h.b16 %v4658
        %v4839 = vunpack.c.l.b16 %v4659
        %v4840 = vunpack.c.h.b16 %v4659
        %v4841 = vunpack.c.l.b16 %v4660
        %v4842 = vunpack.c.h.b16 %v4660
        %v4843 = vunpack.c.l.b16 %v4661
        %v4844 = vunpack.c.h.b16 %v4661
        %v4845 = vunpack.c.l.b16 %v4662
        %v4846 = vunpack.c.h.b16 %v4662
        %v4847 = vunpack.c.l.b16 %v4663
        %v4848 = vunpack.c.h.b16 %v4663
        %v4849 = vunpack.c.l.b16 %v4664
        %v4850 = vunpack.c.h.b16 %v4664
        %v4851 = vunpack.c.l.b16 %v4665
        %v4852 = vunpack.c.h.b16 %v4665
        %v4853 = vunpack.c.l.b16 %v4666
        %v4854 = vunpack.c.h.b16 %v4666
        %v4855 = vunpack.c.l.b16 %v4667
        %v4856 = vunpack.c.h.b16 %v4667
        %v4857 = vunpack.c.l.b16 %v4668
        %v4858 = vunpack.c.h.b16 %v4668
        %v4859 = vunpack.c.l.b16 %v4669
        %v4860 = vunpack.c.h.b16 %v4669
        %v4861 = vunpack.c.l.b16 %v4670
        %v4862 = vunpack.c.h.b16 %v4670
        %v4863 = vunpack.c.l.b16 %v4671
        %v4864 = vunpack.c.h.b16 %v4671
        %v4865 = vunpack.c.l.b16 %v4672
        %v4866 = vunpack.c.h.b16 %v4672
        %v4867 = vunpack.c.l.b16 %v4673
        %v4868 = vunpack.c.h.b16 %v4673
        %v4869 = vunpack.c.l.b16 %v4674
        %v4870 = vunpack.c.h.b16 %v4674
        %v4871 = vunpack.c.l.b16 %v4675
        %v4872 = vunpack.c.h.b16 %v4675
        %v4873 = vunpack.c.l.b16 %v4676
        %v4874 = vunpack.c.h.b16 %v4676
        %v4875 = vunpack.c.l.b16 %v4677
        %v4876 = vunpack.c.h.b16 %v4677
        %v4877 = vunpack.c.l.b16 %v4678
        %v4878 = vunpack.c.h.b16 %v4678
        %v4879 = vunpack.c.l.b16 %v4679
        %v4880 = vunpack.c.h.b16 %v4679
        %v4881 = vunpack.c.l.b16 %v4680
        %v4882 = vunpack.c.h.b16 %v4680
        %v4883 = vunpack.c.l.b16 %v4681
        %v4884 = vunpack.c.h.b16 %v4681
        %v4885 = vunpack.c.l.b16 %v4682
        %v4886 = vunpack.c.h.b16 %v4682
        %v4887 = vpack.c.b16 %v4761, %v4759
        %v4888 = vpack.c.b16 %v4762, %v4760
        %v4889 = vpack.c.b16 %v4765, %v4763
        %v4890 = vpack.c.b16 %v4766, %v4764
        %v4891 = vpack.c.b16 %v4769, %v4767
        %v4892 = vpack.c.b16 %v4770, %v4768
        %v4893 = vpack.c.b16 %v4773, %v4771
        %v4894 = vpack.c.b16 %v4774, %v4772
        %v4895 = vpack.c.b16 %v4777, %v4775
        %v4896 = vpack.c.b16 %v4778, %v4776
        %v4897 = vpack.c.b16 %v4781, %v4779
        %v4898 = vpack.c.b16 %v4782, %v4780
        %v4899 = vpack.c.b16 %v4785, %v4783
        %v4900 = vpack.c.b16 %v4786, %v4784
        %v4901 = vpack.c.b16 %v4789, %v4787
        %v4902 = vpack.c.b16 %v4790, %v4788
        %v4903 = vpack.c.b16 %v4793, %v4791
        %v4904 = vpack.c.b16 %v4794, %v4792
        %v4905 = vpack.c.b16 %v4797, %v4795
        %v4906 = vpack.c.b16 %v4798, %v4796
        %v4907 = vpack.c.b16 %v4801, %v4799
        %v4908 = vpack.c.b16 %v4802, %v4800
        %v4909 = vpack.c.b16 %v4805, %v4803
        %v4910 = vpack.c.b16 %v4806, %v4804
        %v4911 = vpack.c.b16 %v4809, %v4807
        %v4912 = vpack.c.b16 %v4810, %v4808
        %v4913 = vpack.c.b16 %v4813, %v4811
        %v4914 = vpack.c.b16 %v4814, %v4812
        %v4915 = vpack.c.b16 %v4817, %v4815
        %v4916 = vpack.c.b16 %v4818, %v4816
        %v4917 = vpack.c.b16 %v4821, %v4819
        %v4918 = vpack.c.b16 %v4822, %v4820
        %v4919 = vpack.c.b16 %v4825, %v4823
        %v4920 = vpack.c.b16 %v4826, %v4824
        %v4921 = vpack.c.b16 %v4829, %v4827
        %v4922 = vpack.c.b16 %v4830, %v4828
        %v4923 = vpack.c.b16 %v4833, %v4831
        %v4924 = vpack.c.b16 %v4834, %v4832
        %v4925 = vpack.c.b16 %v4837, %v4835
        %v4926 = vpack.c.b16 %v4838, %v4836
        %v4927 = vpack.c.b16 %v4841, %v4839
        %v4928 = vpack.c.b16 %v4842, %v4840
        %v4929 = vpack.c.b16 %v4845, %v4843
        %v4930 = vpack.c.b16 %v4846, %v4844
        %v4931 = vpack.c.b16 %v4849, %v4847
        %v4932 = vpack.c.b16 %v4850, %v4848
        %v4933 = vpack.c.b16 %v4853, %v4851
        %v4934 = vpack.c.b16 %v4854, %v4852
        %v4935 = vpack.c.b16 %v4857, %v4855
        %v4936 = vpack.c.b16 %v4858, %v4856
        %v4937 = vpack.c.b16 %v4861, %v4859
        %v4938 = vpack.c.b16 %v4862, %v4860
        %v4939 = vpack.c.b16 %v4865, %v4863
        %v4940 = vpack.c.b16 %v4866, %v4864
        %v4941 = vpack.c.b16 %v4869, %v4867
        %v4942 = vpack.c.b16 %v4870, %v4868
        %v4943 = vpack.c.b16 %v4873, %v4871
        %v4944 = vpack.c.b16 %v4874, %v4872
        %v4945 = vpack.c.b16 %v4877, %v4875
        %v4946 = vpack.c.b16 %v4878, %v4876
        %v4947 = vpack.c.b16 %v4881, %v4879
        %v4948 = vpack.c.b16 %v4882, %v4880
        %v4949 = vpack.c.b16 %v4885, %v4883
        %v4950 = vpack.c.b16 %v4886, %v4884
        %5015 = vmatprep.subr.bf16.mxu0 %v4888
        %5016 = vmatpush1.bf16.msra.mxu0 %v4887
        %5017 = vmatprep.subr.bf16.mxu0 %v4890
        %5018 = vmatpush1.bf16.msra.mxu0 %v4889
        %5019 = vmatprep.subr.bf16.mxu0 %v4892
        %5020 = vmatpush1.bf16.msra.mxu0 %v4891
        %5021 = vmatprep.subr.bf16.mxu0 %v4894
        %5022 = vmatpush1.bf16.msra.mxu0 %v4893
        %5023 = vmatprep.subr.bf16.mxu0 %v4896
        %5024 = vmatpush1.bf16.msra.mxu0 %v4895
        %5025 = vmatprep.subr.bf16.mxu0 %v4898
        %5026 = vmatpush1.bf16.msra.mxu0 %v4897
        %5027 = vmatprep.subr.bf16.mxu0 %v4900
        %5028 = vmatpush1.bf16.msra.mxu0 %v4899
        %5029 = vmatprep.subr.bf16.mxu0 %v4902
        %5030 = vmatpush1.bf16.msra.mxu0 %v4901
        %5031 = vmatprep.subr.bf16.mxu0 %v4904
        %5032 = vmatpush1.bf16.msra.mxu0 %v4903
        %5033 = vmatprep.subr.bf16.mxu0 %v4906
        %5034 = vmatpush1.bf16.msra.mxu0 %v4905
        %5035 = vmatprep.subr.bf16.mxu0 %v4908
        %5036 = vmatpush1.bf16.msra.mxu0 %v4907
        %5037 = vmatprep.subr.bf16.mxu0 %v4910
        %5038 = vmatpush1.bf16.msra.mxu0 %v4909
        %5039 = vmatprep.subr.bf16.mxu0 %v4912
        %5040 = vmatpush1.bf16.msra.mxu0 %v4911
        %5041 = vmatprep.subr.bf16.mxu0 %v4914
        %5042 = vmatpush1.bf16.msra.mxu0 %v4913
        %5043 = vmatprep.subr.bf16.mxu0 %v4916
        %5044 = vmatpush1.bf16.msra.mxu0 %v4915
        %5045 = vmatprep.subr.bf16.mxu0 %v4918
        %5046 = vmatpush1.bf16.msra.mxu0 %v4917
        %5047 = vmatprep.mubr.bf16.mxu0 %v4588
        %5048 = vmatmul.mubr.bf16.gmra.mrb[0].mxu0 %v4587
        %v5049 = vpop.f32.mrb[0].mxu0
        %v5050 = vadd.f32 %v4688, %v5049
        %v5051 = vpop.f32.mrb[0].mxu0
        %v5052 = vadd.f32 %v4692, %v5051
        %v5053 = vpop.f32.mrb[0].mxu0
        %v5054 = vadd.f32 %v4688, %v5053
        %v5055 = vpop.f32.mrb[0].mxu0
        %v5056 = vadd.f32 %v4692, %v5055
        %5057 = vmatprep.mubr.bf16.mxu0 %v4592
        %5058 = vmatmul.mubr.bf16.gmra.mrb[0].mxu0 %v4591
        %v5059 = vpop.f32.mrb[0].mxu0
        %v5060 = vadd.f32 %v4688, %v5059
        %v5061 = vpop.f32.mrb[0].mxu0
        %v5062 = vadd.f32 %v4692, %v5061
        %v5063 = vpop.f32.mrb[0].mxu0
        %v5064 = vadd.f32 %v4688, %v5063
        %v5065 = vpop.f32.mrb[0].mxu0
        %v5066 = vadd.f32 %v4692, %v5065
        %5067 = vmatprep.mubr.bf16.mxu0 %v4596
        %5068 = vmatmul.mubr.bf16.gmra.mrb[0].mxu0 %v4595
        %v5069 = vpop.f32.mrb[0].mxu0
        %v5070 = vadd.f32 %v4688, %v5069
        %v5071 = vpop.f32.mrb[0].mxu0
        %v5072 = vadd.f32 %v4692, %v5071
        %v5073 = vpop.f32.mrb[0].mxu0
        %v5074 = vadd.f32 %v4688, %v5073
        %v5075 = vpop.f32.mrb[0].mxu0
        %v5076 = vadd.f32 %v4692, %v5075
        %5077 = vmatprep.mubr.bf16.mxu0 %v4600
        %5078 = vmatmul.mubr.bf16.gmra.mrb[0].mxu0 %v4599
        %v5079 = vpop.f32.mrb[0].mxu0
        %v5080 = vadd.f32 %v4688, %v5079
        %v5081 = vpop.f32.mrb[0].mxu0
        %v5082 = vadd.f32 %v4692, %v5081
        %v5083 = vpop.f32.mrb[0].mxu0
        %v5084 = vadd.f32 %v4688, %v5083
        %v5085 = vpop.f32.mrb[0].mxu0
        %v5086 = vadd.f32 %v4692, %v5085
        %5087 = vmatprep.mubr.bf16.mxu0 %v4604
        %5088 = vmatmul.mubr.bf16.gmra.mrb[0].mxu0 %v4603
        %v5089 = vpop.f32.mrb[0].mxu0
        %v5090 = vadd.f32 %v4688, %v5089
        %v5091 = vpop.f32.mrb[0].mxu0
        %v5092 = vadd.f32 %v4692, %v5091
        %v5093 = vpop.f32.mrb[0].mxu0
        %v5094 = vadd.f32 %v4688, %v5093
        %v5095 = vpop.f32.mrb[0].mxu0
        %v5096 = vadd.f32 %v4692, %v5095
        %5097 = vmatprep.mubr.bf16.mxu0 %v4608
        %5098 = vmatmul.mubr.bf16.gmra.mrb[0].mxu0 %v4607
        %v5099 = vpop.f32.mrb[0].mxu0
        %v5100 = vadd.f32 %v4688, %v5099
        %v5101 = vpop.f32.mrb[0].mxu0
        %v5102 = vadd.f32 %v4692, %v5101
        %v5103 = vpop.f32.mrb[0].mxu0
        %v5104 = vadd.f32 %v4688, %v5103
        %v5105 = vpop.f32.mrb[0].mxu0
        %v5106 = vadd.f32 %v4692, %v5105
        %5107 = vmatprep.mubr.bf16.mxu0 %v4612
        %5108 = vmatmul.mubr.bf16.gmra.mrb[0].mxu0 %v4611
        %v5109 = vpop.f32.mrb[0].mxu0
        %v5110 = vadd.f32 %v4688, %v5109
        %v5111 = vpop.f32.mrb[0].mxu0
        %v5112 = vadd.f32 %v4692, %v5111
        %v5113 = vpop.f32.mrb[0].mxu0
        %v5114 = vadd.f32 %v4688, %v5113
        %v5115 = vpop.f32.mrb[0].mxu0
        %v5116 = vadd.f32 %v4692, %v5115
        %5117 = vmatprep.mubr.bf16.mxu0 %v4616
        %5118 = vmatmul.mubr.bf16.gmra.mrb[0].mxu0 %v4615
        %v5119 = vpop.f32.mrb[0].mxu0
        %v5120 = vadd.f32 %v4688, %v5119
        %v5121 = vpop.f32.mrb[0].mxu0
        %v5122 = vadd.f32 %v4692, %v5121
        %v5123 = vpop.f32.mrb[0].mxu0
        %v5124 = vadd.f32 %v4688, %v5123
        %v5125 = vpop.f32.mrb[0].mxu0
        %v5126 = vadd.f32 %v4692, %v5125
        %5127 = vdwg.mxu0
        %5128 = vmatprep.subr.bf16.mxu0 %v4920
        %5129 = vmatpush1.bf16.msra.mxu0 %v4919
        %5130 = vmatprep.subr.bf16.mxu0 %v4922
        %5131 = vmatpush1.bf16.msra.mxu0 %v4921
        %5132 = vmatprep.subr.bf16.mxu0 %v4924
        %5133 = vmatpush1.bf16.msra.mxu0 %v4923
        %5134 = vmatprep.subr.bf16.mxu0 %v4926
        %5135 = vmatpush1.bf16.msra.mxu0 %v4925
        %5136 = vmatprep.subr.bf16.mxu0 %v4928
        %5137 = vmatpush1.bf16.msra.mxu0 %v4927
        %5138 = vmatprep.subr.bf16.mxu0 %v4930
        %5139 = vmatpush1.bf16.msra.mxu0 %v4929
        %5140 = vmatprep.subr.bf16.mxu0 %v4932
        %5141 = vmatpush1.bf16.msra.mxu0 %v4931
        %5142 = vmatprep.subr.bf16.mxu0 %v4934
        %5143 = vmatpush1.bf16.msra.mxu0 %v4933
        %5144 = vmatprep.subr.bf16.mxu0 %v4936
        %5145 = vmatpush1.bf16.msra.mxu0 %v4935
        %5146 = vmatprep.subr.bf16.mxu0 %v4938
        %5147 = vmatpush1.bf16.msra.mxu0 %v4937
        %5148 = vmatprep.subr.bf16.mxu0 %v4940
        %5149 = vmatpush1.bf16.msra.mxu0 %v4939
        %5150 = vmatprep.subr.bf16.mxu0 %v4942
        %5151 = vmatpush1.bf16.msra.mxu0 %v4941
        %5152 = vmatprep.subr.bf16.mxu0 %v4944
        %5153 = vmatpush1.bf16.msra.mxu0 %v4943
        %5154 = vmatprep.subr.bf16.mxu0 %v4946
        %5155 = vmatpush1.bf16.msra.mxu0 %v4945
        %5156 = vmatprep.subr.bf16.mxu0 %v4948
        %5157 = vmatpush1.bf16.msra.mxu0 %v4947
        %5158 = vmatprep.subr.bf16.mxu0 %v4950
        %5159 = vmatpush1.bf16.msra.mxu0 %v4949
        %5160 = vmatprep.mubr.bf16.mxu0 %v4590
        %5161 = vmatmul.mubr.bf16.gmra.mrb[0].mxu0 %v4589
        %v5162 = vpop.f32.mrb[0].mxu0
        %v5163 = vadd.f32 %v5050, %v5162
        %v5164 = vpop.f32.mrb[0].mxu0
        %v5165 = vadd.f32 %v5052, %v5164
        %v5166 = vpop.f32.mrb[0].mxu0
        %v5167 = vadd.f32 %v5054, %v5166
        %v5168 = vpop.f32.mrb[0].mxu0
        %v5169 = vadd.f32 %v5056, %v5168
        %5170 = vmatprep.mubr.bf16.mxu0 %v4594
        %5171 = vmatmul.mubr.bf16.gmra.mrb[0].mxu0 %v4593
        %v5172 = vpop.f32.mrb[0].mxu0
        %v5173 = vadd.f32 %v5060, %v5172
        %v5174 = vpop.f32.mrb[0].mxu0
        %v5175 = vadd.f32 %v5062, %v5174
        %v5176 = vpop.f32.mrb[0].mxu0
        %v5177 = vadd.f32 %v5064, %v5176
        %v5178 = vpop.f32.mrb[0].mxu0
        %v5179 = vadd.f32 %v5066, %v5178
        %5180 = vmatprep.mubr.bf16.mxu0 %v4598
        %5181 = vmatmul.mubr.bf16.gmra.mrb[0].mxu0 %v4597
        %v5182 = vpop.f32.mrb[0].mxu0
        %v5183 = vadd.f32 %v5070, %v5182
        %v5184 = vpop.f32.mrb[0].mxu0
        %v5185 = vadd.f32 %v5072, %v5184
        %v5186 = vpop.f32.mrb[0].mxu0
        %v5187 = vadd.f32 %v5074, %v5186
        %v5188 = vpop.f32.mrb[0].mxu0
        %v5189 = vadd.f32 %v5076, %v5188
        %5190 = vmatprep.mubr.bf16.mxu0 %v4602
        %5191 = vmatmul.mubr.bf16.gmra.mrb[0].mxu0 %v4601
        %v5192 = vpop.f32.mrb[0].mxu0
        %v5193 = vadd.f32 %v5080, %v5192
        %v5194 = vpop.f32.mrb[0].mxu0
        %v5195 = vadd.f32 %v5082, %v5194
        %v5196 = vpop.f32.mrb[0].mxu0
        %v5197 = vadd.f32 %v5084, %v5196
        %v5198 = vpop.f32.mrb[0].mxu0
        %v5199 = vadd.f32 %v5086, %v5198
        %5200 = vmatprep.mubr.bf16.mxu0 %v4606
        %5201 = vmatmul.mubr.bf16.gmra.mrb[0].mxu0 %v4605
        %v5202 = vpop.f32.mrb[0].mxu0
        %v5203 = vadd.f32 %v5090, %v5202
        %v5204 = vpop.f32.mrb[0].mxu0
        %v5205 = vadd.f32 %v5092, %v5204
        %v5206 = vpop.f32.mrb[0].mxu0
        %v5207 = vadd.f32 %v5094, %v5206
        %v5208 = vpop.f32.mrb[0].mxu0
        %v5209 = vadd.f32 %v5096, %v5208
        %5210 = vmatprep.mubr.bf16.mxu0 %v4610
        %5211 = vmatmul.mubr.bf16.gmra.mrb[0].mxu0 %v4609
        %v5212 = vpop.f32.mrb[0].mxu0
        %v5213 = vadd.f32 %v5100, %v5212
        %v5214 = vpop.f32.mrb[0].mxu0
        %v5215 = vadd.f32 %v5102, %v5214
        %v5216 = vpop.f32.mrb[0].mxu0
        %v5217 = vadd.f32 %v5104, %v5216
        %v5218 = vpop.f32.mrb[0].mxu0
        %v5219 = vadd.f32 %v5106, %v5218
        %5220 = vmatprep.mubr.bf16.mxu0 %v4614
        %5221 = vmatmul.mubr.bf16.gmra.mrb[0].mxu0 %v4613
        %v5222 = vpop.f32.mrb[0].mxu0
        %v5223 = vadd.f32 %v5110, %v5222
        %v5224 = vpop.f32.mrb[0].mxu0
        %v5225 = vadd.f32 %v5112, %v5224
        %v5226 = vpop.f32.mrb[0].mxu0
        %v5227 = vadd.f32 %v5114, %v5226
        %v5228 = vpop.f32.mrb[0].mxu0
        %v5229 = vadd.f32 %v5116, %v5228
        %5230 = vmatprep.mubr.bf16.mxu0 %v4618
        %5231 = vmatmul.mubr.bf16.gmra.mrb[0].mxu0 %v4617
        %v5232 = vpop.f32.mrb[0].mxu0
        %v5233 = vadd.f32 %v5120, %v5232
        %v5234 = vpop.f32.mrb[0].mxu0
        %v5235 = vadd.f32 %v5122, %v5234
        %v5236 = vpop.f32.mrb[0].mxu0
        %v5237 = vadd.f32 %v5124, %v5236
        %v5238 = vpop.f32.mrb[0].mxu0
        %v5239 = vadd.f32 %v5126, %v5238
        %5240 = vdwg.mxu0
        %v5241 = vadd.f32 %v3843, %v5163
        %v5242 = vadd.f32 %v3844, %v5165
        %v5243 = vadd.f32 %v3845, %v5167
        %v5244 = vadd.f32 %v3846, %v5169
        %v5245 = vadd.f32 %v3847, %v5173
        %v5246 = vadd.f32 %v3848, %v5175
        %v5247 = vadd.f32 %v3849, %v5177
        %v5248 = vadd.f32 %v3850, %v5179
        %v5249 = vadd.f32 %v3851, %v5183
        %v5250 = vadd.f32 %v3852, %v5185
        %v5251 = vadd.f32 %v3853, %v5187
        %v5252 = vadd.f32 %v3854, %v5189
        %v5253 = vadd.f32 %v3855, %v5193
        %v5254 = vadd.f32 %v3856, %v5195
        %v5255 = vadd.f32 %v3857, %v5197
        %v5256 = vadd.f32 %v3858, %v5199
        %v5257 = vadd.f32 %v3859, %v5203
        %v5258 = vadd.f32 %v3860, %v5205
        %v5259 = vadd.f32 %v3861, %v5207
        %v5260 = vadd.f32 %v3862, %v5209
        %v5261 = vadd.f32 %v3863, %v5213
        %v5262 = vadd.f32 %v3864, %v5215
        %v5263 = vadd.f32 %v3865, %v5217
        %v5264 = vadd.f32 %v3866, %v5219
        %v5265 = vadd.f32 %v3867, %v5223
        %v5266 = vadd.f32 %v3868, %v5225
        %v5267 = vadd.f32 %v3869, %v5227
        %v5268 = vadd.f32 %v3870, %v5229
        %v5269 = vadd.f32 %v3871, %v5233
        %v5270 = vadd.f32 %v3872, %v5235
        %v5271 = vadd.f32 %v3873, %v5237
        %v5272 = vadd.f32 %v3874, %v5239
        %v5273 = vadd.f32 %v5241, %v5242
        %5274 = vadd.xlane.f32.xlu0 %v5273
        %v5275 = vpop.xlane.xlu0 %5274
        %v5276 = vadd.f32 %v5243, %v5244
        %5277 = vadd.xlane.f32.xlu0 %v5276
        %v5278 = vpop.xlane.xlu0 %5277
        %v5279 = vadd.f32 %v5245, %v5246
        %5280 = vadd.xlane.f32.xlu0 %v5279
        %v5281 = vpop.xlane.xlu0 %5280
        %v5282 = vadd.f32 %v5247, %v5248
        %5283 = vadd.xlane.f32.xlu0 %v5282
        %v5284 = vpop.xlane.xlu0 %5283
        %v5285 = vadd.f32 %v5249, %v5250
        %5286 = vadd.xlane.f32.xlu0 %v5285
        %v5287 = vpop.xlane.xlu0 %5286
        %v5288 = vadd.f32 %v5251, %v5252
        %5289 = vadd.xlane.f32.xlu0 %v5288
        %v5290 = vpop.xlane.xlu0 %5289
        %v5291 = vadd.f32 %v5253, %v5254
        %5292 = vadd.xlane.f32.xlu0 %v5291
        %v5293 = vpop.xlane.xlu0 %5292
        %v5294 = vadd.f32 %v5255, %v5256
        %5295 = vadd.xlane.f32.xlu0 %v5294
        %v5296 = vpop.xlane.xlu0 %5295
        %v5297 = vadd.f32 %v5257, %v5258
        %5298 = vadd.xlane.f32.xlu0 %v5297
        %v5299 = vpop.xlane.xlu0 %5298
        %v5300 = vadd.f32 %v5259, %v5260
        %5301 = vadd.xlane.f32.xlu0 %v5300
        %v5302 = vpop.xlane.xlu0 %5301
        %v5303 = vadd.f32 %v5261, %v5262
        %5304 = vadd.xlane.f32.xlu0 %v5303
        %v5305 = vpop.xlane.xlu0 %5304
        %v5306 = vadd.f32 %v5263, %v5264
        %5307 = vadd.xlane.f32.xlu0 %v5306
        %v5308 = vpop.xlane.xlu0 %5307
        %v5309 = vadd.f32 %v5265, %v5266
        %5310 = vadd.xlane.f32.xlu0 %v5309
        %v5311 = vpop.xlane.xlu0 %5310
        %v5312 = vadd.f32 %v5267, %v5268
        %5313 = vadd.xlane.f32.xlu0 %v5312
        %v5314 = vpop.xlane.xlu0 %5313
        %v5315 = vadd.f32 %v5269, %v5270
        %5316 = vadd.xlane.f32.xlu0 %v5315
        %v5317 = vpop.xlane.xlu0 %5316
        %v5318 = vadd.f32 %v5271, %v5272
        %5319 = vadd.xlane.f32.xlu0 %v5318
        %v5320 = vpop.xlane.xlu0 %5319
        %v5321 = vmul.f32 %v5275, %v3578
        %v5322 = vmul.f32 %v5278, %v3578
        %v5323 = vmul.f32 %v5281, %v3578
        %v5324 = vmul.f32 %v5284, %v3578
        %v5325 = vmul.f32 %v5287, %v3578
        %v5326 = vmul.f32 %v5290, %v3578
        %v5327 = vmul.f32 %v5293, %v3578
        %v5328 = vmul.f32 %v5296, %v3578
        %v5329 = vmul.f32 %v5299, %v3578
        %v5330 = vmul.f32 %v5302, %v3578
        %v5331 = vmul.f32 %v5305, %v3578
        %v5332 = vmul.f32 %v5308, %v3578
        %v5333 = vmul.f32 %v5311, %v3578
        %v5334 = vmul.f32 %v5314, %v3578
        %v5335 = vmul.f32 %v5317, %v3578
        %v5336 = vmul.f32 %v5320, %v3578
        %v5337 = vsub.f32 %v5241, %v5321
        %v5338 = vsub.f32 %v5242, %v5321
        %v5339 = vsub.f32 %v5243, %v5322
        %v5340 = vsub.f32 %v5244, %v5322
        %v5341 = vsub.f32 %v5245, %v5323
        %v5342 = vsub.f32 %v5246, %v5323
        %v5343 = vsub.f32 %v5247, %v5324
        %v5344 = vsub.f32 %v5248, %v5324
        %v5345 = vsub.f32 %v5249, %v5325
        %v5346 = vsub.f32 %v5250, %v5325
        %v5347 = vsub.f32 %v5251, %v5326
        %v5348 = vsub.f32 %v5252, %v5326
        %v5349 = vsub.f32 %v5253, %v5327
        %v5350 = vsub.f32 %v5254, %v5327
        %v5351 = vsub.f32 %v5255, %v5328
        %v5352 = vsub.f32 %v5256, %v5328
        %v5353 = vsub.f32 %v5257, %v5329
        %v5354 = vsub.f32 %v5258, %v5329
        %v5355 = vsub.f32 %v5259, %v5330
        %v5356 = vsub.f32 %v5260, %v5330
        %v5357 = vsub.f32 %v5261, %v5331
        %v5358 = vsub.f32 %v5262, %v5331
        %v5359 = vsub.f32 %v5263, %v5332
        %v5360 = vsub.f32 %v5264, %v5332
        %v5361 = vsub.f32 %v5265, %v5333
        %v5362 = vsub.f32 %v5266, %v5333
        %v5363 = vsub.f32 %v5267, %v5334
        %v5364 = vsub.f32 %v5268, %v5334
        %v5365 = vsub.f32 %v5269, %v5335
        %v5366 = vsub.f32 %v5270, %v5335
        %v5367 = vsub.f32 %v5271, %v5336
        %v5368 = vsub.f32 %v5272, %v5336
        %v5369 = vmul.f32 %v5337, %v5337
        %v5370 = vmul.f32 %v5338, %v5338
        %v5371 = vmul.f32 %v5339, %v5339
        %v5372 = vmul.f32 %v5340, %v5340
        %v5373 = vmul.f32 %v5341, %v5341
        %v5374 = vmul.f32 %v5342, %v5342
        %v5375 = vmul.f32 %v5343, %v5343
        %v5376 = vmul.f32 %v5344, %v5344
        %v5377 = vmul.f32 %v5345, %v5345
        %v5378 = vmul.f32 %v5346, %v5346
        %v5379 = vmul.f32 %v5347, %v5347
        %v5380 = vmul.f32 %v5348, %v5348
        %v5381 = vmul.f32 %v5349, %v5349
        %v5382 = vmul.f32 %v5350, %v5350
        %v5383 = vmul.f32 %v5351, %v5351
        %v5384 = vmul.f32 %v5352, %v5352
        %v5385 = vmul.f32 %v5353, %v5353
        %v5386 = vmul.f32 %v5354, %v5354
        %v5387 = vmul.f32 %v5355, %v5355
        %v5388 = vmul.f32 %v5356, %v5356
        %v5389 = vmul.f32 %v5357, %v5357
        %v5390 = vmul.f32 %v5358, %v5358
        %v5391 = vmul.f32 %v5359, %v5359
        %v5392 = vmul.f32 %v5360, %v5360
        %v5393 = vmul.f32 %v5361, %v5361
        %v5394 = vmul.f32 %v5362, %v5362
        %v5395 = vmul.f32 %v5363, %v5363
        %v5396 = vmul.f32 %v5364, %v5364
        %v5397 = vmul.f32 %v5365, %v5365
        %v5398 = vmul.f32 %v5366, %v5366
        %v5399 = vmul.f32 %v5367, %v5367
        %v5400 = vmul.f32 %v5368, %v5368
        %v5401 = vadd.f32 %v5369, %v5370
        %5402 = vadd.xlane.f32.xlu0 %v5401
        %v5403 = vpop.xlane.xlu0 %5402
        %v5404 = vadd.f32 %v5371, %v5372
        %5405 = vadd.xlane.f32.xlu0 %v5404
        %v5406 = vpop.xlane.xlu0 %5405
        %v5407 = vadd.f32 %v5373, %v5374
        %5408 = vadd.xlane.f32.xlu0 %v5407
        %v5409 = vpop.xlane.xlu0 %5408
        %v5410 = vadd.f32 %v5375, %v5376
        %5411 = vadd.xlane.f32.xlu0 %v5410
        %v5412 = vpop.xlane.xlu0 %5411
        %v5413 = vadd.f32 %v5377, %v5378
        %5414 = vadd.xlane.f32.xlu0 %v5413
        %v5415 = vpop.xlane.xlu0 %5414
        %v5416 = vadd.f32 %v5379, %v5380
        %5417 = vadd.xlane.f32.xlu0 %v5416
        %v5418 = vpop.xlane.xlu0 %5417
        %v5419 = vadd.f32 %v5381, %v5382
        %5420 = vadd.xlane.f32.xlu0 %v5419
        %v5421 = vpop.xlane.xlu0 %5420
        %v5422 = vadd.f32 %v5383, %v5384
        %5423 = vadd.xlane.f32.xlu0 %v5422
        %v5424 = vpop.xlane.xlu0 %5423
        %v5425 = vadd.f32 %v5385, %v5386
        %5426 = vadd.xlane.f32.xlu0 %v5425
        %v5427 = vpop.xlane.xlu0 %5426
        %v5428 = vadd.f32 %v5387, %v5388
        %5429 = vadd.xlane.f32.xlu0 %v5428
        %v5430 = vpop.xlane.xlu0 %5429
        %v5431 = vadd.f32 %v5389, %v5390
        %5432 = vadd.xlane.f32.xlu0 %v5431
        %v5433 = vpop.xlane.xlu0 %5432
        %v5434 = vadd.f32 %v5391, %v5392
        %5435 = vadd.xlane.f32.xlu0 %v5434
        %v5436 = vpop.xlane.xlu0 %5435
        %v5437 = vadd.f32 %v5393, %v5394
        %5438 = vadd.xlane.f32.xlu0 %v5437
        %v5439 = vpop.xlane.xlu0 %5438
        %v5440 = vadd.f32 %v5395, %v5396
        %5441 = vadd.xlane.f32.xlu0 %v5440
        %v5442 = vpop.xlane.xlu0 %5441
        %v5443 = vadd.f32 %v5397, %v5398
        %5444 = vadd.xlane.f32.xlu0 %v5443
        %v5445 = vpop.xlane.xlu0 %5444
        %v5446 = vadd.f32 %v5399, %v5400
        %5447 = vadd.xlane.f32.xlu0 %v5446
        %v5448 = vpop.xlane.xlu0 %5447
        %v5449 = vmul.f32 %v5403, %v3578
        %v5450 = vmul.f32 %v5406, %v3578
        %v5451 = vmul.f32 %v5409, %v3578
        %v5452 = vmul.f32 %v5412, %v3578
        %v5453 = vmul.f32 %v5415, %v3578
        %v5454 = vmul.f32 %v5418, %v3578
        %v5455 = vmul.f32 %v5421, %v3578
        %v5456 = vmul.f32 %v5424, %v3578
        %v5457 = vmul.f32 %v5427, %v3578
        %v5458 = vmul.f32 %v5430, %v3578
        %v5459 = vmul.f32 %v5433, %v3578
        %v5460 = vmul.f32 %v5436, %v3578
        %v5461 = vmul.f32 %v5439, %v3578
        %v5462 = vmul.f32 %v5442, %v3578
        %v5463 = vmul.f32 %v5445, %v3578
        %v5464 = vmul.f32 %v5448, %v3578
        %v5465 = vadd.f32 %v5449, 1e-06
        %v5466 = vadd.f32 %v5450, 1e-06
        %v5467 = vadd.f32 %v5451, 1e-06
        %v5468 = vadd.f32 %v5452, 1e-06
        %v5469 = vadd.f32 %v5453, 1e-06
        %v5470 = vadd.f32 %v5454, 1e-06
        %v5471 = vadd.f32 %v5455, 1e-06
        %v5472 = vadd.f32 %v5456, 1e-06
        %v5473 = vadd.f32 %v5457, 1e-06
        %v5474 = vadd.f32 %v5458, 1e-06
        %v5475 = vadd.f32 %v5459, 1e-06
        %v5476 = vadd.f32 %v5460, 1e-06
        %v5477 = vadd.f32 %v5461, 1e-06
        %v5478 = vadd.f32 %v5462, 1e-06
        %v5479 = vadd.f32 %v5463, 1e-06
        %v5480 = vadd.f32 %v5464, 1e-06
        %v5481 = vrsqrt.pop %v5465
        %v5482 = vrsqrt.pop %v5466
        %v5483 = vrsqrt.pop %v5467
        %v5484 = vrsqrt.pop %v5468
        %v5485 = vrsqrt.pop %v5469
        %v5486 = vrsqrt.pop %v5470
        %v5487 = vrsqrt.pop %v5471
        %v5488 = vrsqrt.pop %v5472
        %v5489 = vrsqrt.pop %v5473
        %v5490 = vrsqrt.pop %v5474
        %v5491 = vrsqrt.pop %v5475
        %v5492 = vrsqrt.pop %v5476
        %v5493 = vrsqrt.pop %v5477
        %v5494 = vrsqrt.pop %v5478
        %v5495 = vrsqrt.pop %v5479
        %v5496 = vrsqrt.pop %v5480
        %v5497 = vmul.f32 %v5337, %v5481
        %v5498 = vmul.f32 %v5338, %v5481
        %v5499 = vmul.f32 %v5339, %v5482
        %v5500 = vmul.f32 %v5340, %v5482
        %v5501 = vmul.f32 %v5341, %v5483
        %v5502 = vmul.f32 %v5342, %v5483
        %v5503 = vmul.f32 %v5343, %v5484
        %v5504 = vmul.f32 %v5344, %v5484
        %v5505 = vmul.f32 %v5345, %v5485
        %v5506 = vmul.f32 %v5346, %v5485
        %v5507 = vmul.f32 %v5347, %v5486
        %v5508 = vmul.f32 %v5348, %v5486
        %v5509 = vmul.f32 %v5349, %v5487
        %v5510 = vmul.f32 %v5350, %v5487
        %v5511 = vmul.f32 %v5351, %v5488
        %v5512 = vmul.f32 %v5352, %v5488
        %v5513 = vmul.f32 %v5353, %v5489
        %v5514 = vmul.f32 %v5354, %v5489
        %v5515 = vmul.f32 %v5355, %v5490
        %v5516 = vmul.f32 %v5356, %v5490
        %v5517 = vmul.f32 %v5357, %v5491
        %v5518 = vmul.f32 %v5358, %v5491
        %v5519 = vmul.f32 %v5359, %v5492
        %v5520 = vmul.f32 %v5360, %v5492
        %v5521 = vmul.f32 %v5361, %v5493
        %v5522 = vmul.f32 %v5362, %v5493
        %v5523 = vmul.f32 %v5363, %v5494
        %v5524 = vmul.f32 %v5364, %v5494
        %v5525 = vmul.f32 %v5365, %v5495
        %v5526 = vmul.f32 %v5366, %v5495
        %v5527 = vmul.f32 %v5367, %v5496
        %v5528 = vmul.f32 %v5368, %v5496
        %v5529 = vld [vmem:[%s9] sm:$0x3]
        %v5531 = vlaneseq
        %v5532 = vshrl.u32 %v5531, 7
        %v5533 = vsub.s32 0, %v5532
        %v5534 = vrot.slane %v5529, %v5533
        %v5535 = vlaneseq
        %v5536 = vshrl.u32 %v5535, 7
        %v5537 = vsub.s32 1, %v5536
        %v5538 = vrot.slane %v5529, %v5537
        %v5541 = vmul.f32 %v5497, %v5534
        %v5542 = vmul.f32 %v5498, %v5538
        %v5543 = vmul.f32 %v5499, %v5534
        %v5544 = vmul.f32 %v5500, %v5538
        %v5545 = vmul.f32 %v5501, %v5534
        %v5546 = vmul.f32 %v5502, %v5538
        %v5547 = vmul.f32 %v5503, %v5534
        %v5548 = vmul.f32 %v5504, %v5538
        %v5549 = vmul.f32 %v5505, %v5534
        %v5550 = vmul.f32 %v5506, %v5538
        %v5551 = vmul.f32 %v5507, %v5534
        %v5552 = vmul.f32 %v5508, %v5538
        %v5553 = vmul.f32 %v5509, %v5534
        %v5554 = vmul.f32 %v5510, %v5538
        %v5555 = vmul.f32 %v5511, %v5534
        %v5556 = vmul.f32 %v5512, %v5538
        %v5557 = vmul.f32 %v5513, %v5534
        %v5558 = vmul.f32 %v5514, %v5538
        %v5559 = vmul.f32 %v5515, %v5534
        %v5560 = vmul.f32 %v5516, %v5538
        %v5561 = vmul.f32 %v5517, %v5534
        %v5562 = vmul.f32 %v5518, %v5538
        %v5563 = vmul.f32 %v5519, %v5534
        %v5564 = vmul.f32 %v5520, %v5538
        %v5565 = vmul.f32 %v5521, %v5534
        %v5566 = vmul.f32 %v5522, %v5538
        %v5567 = vmul.f32 %v5523, %v5534
        %v5568 = vmul.f32 %v5524, %v5538
        %v5569 = vmul.f32 %v5525, %v5534
        %v5570 = vmul.f32 %v5526, %v5538
        %v5571 = vmul.f32 %v5527, %v5534
        %v5572 = vmul.f32 %v5528, %v5538
        %v5573 = vld [vmem:[%s10] sm:$0x3]
        %v5575 = vlaneseq
        %v5576 = vshrl.u32 %v5575, 7
        %v5577 = vsub.s32 0, %v5576
        %v5578 = vrot.slane %v5573, %v5577
        %v5579 = vlaneseq
        %v5580 = vshrl.u32 %v5579, 7
        %v5581 = vsub.s32 1, %v5580
        %v5582 = vrot.slane %v5573, %v5581
        %v5585 = vadd.f32 %v5541, %v5578
        %v5586 = vadd.f32 %v5542, %v5582
        %v5587 = vadd.f32 %v5543, %v5578
        %v5588 = vadd.f32 %v5544, %v5582
        %v5589 = vadd.f32 %v5545, %v5578
        %v5590 = vadd.f32 %v5546, %v5582
        %v5591 = vadd.f32 %v5547, %v5578
        %v5592 = vadd.f32 %v5548, %v5582
        %v5593 = vadd.f32 %v5549, %v5578
        %v5594 = vadd.f32 %v5550, %v5582
        %v5595 = vadd.f32 %v5551, %v5578
        %v5596 = vadd.f32 %v5552, %v5582
        %v5597 = vadd.f32 %v5553, %v5578
        %v5598 = vadd.f32 %v5554, %v5582
        %v5599 = vadd.f32 %v5555, %v5578
        %v5600 = vadd.f32 %v5556, %v5582
        %v5601 = vadd.f32 %v5557, %v5578
        %v5602 = vadd.f32 %v5558, %v5582
        %v5603 = vadd.f32 %v5559, %v5578
        %v5604 = vadd.f32 %v5560, %v5582
        %v5605 = vadd.f32 %v5561, %v5578
        %v5606 = vadd.f32 %v5562, %v5582
        %v5607 = vadd.f32 %v5563, %v5578
        %v5608 = vadd.f32 %v5564, %v5582
        %v5609 = vadd.f32 %v5565, %v5578
        %v5610 = vadd.f32 %v5566, %v5582
        %v5611 = vadd.f32 %v5567, %v5578
        %v5612 = vadd.f32 %v5568, %v5582
        %v5613 = vadd.f32 %v5569, %v5578
        %v5614 = vadd.f32 %v5570, %v5582
        %v5615 = vadd.f32 %v5571, %v5578
        %v5616 = vadd.f32 %v5572, %v5582
        %5617 = vst [vmem:[%s599] sm:$0xff] %v5585
        %5618 = vst [vmem:[%s599 + $0x8] sm:$0xff] %v5586
        %5619 = vst [vmem:[%s599 + $0x10] sm:$0xff] %v5587
        %5620 = vst [vmem:[%s599 + $0x18] sm:$0xff] %v5588
        %5621 = vst [vmem:[%s599 + $0x20] sm:$0xff] %v5589
        %5622 = vst [vmem:[%s599 + $0x28] sm:$0xff] %v5590
        %5623 = vst [vmem:[%s599 + $0x30] sm:$0xff] %v5591
        %5624 = vst [vmem:[%s599 + $0x38] sm:$0xff] %v5592
        %5625 = vst [vmem:[%s599 + $0x40] sm:$0xff] %v5593
        %5626 = vst [vmem:[%s599 + $0x48] sm:$0xff] %v5594
        %5627 = vst [vmem:[%s599 + $0x50] sm:$0xff] %v5595
        %5628 = vst [vmem:[%s599 + $0x58] sm:$0xff] %v5596
        %5629 = vst [vmem:[%s599 + $0x60] sm:$0xff] %v5597
        %5630 = vst [vmem:[%s599 + $0x68] sm:$0xff] %v5598
        %5631 = vst [vmem:[%s599 + $0x70] sm:$0xff] %v5599
        %5632 = vst [vmem:[%s599 + $0x78] sm:$0xff] %v5600
        %5633 = vst [vmem:[%s599 + $0x80] sm:$0xff] %v5601
        %5634 = vst [vmem:[%s599 + $0x88] sm:$0xff] %v5602
        %5635 = vst [vmem:[%s599 + $0x90] sm:$0xff] %v5603
        %5636 = vst [vmem:[%s599 + $0x98] sm:$0xff] %v5604
        %5637 = vst [vmem:[%s599 + $0xa0] sm:$0xff] %v5605
        %5638 = vst [vmem:[%s599 + $0xa8] sm:$0xff] %v5606
        %5639 = vst [vmem:[%s599 + $0xb0] sm:$0xff] %v5607
        %5640 = vst [vmem:[%s599 + $0xb8] sm:$0xff] %v5608
        %5641 = vst [vmem:[%s599 + $0xc0] sm:$0xff] %v5609
        %5642 = vst [vmem:[%s599 + $0xc8] sm:$0xff] %v5610
        %5643 = vst [vmem:[%s599 + $0xd0] sm:$0xff] %v5611
        %5644 = vst [vmem:[%s599 + $0xd8] sm:$0xff] %v5612
        %5645 = vst [vmem:[%s599 + $0xe0] sm:$0xff] %v5613
        %5646 = vst [vmem:[%s599 + $0xe8] sm:$0xff] %v5614
        %5647 = vst [vmem:[%s599 + $0xf0] sm:$0xff] %v5615
        %5648 = vst [vmem:[%s599 + $0xf8] sm:$0xff] %v5616
        %s5649 = sand.u32 %s377, 1
        %s5650 = scalar_lea.sflag [#allocation7], %s5649
        %s5651 = sand.u32 %s377, 1
        %s5652 = smul.addr %s5651, 256
        %s5653 = scalar_lea.vmem [#allocation16], %s5652
        // Predicated region
        $region109: #{tpu_custom_call.1} parent=79 // pred_check
          %p5654 = pneg %p387
        $region110: #{tpu_custom_call.1} parent=79 // pred_check_branch
          %5656 = sbr.rel (%p5654) target = $region112
        $region111: #{tpu_custom_call.1} parent=79 // pred_region
          %s5657 = smul.u32 16, %s40
          %s5659 = ssub.s32 4096, 4096
          %5660 = vsyncadd %s5650, %s5659
          %s5661 = smul.addr %s5657, 2
          %s5662 = smul.addr %s39, 64
          %s5663 = sadd.s32 %s5661, %s5662
          %s5664 = smul.addr %s5663, 128
          %s5665 = scalar_lea.hbm %s15, %s5664
          %s5666 = sshll.u32 %s5653, 4
          %s5667 = int_to_ptr.vmem [resolvable:$true] %s5666
          %5672 = dma.vmem_to_hbm [thread:$0]  %s5667, 4096, %s5665, %s5650, 256, 256, 16
        $region112: #{tpu_custom_call.1} parent=79 // pred_fallthru
          _
      $region80: #{tpu_custom_call.1} parent=5 // pred_fallthru
        _
      %p5673 = scmp.le.s32.totalorder 2, %s30
      // Predicated region
      $region113: #{tpu_custom_call.1} parent=5 // pred_check
        %p5674 = pneg %p5673
      $region114: #{tpu_custom_call.1} parent=5 // pred_check_branch
        %5676 = sbr.rel (%p5674) target = $region116
      $region115: #{tpu_custom_call.1} parent=5 // pred_region
        %s5677 = ssub.s32 %s30, 2
        // Predicated region
        $region117: #{tpu_custom_call.1} parent=115 // pred_check
          %p5678 = pneg %p393
        $region118: #{tpu_custom_call.1} parent=115 // pred_check_branch
          %5680 = sbr.rel (%p5678) target = $region120
        $region119: #{tpu_custom_call.1} parent=115 // pred_region
          %s5681 = sand.u32 %s378, 1
          %s5682 = scalar_lea.sflag [#allocation7], %s5681
          %s5683 = sand.u32 %s378, 1
          %s5684 = smul.addr %s5683, 256
          %s5685 = scalar_lea.vmem [#allocation16], %s5684
          %5686 = dma.done %s5682, 4096
        $region120: #{tpu_custom_call.1} parent=115 // pred_fallthru
          _
      $region116: #{tpu_custom_call.1} parent=5 // pred_fallthru
        _
    $region6: #{tpu_custom_call.1} parent=1 // loop_footer
      %s34 = sadd.s32 1, %s30
    $region7: #{tpu_custom_call.1} parent=1 // loop_footer_branch
      %29 = sbr.rel target = $region3
    $region8: #{tpu_custom_call.1} parent=1 // loop_exit
      _
    %5687 = vsyncpa [#allocation6], 1
    %s5688 = scalar_lea.sflag [#allocation6], 1
    %5689 = vsyncpa %s5688, 1
    %5690 = vsyncpa [#allocation9], 1
    %5691 = vsyncpa [#allocation12], 1
    %5692 = vsyncpa [#allocation15], 1
    %5693 = vsyncpa [#allocation7], 1
    %s5694 = scalar_lea.sflag [#allocation7], 1
    %5695 = vsyncpa %s5694, 1

</llo_original>
